<compile_context>
chip_gen: v5e
topology: v5e:2x2
jax: 0.10.0
libtpu: 0.0.40
codegen_flags: <defaults>
</compile_context>

<pallas_src>
import jax
import jax.numpy as jnp
from jax.experimental import pallas as pl
from jax.experimental.pallas import tpu as pltpu

# ----------------------------- configuration --------------------------------
NUM_VARIATES = 4        # v
LOOKBACK_LEN = 8        # n (time)
DEPTH = 2
DIM = 32
DIM_HEAD = 16
HEADS = 4
NUM_MEM_TOKENS = 4
PRED_LENGTH = 12
NUM_TOKENS_PER_VARIATE = 1
DIM_INNER = DIM_HEAD * HEADS                     # 64
FF_INNER = int(DIM * 4 * 2 / 3)                  # 85 (GEGLU inner dim)
FF_PAD = 128                                     # lane-dense padding of FF_INNER
HEAD_PAD = 128                                   # lane-dense padding of PRED_LENGTH
TOKENS = NUM_VARIATES * NUM_TOKENS_PER_VARIATE + NUM_MEM_TOKENS   # 8
SR_DH = DIM_HEAD // 2                            # head dim after stride-2 SR conv (8)
KV_FLAT = TOKENS * SR_DH                         # flattened (token, d') width (64)
Q_EXP_COLS = HEADS * KV_FLAT                     # expanded q width (256)
PROJ_COLS = Q_EXP_COLS + HEADS * SR_DH           # q_exp | gates (288)
ATTN_SCALE = DIM_HEAD ** -0.5
LN_EPS = 1e-5


# ------------------------------ in-kernel helpers ----------------------------
def _layernorm(x, g, b):
    mean = jnp.mean(x, axis=-1, keepdims=True)
    var = jnp.mean(jnp.square(x - mean), axis=-1, keepdims=True)
    return (x - mean) * jax.lax.rsqrt(var + LN_EPS) * g + b


def _mm(x, w):
    # bf16 MXU matmul, f32 accumulation.
    return jnp.dot(x.astype(jnp.bfloat16), w.astype(jnp.bfloat16),
                   preferred_element_type=jnp.float32)


# ------------------------------ fused kernel ---------------------------------
def _itransformer_kernel(
    x_ref, mem_ref, mlp_w_ref, mlp_b_ref, ln_in_g_ref, ln_in_b_ref,
    seg_sum_ref, seg_e_ref, fold_ref,
    w_qg_ref, m0_ref, m1_ref, b_kv_ref, w_out_ref, ln_ref,
    ff_w1_ref, ff_b1_ref, ff_w2_ref, ff_b2_ref,
    head_w_ref, head_b_ref,
    out_ref,
):
    # ---- mlp_in: Linear(lookback_len, dim) + LayerNorm(dim) per variate ----
    xv = x_ref[0]                                                    # (V, L)
    hv = _mm(xv, mlp_w_ref[...]) + mlp_b_ref[...]
    hv = _layernorm(hv, ln_in_g_ref[...], ln_in_b_ref[...])          # (V, D)

    # ---- prepend memory tokens (register concatenate, no scratch) ----------
    h = jnp.concatenate([mem_ref[...], hv], axis=0)                  # (C, D)

    seg_sum = seg_sum_ref[...]                                       # (64, C)
    seg_e = seg_e_ref[...]                                           # (C, 64)
    fold = fold_ref[...]                                             # (64, SR_DH)

    for d in range(DEPTH):
        ln_d = ln_ref[d]                                             # (4, D)

        # fused projection: [ per-head expanded q (256) | gates (32) ]
        proj = _mm(h, w_qg_ref[d])                                   # (C, 288)
        gates = jax.nn.silu(proj[:, Q_EXP_COLS:])                    # (C, 32)

        # k/v path: projection + raw reshape + stride-2 conv + head reshuffle
        # all folded into two pack-time matrices (rows of the result are
        # heads, columns are flattened (token, d') for k then v).
        kv = (_mm(h[:NUM_MEM_TOKENS, :], m0_ref[d])
              + _mm(h[NUM_MEM_TOKENS:, :], m1_ref[d])
              + b_kv_ref[d])                                         # (H, 128)

        og = []
        for ha in range(HEADS):
            qe_h = proj[:, ha * KV_FLAT:(ha + 1) * KV_FLAT]          # (C, 64)
            k_row = kv[ha:ha + 1, :KV_FLAT]                          # (1, 64)
            v_row = kv[ha:ha + 1, KV_FLAT:]                          # (1, 64)

            # scores via expand-multiply + constant segmented sum
            s = _mm(qe_h * k_row, seg_sum)                           # (C, C)
            s = s - jnp.max(s, axis=-1, keepdims=True)
            p = jnp.exp(s)
            p = p * pl.reciprocal(jnp.sum(p, axis=-1, keepdims=True),
                                  approx=True)

            p_exp = _mm(p, seg_e)                                    # (C, 64)
            o_h = _mm(p_exp * v_row, fold)                           # (C, SR_DH)
            og.append(o_h * gates[:, ha * SR_DH:(ha + 1) * SR_DH])

        og_all = jnp.concatenate(og, axis=1)                         # (C, 32)
        attn_out = _mm(og_all, w_out_ref[d])                         # (C, D)
        h = _layernorm(attn_out + h, ln_d[0:1], ln_d[1:2])

        # ------------------------ feed-forward (GEGLU) ----------------------
        f = _mm(h, ff_w1_ref[d]) + ff_b1_ref[d]                      # (C, 256)
        ffh = f[:, :FF_PAD] * jax.nn.gelu(f[:, FF_PAD:], approximate=True)
        ff_out = _mm(ffh, ff_w2_ref[d]) + ff_b2_ref[d]               # (C, D)
        h = _layernorm(ff_out + h, ln_d[2:3], ln_d[3:4])

    # ---- prediction head: full lane-dense tile store ------------------------
    pred = _mm(h, head_w_ref[...]) + head_b_ref[...]                 # (C, 128)
    out_ref[0] = pred


# ------------------------------ parameter packing ----------------------------
def pack_params(params):
    """One-time repack of the module parameters into the fused-kernel layout
    (batch-independent)."""
    bf16, f32 = jnp.bfloat16, jnp.float32
    pad_ff = FF_PAD - FF_INNER

    def fold_sr(w_proj, sr_w):
        # Fold the k/v projection, the raw (B,H,C,dh)->(B,C,H*dh) reshape, the
        # stride-2 Conv1d channel mixing, and the back-reshuffle into two
        # (DIM, TOKENS*SR_DH) matrices (p=0: mem-token rows, p=1: variates).
        w_r = w_proj.reshape(DIM, HEADS, SR_DH, 2)          # [m, hp, d', tap]
        outs = []
        for p in range(2):
            a_p = sr_w[:, p::2, :]                          # [na, hp, tap]
            m_p = jnp.einsum('nht,mhdt->mnd', a_p, w_r)     # (DIM, C, SR_DH)
            outs.append(m_p.reshape(DIM, KV_FLAT))
        return outs

    w_qg, m0l, m1l, b_kvl, w_outl, lnl = [], [], [], [], [], []
    ffw1, ffb1, ffw2, ffb2 = [], [], [], []
    for lp in params["layers"]:
        w_qkv = lp["w_qkv"]
        # expanded, pre-scaled q (only the SR_DH dims that matter) ------------
        wq = w_qkv[:, :DIM_INNER].reshape(DIM, HEADS, DIM_HEAD)[:, :, :SR_DH]
        wq_exp = jnp.broadcast_to(wq[:, :, None, :],
                                  (DIM, HEADS, TOKENS, SR_DH)) * ATTN_SCALE
        wq_exp = wq_exp.reshape(DIM, Q_EXP_COLS)
        wg = lp["w_gate"].reshape(DIM, HEADS, DIM_HEAD)[:, :, :SR_DH]
        wg = wg.reshape(DIM, HEADS * SR_DH)
        w_qg.append(jnp.concatenate([wq_exp, wg], axis=1))  # (DIM, 288)

        mk0, mk1 = fold_sr(w_qkv[:, DIM_INNER:2 * DIM_INNER], lp["sr_k_w"])
        mv0, mv1 = fold_sr(w_qkv[:, 2 * DIM_INNER:], lp["sr_v_w"])
        m0l.append(jnp.concatenate([mk0, mv0], axis=1))     # (DIM, 128)
        m1l.append(jnp.concatenate([mk1, mv1], axis=1))
        b_kvl.append(jnp.concatenate([jnp.repeat(lp["sr_k_b"], SR_DH),
                                      jnp.repeat(lp["sr_v_b"], SR_DH)])[None, :])

        w_outl.append(lp["w_out"].reshape(HEADS, DIM_HEAD, DIM)[:, :SR_DH, :]
                      .reshape(HEADS * SR_DH, DIM))
        lnl.append(jnp.stack([lp["post_attn_g"], lp["post_attn_b"],
                              lp["post_ff_g"], lp["post_ff_b"]]))   # (4, DIM)

        wx = jnp.pad(lp["ff_w1"][:, :FF_INNER], ((0, 0), (0, pad_ff)))
        wgg = jnp.pad(lp["ff_w1"][:, FF_INNER:], ((0, 0), (0, pad_ff)))
        ffw1.append(jnp.concatenate([wx, wgg], axis=1))              # (DIM, 256)
        bx = jnp.pad(lp["ff_b1"][:FF_INNER], (0, pad_ff))
        bg = jnp.pad(lp["ff_b1"][FF_INNER:], (0, pad_ff))
        ffb1.append(jnp.concatenate([bx, bg])[None, :])
        ffw2.append(jnp.pad(lp["ff_w2"], ((0, pad_ff), (0, 0))))     # (128, DIM)
        ffb2.append(lp["ff_b2"][None, :])

    eye_t = jnp.eye(TOKENS, dtype=f32)
    seg_sum = jnp.repeat(eye_t, SR_DH, axis=0)           # (64, 8)
    seg_e = jnp.repeat(eye_t, SR_DH, axis=1)             # (8, 64)
    fold = jnp.tile(jnp.eye(SR_DH, dtype=f32), (TOKENS, 1))  # (64, 8)

    return dict(
        mem=params["mem"].astype(f32),
        mlp_in_w=params["mlp_in_w"].astype(bf16),
        mlp_in_b=params["mlp_in_b"][None, :].astype(f32),
        ln_in_g=params["mlp_in_ln_g"][None, :].astype(f32),
        ln_in_b=params["mlp_in_ln_b"][None, :].astype(f32),
        seg_sum=seg_sum.astype(bf16),
        seg_e=seg_e.astype(bf16),
        fold=fold.astype(bf16),
        w_qg=jnp.stack(w_qg).astype(bf16),
        m0=jnp.stack(m0l).astype(bf16),
        m1=jnp.stack(m1l).astype(bf16),
        b_kv=jnp.stack(b_kvl).astype(f32),
        w_out=jnp.stack(w_outl).astype(bf16),
        ln=jnp.stack(lnl).astype(f32),
        ff_w1=jnp.stack(ffw1).astype(bf16),
        ff_b1=jnp.stack(ffb1).astype(f32),
        ff_w2=jnp.stack(ffw2).astype(bf16),
        ff_b2=jnp.stack(ffb2).astype(f32),
        head_w=jnp.pad(params["head_w"],
                       ((0, 0), (0, HEAD_PAD - PRED_LENGTH))).astype(bf16),
        head_b=jnp.pad(params["head_b"],
                       (0, HEAD_PAD - PRED_LENGTH))[None, :].astype(f32),
    )


# ------------------------------ forward wrapper -------------------------------
def itransformer_forward(packed, x):
    """x: (B, LOOKBACK_LEN, NUM_VARIATES) -> {PRED_LENGTH: (B, PRED_LENGTH, NUM_VARIATES)}"""
    B, L, V = x.shape
    assert L == LOOKBACK_LEN and V == NUM_VARIATES
    x3 = jnp.transpose(x, (0, 2, 1))                     # 'b n v -> b v n'

    const_args = (
        packed["mem"], packed["mlp_in_w"], packed["mlp_in_b"],
        packed["ln_in_g"], packed["ln_in_b"],
        packed["seg_sum"], packed["seg_e"], packed["fold"],
        packed["w_qg"], packed["m0"], packed["m1"], packed["b_kv"],
        packed["w_out"], packed["ln"],
        packed["ff_w1"], packed["ff_b1"], packed["ff_w2"], packed["ff_b2"],
        packed["head_w"], packed["head_b"],
    )

    def const_spec(a):
        zeros = (0,) * a.ndim
        return pl.BlockSpec(a.shape, lambda b, _z=zeros: _z)

    in_specs = [pl.BlockSpec((1, V, L), lambda b: (b, 0, 0))]
    in_specs += [const_spec(a) for a in const_args]

    out = pl.pallas_call(
        _itransformer_kernel,
        out_shape=jax.ShapeDtypeStruct((B, TOKENS, HEAD_PAD), jnp.float32),
        grid=(B,),
        in_specs=in_specs,
        out_specs=pl.BlockSpec((1, TOKENS, HEAD_PAD), lambda b: (b, 0, 0)),
        compiler_params=pltpu.CompilerParams(dimension_semantics=("parallel",)),
    )(x3, *const_args)

    pred = out[:, NUM_MEM_TOKENS:, :PRED_LENGTH]          # drop mem tokens + pad
    pred = jnp.transpose(pred, (0, 2, 1))                 # (B, pred_len, V)
    return {PRED_LENGTH: pred}


# ------------------------------ parameter init --------------------------------
def init_params(key):
    def nrm(k, shape, s=0.02):
        return s * jax.random.normal(k, shape, jnp.float32)

    ks = jax.random.split(key, 4 + DEPTH)
    p = {
        "mem": jax.random.normal(ks[0], (NUM_MEM_TOKENS, DIM), jnp.float32),
        "mlp_in_w": nrm(ks[1], (LOOKBACK_LEN, DIM)),
        "mlp_in_b": jnp.zeros((DIM,), jnp.float32),
        "mlp_in_ln_g": jnp.ones((DIM,), jnp.float32),
        "mlp_in_ln_b": jnp.zeros((DIM,), jnp.float32),
        "head_w": nrm(ks[2], (DIM, PRED_LENGTH)),
        "head_b": jnp.zeros((PRED_LENGTH,), jnp.float32),
        "layers": [],
    }
    C = TOKENS
    for d in range(DEPTH):
        lk = jax.random.split(ks[4 + d], 7)
        p["layers"].append(dict(
            w_qkv=nrm(lk[0], (DIM, 3 * DIM_INNER)),
            w_gate=nrm(lk[1], (DIM, DIM_INNER)),
            w_out=nrm(lk[2], (DIM_INNER, DIM)),
            sr_k_w=nrm(lk[3], (C, C, 2)),
            sr_k_b=jnp.zeros((C,), jnp.float32),
            sr_v_w=nrm(lk[4], (C, C, 2)),
            sr_v_b=jnp.zeros((C,), jnp.float32),
            post_attn_g=jnp.ones((DIM,), jnp.float32),
            post_attn_b=jnp.zeros((DIM,), jnp.float32),
            ff_w1=nrm(lk[5], (DIM, 2 * FF_INNER)),
            ff_b1=jnp.zeros((2 * FF_INNER,), jnp.float32),
            ff_w2=nrm(lk[6], (FF_INNER, DIM)),
            ff_b2=jnp.zeros((DIM,), jnp.float32),
            post_ff_g=jnp.ones((DIM,), jnp.float32),
            post_ff_b=jnp.zeros((DIM,), jnp.float32),
        ))
    return p


# ------------------------------------ main ------------------------------------
if __name__ == "__main__":
    key = jax.random.PRNGKey(0)
    k_param, k_x = jax.random.split(key)
    params = init_params(k_param)
    packed = pack_params(params)

    BATCH = 2
    x = jax.random.normal(k_x, (BATCH, LOOKBACK_LEN, NUM_VARIATES), jnp.float32)

    fwd = jax.jit(itransformer_forward)
    out = jax.block_until_ready(fwd(packed, x))

    pred = out[PRED_LENGTH]
    assert pred.shape == (BATCH, PRED_LENGTH, NUM_VARIATES)
    assert bool(jnp.all(jnp.isfinite(pred)))
    print("KERNEL_OK")
</pallas_src>

<mosaic_0001>
module attributes {stable_mosaic.version = 11 : i64} {
  func.func @_itransformer_kernel(%arg0: i32, %arg1: memref<1x4x8xf32, #tpu.memory_space<vmem>>, %arg2: memref<4x32xf32, #tpu.memory_space<vmem>>, %arg3: memref<8x32xbf16, #tpu.memory_space<vmem>>, %arg4: memref<1x32xf32, #tpu.memory_space<vmem>>, %arg5: memref<1x32xf32, #tpu.memory_space<vmem>>, %arg6: memref<1x32xf32, #tpu.memory_space<vmem>>, %arg7: memref<64x8xbf16, #tpu.memory_space<vmem>>, %arg8: memref<8x64xbf16, #tpu.memory_space<vmem>>, %arg9: memref<64x8xbf16, #tpu.memory_space<vmem>>, %arg10: memref<2x32x288xbf16, #tpu.memory_space<vmem>>, %arg11: memref<2x32x128xbf16, #tpu.memory_space<vmem>>, %arg12: memref<2x32x128xbf16, #tpu.memory_space<vmem>>, %arg13: memref<2x1x128xf32, #tpu.memory_space<vmem>>, %arg14: memref<2x32x32xbf16, #tpu.memory_space<vmem>>, %arg15: memref<2x4x32xf32, #tpu.memory_space<vmem>>, %arg16: memref<2x32x256xbf16, #tpu.memory_space<vmem>>, %arg17: memref<2x1x256xf32, #tpu.memory_space<vmem>>, %arg18: memref<2x128x32xbf16, #tpu.memory_space<vmem>>, %arg19: memref<2x1x32xf32, #tpu.memory_space<vmem>>, %arg20: memref<32x128xbf16, #tpu.memory_space<vmem>>, %arg21: memref<1x128xf32, #tpu.memory_space<vmem>>, %arg22: memref<1x8x128xf32, #tpu.memory_space<vmem>>) attributes {dimension_semantics = [#tpu.dimension_semantics<parallel>], iteration_bounds = array<i64: 2>, scalar_prefetch = 0 : i64, scratch_operands = 0 : i64, tpu.core_type = #tpu.core_type<tc>, window_params = [{transform_indices = @transform_0, window_bounds = array<i64: 1, 4, 8>}, {pipeline_mode = #tpu.pipeline_mode<synchronous>, transform_indices = @transform_1, window_bounds = array<i64: 4, 32>}, {pipeline_mode = #tpu.pipeline_mode<synchronous>, transform_indices = @transform_2, window_bounds = array<i64: 8, 32>}, {pipeline_mode = #tpu.pipeline_mode<synchronous>, transform_indices = @transform_3, window_bounds = array<i64: 1, 32>}, {pipeline_mode = #tpu.pipeline_mode<synchronous>, transform_indices = @transform_4, window_bounds = array<i64: 1, 32>}, {pipeline_mode = #tpu.pipeline_mode<synchronous>, transform_indices = @transform_5, window_bounds = array<i64: 1, 32>}, {pipeline_mode = #tpu.pipeline_mode<synchronous>, transform_indices = @transform_6, window_bounds = array<i64: 64, 8>}, {pipeline_mode = #tpu.pipeline_mode<synchronous>, transform_indices = @transform_7, window_bounds = array<i64: 8, 64>}, {pipeline_mode = #tpu.pipeline_mode<synchronous>, transform_indices = @transform_8, window_bounds = array<i64: 64, 8>}, {pipeline_mode = #tpu.pipeline_mode<synchronous>, transform_indices = @transform_9, window_bounds = array<i64: 2, 32, 288>}, {pipeline_mode = #tpu.pipeline_mode<synchronous>, transform_indices = @transform_10, window_bounds = array<i64: 2, 32, 128>}, {pipeline_mode = #tpu.pipeline_mode<synchronous>, transform_indices = @transform_11, window_bounds = array<i64: 2, 32, 128>}, {pipeline_mode = #tpu.pipeline_mode<synchronous>, transform_indices = @transform_12, window_bounds = array<i64: 2, 1, 128>}, {pipeline_mode = #tpu.pipeline_mode<synchronous>, transform_indices = @transform_13, window_bounds = array<i64: 2, 32, 32>}, {pipeline_mode = #tpu.pipeline_mode<synchronous>, transform_indices = @transform_14, window_bounds = array<i64: 2, 4, 32>}, {pipeline_mode = #tpu.pipeline_mode<synchronous>, transform_indices = @transform_15, window_bounds = array<i64: 2, 32, 256>}, {pipeline_mode = #tpu.pipeline_mode<synchronous>, transform_indices = @transform_16, window_bounds = array<i64: 2, 1, 256>}, {pipeline_mode = #tpu.pipeline_mode<synchronous>, transform_indices = @transform_17, window_bounds = array<i64: 2, 128, 32>}, {pipeline_mode = #tpu.pipeline_mode<synchronous>, transform_indices = @transform_18, window_bounds = array<i64: 2, 1, 32>}, {pipeline_mode = #tpu.pipeline_mode<synchronous>, transform_indices = @transform_19, window_bounds = array<i64: 32, 128>}, {pipeline_mode = #tpu.pipeline_mode<synchronous>, transform_indices = @transform_20, window_bounds = array<i64: 1, 128>}, {transform_indices = @transform_21, window_bounds = array<i64: 1, 8, 128>}]} {
    %c0 = arith.constant 0 : index
    %c0_0 = arith.constant 0 : index
    %c0_1 = arith.constant 0 : index
    %0 = vector.load %arg1[%c0, %c0_0, %c0_1] : memref<1x4x8xf32, #tpu.memory_space<vmem>>, vector<1x4x8xf32>
    %1 = vector.shape_cast %0 : vector<1x4x8xf32> to vector<4x8xf32>
    %c0_2 = arith.constant 0 : index
    %c0_3 = arith.constant 0 : index
    %2 = vector.load %arg3[%c0_2, %c0_3] : memref<8x32xbf16, #tpu.memory_space<vmem>>, vector<8x32xbf16>
    %3 = arith.truncf %1 : vector<4x8xf32> to vector<4x8xbf16>
    %cst = arith.constant dense<0.000000e+00> : vector<4x32xf32>
    %4 = tpu.matmul %3, %2, %cst {dimension_numbers = #tpu.dot_dimension_numbers<[1], [0], [0], [1], [0, 0, 1, 1], [], []>} : vector<4x8xbf16>, vector<8x32xbf16>, vector<4x32xf32> -> vector<4x32xf32>
    %c0_4 = arith.constant 0 : index
    %c0_5 = arith.constant 0 : index
    %5 = vector.load %arg4[%c0_4, %c0_5] : memref<1x32xf32, #tpu.memory_space<vmem>>, vector<1x32xf32>
    %6 = vector.broadcast %5 : vector<1x32xf32> to vector<4x32xf32>
    %7 = arith.addf %4, %6 : vector<4x32xf32>
    %c0_6 = arith.constant 0 : index
    %c0_7 = arith.constant 0 : index
    %8 = vector.load %arg5[%c0_6, %c0_7] : memref<1x32xf32, #tpu.memory_space<vmem>>, vector<1x32xf32>
    %c0_8 = arith.constant 0 : index
    %c0_9 = arith.constant 0 : index
    %9 = vector.load %arg6[%c0_8, %c0_9] : memref<1x32xf32, #tpu.memory_space<vmem>>, vector<1x32xf32>
    %cst_10 = arith.constant dense<0.000000e+00> : vector<4xf32>
    %10 = vector.multi_reduction <add>, %7, %cst_10 [1] : vector<4x32xf32> to vector<4xf32>
    %11 = vector.shape_cast %10 : vector<4xf32> to vector<4x1xf32>
    %cst_11 = arith.constant 3.200000e+01 : f32
    %12 = vector.broadcast %cst_11 : f32 to vector<4x1xf32>
    %13 = arith.divf %11, %12 : vector<4x1xf32>
    %14 = vector.broadcast %13 : vector<4x1xf32> to vector<4x32xf32>
    %15 = arith.subf %7, %14 : vector<4x32xf32>
    %16 = arith.mulf %15, %15 : vector<4x32xf32>
    %cst_12 = arith.constant dense<0.000000e+00> : vector<4xf32>
    %17 = vector.multi_reduction <add>, %16, %cst_12 [1] : vector<4x32xf32> to vector<4xf32>
    %18 = vector.shape_cast %17 : vector<4xf32> to vector<4x1xf32>
    %cst_13 = arith.constant 3.200000e+01 : f32
    %19 = vector.broadcast %cst_13 : f32 to vector<4x1xf32>
    %20 = arith.divf %18, %19 : vector<4x1xf32>
    %21 = vector.broadcast %13 : vector<4x1xf32> to vector<4x32xf32>
    %22 = arith.subf %7, %21 : vector<4x32xf32>
    %cst_14 = arith.constant 9.99999974E-6 : f32
    %23 = vector.broadcast %cst_14 : f32 to vector<4x1xf32>
    %24 = arith.addf %20, %23 : vector<4x1xf32>
    %25 = math.rsqrt %24 : vector<4x1xf32>
    %26 = vector.broadcast %25 : vector<4x1xf32> to vector<4x32xf32>
    %27 = arith.mulf %22, %26 : vector<4x32xf32>
    %28 = vector.broadcast %8 : vector<1x32xf32> to vector<4x32xf32>
    %29 = arith.mulf %27, %28 : vector<4x32xf32>
    %30 = vector.broadcast %9 : vector<1x32xf32> to vector<4x32xf32>
    %31 = arith.addf %29, %30 : vector<4x32xf32>
    %c0_15 = arith.constant 0 : index
    %c0_16 = arith.constant 0 : index
    %32 = vector.load %arg2[%c0_15, %c0_16] : memref<4x32xf32, #tpu.memory_space<vmem>>, vector<4x32xf32>
    %33 = tpu.concatenate %32, %31 in 0 : vector<4x32xf32>, vector<4x32xf32> -> vector<8x32xf32>
    %c0_17 = arith.constant 0 : index
    %c0_18 = arith.constant 0 : index
    %34 = vector.load %arg7[%c0_17, %c0_18] : memref<64x8xbf16, #tpu.memory_space<vmem>>, vector<64x8xbf16>
    %c0_19 = arith.constant 0 : index
    %c0_20 = arith.constant 0 : index
    %35 = vector.load %arg8[%c0_19, %c0_20] : memref<8x64xbf16, #tpu.memory_space<vmem>>, vector<8x64xbf16>
    %c0_21 = arith.constant 0 : index
    %c0_22 = arith.constant 0 : index
    %36 = vector.load %arg9[%c0_21, %c0_22] : memref<64x8xbf16, #tpu.memory_space<vmem>>, vector<64x8xbf16>
    %c0_23 = arith.constant 0 : index
    %c0_24 = arith.constant 0 : index
    %c0_25 = arith.constant 0 : index
    %37 = vector.load %arg15[%c0_23, %c0_24, %c0_25] : memref<2x4x32xf32, #tpu.memory_space<vmem>>, vector<1x4x32xf32>
    %38 = vector.shape_cast %37 : vector<1x4x32xf32> to vector<4x32xf32>
    %c0_26 = arith.constant 0 : index
    %c0_27 = arith.constant 0 : index
    %c0_28 = arith.constant 0 : index
    %39 = vector.load %arg10[%c0_26, %c0_27, %c0_28] : memref<2x32x288xbf16, #tpu.memory_space<vmem>>, vector<1x32x288xbf16>
    %40 = vector.shape_cast %39 : vector<1x32x288xbf16> to vector<32x288xbf16>
    %41 = arith.truncf %33 : vector<8x32xf32> to vector<8x32xbf16>
    %cst_29 = arith.constant dense<0.000000e+00> : vector<8x288xf32>
    %42 = tpu.matmul %41, %40, %cst_29 {dimension_numbers = #tpu.dot_dimension_numbers<[1], [0], [0], [1], [0, 0, 1, 1], [], []>} : vector<8x32xbf16>, vector<32x288xbf16>, vector<8x288xf32> -> vector<8x288xf32>
    %43 = vector.extract_strided_slice %42 {offsets = [0, 256], sizes = [8, 32], strides = [1, 1]} : vector<8x288xf32> to vector<8x32xf32>
    %44 = arith.negf %43 : vector<8x32xf32>
    %45 = math.exp %44 : vector<8x32xf32>
    %cst_30 = arith.constant 1.000000e+00 : f32
    %46 = vector.broadcast %cst_30 : f32 to vector<8x32xf32>
    %47 = arith.addf %46, %45 : vector<8x32xf32>
    %48 = arith.divf %46, %47 : vector<8x32xf32>
    %49 = arith.mulf %43, %48 : vector<8x32xf32>
    %50 = vector.extract_strided_slice %33 {offsets = [0, 0], sizes = [4, 32], strides = [1, 1]} : vector<8x32xf32> to vector<4x32xf32>
    %c0_31 = arith.constant 0 : index
    %c0_32 = arith.constant 0 : index
    %c0_33 = arith.constant 0 : index
    %51 = vector.load %arg11[%c0_31, %c0_32, %c0_33] : memref<2x32x128xbf16, #tpu.memory_space<vmem>>, vector<1x32x128xbf16>
    %52 = vector.shape_cast %51 : vector<1x32x128xbf16> to vector<32x128xbf16>
    %53 = arith.truncf %50 : vector<4x32xf32> to vector<4x32xbf16>
    %cst_34 = arith.constant dense<0.000000e+00> : vector<4x128xf32>
    %54 = tpu.matmul %53, %52, %cst_34 {dimension_numbers = #tpu.dot_dimension_numbers<[1], [0], [0], [1], [0, 0, 1, 1], [], []>} : vector<4x32xbf16>, vector<32x128xbf16>, vector<4x128xf32> -> vector<4x128xf32>
    %55 = vector.extract_strided_slice %33 {offsets = [4, 0], sizes = [4, 32], strides = [1, 1]} : vector<8x32xf32> to vector<4x32xf32>
    %c0_35 = arith.constant 0 : index
    %c0_36 = arith.constant 0 : index
    %c0_37 = arith.constant 0 : index
    %56 = vector.load %arg12[%c0_35, %c0_36, %c0_37] : memref<2x32x128xbf16, #tpu.memory_space<vmem>>, vector<1x32x128xbf16>
    %57 = vector.shape_cast %56 : vector<1x32x128xbf16> to vector<32x128xbf16>
    %58 = arith.truncf %55 : vector<4x32xf32> to vector<4x32xbf16>
    %cst_38 = arith.constant dense<0.000000e+00> : vector<4x128xf32>
    %59 = tpu.matmul %58, %57, %cst_38 {dimension_numbers = #tpu.dot_dimension_numbers<[1], [0], [0], [1], [0, 0, 1, 1], [], []>} : vector<4x32xbf16>, vector<32x128xbf16>, vector<4x128xf32> -> vector<4x128xf32>
    %60 = arith.addf %54, %59 : vector<4x128xf32>
    %c0_39 = arith.constant 0 : index
    %c0_40 = arith.constant 0 : index
    %c0_41 = arith.constant 0 : index
    %61 = vector.load %arg13[%c0_39, %c0_40, %c0_41] : memref<2x1x128xf32, #tpu.memory_space<vmem>>, vector<1x1x128xf32>
    %62 = vector.shape_cast %61 : vector<1x1x128xf32> to vector<1x128xf32>
    %63 = vector.broadcast %62 : vector<1x128xf32> to vector<4x128xf32>
    %64 = arith.addf %60, %63 : vector<4x128xf32>
    %65 = vector.extract_strided_slice %42 {offsets = [0, 0], sizes = [8, 64], strides = [1, 1]} : vector<8x288xf32> to vector<8x64xf32>
    %66 = vector.extract_strided_slice %64 {offsets = [0, 0], sizes = [1, 64], strides = [1, 1]} : vector<4x128xf32> to vector<1x64xf32>
    %67 = vector.extract_strided_slice %64 {offsets = [0, 64], sizes = [1, 64], strides = [1, 1]} : vector<4x128xf32> to vector<1x64xf32>
    %68 = vector.broadcast %66 : vector<1x64xf32> to vector<8x64xf32>
    %69 = arith.mulf %65, %68 : vector<8x64xf32>
    %70 = arith.truncf %69 : vector<8x64xf32> to vector<8x64xbf16>
    %cst_42 = arith.constant dense<0.000000e+00> : vector<8x8xf32>
    %71 = tpu.matmul %70, %34, %cst_42 {dimension_numbers = #tpu.dot_dimension_numbers<[1], [0], [0], [1], [0, 0, 1, 1], [], []>} : vector<8x64xbf16>, vector<64x8xbf16>, vector<8x8xf32> -> vector<8x8xf32>
    %cst_43 = arith.constant dense<0xFF800000> : vector<8xf32>
    %72 = vector.multi_reduction <maximumf>, %71, %cst_43 [1] : vector<8x8xf32> to vector<8xf32>
    %73 = vector.shape_cast %72 : vector<8xf32> to vector<8x1xf32>
    %74 = vector.broadcast %73 : vector<8x1xf32> to vector<8x8xf32>
    %75 = arith.subf %71, %74 : vector<8x8xf32>
    %76 = math.exp %75 : vector<8x8xf32>
    %cst_44 = arith.constant dense<0.000000e+00> : vector<8xf32>
    %77 = vector.multi_reduction <add>, %76, %cst_44 [1] : vector<8x8xf32> to vector<8xf32>
    %78 = vector.shape_cast %77 : vector<8xf32> to vector<8x1xf32>
    %79 = tpu.reciprocal %78 {approx = true} : vector<8x1xf32> -> vector<8x1xf32>
    %80 = vector.broadcast %79 : vector<8x1xf32> to vector<8x8xf32>
    %81 = arith.mulf %76, %80 : vector<8x8xf32>
    %82 = arith.truncf %81 : vector<8x8xf32> to vector<8x8xbf16>
    %cst_45 = arith.constant dense<0.000000e+00> : vector<8x64xf32>
    %83 = tpu.matmul %82, %35, %cst_45 {dimension_numbers = #tpu.dot_dimension_numbers<[1], [0], [0], [1], [0, 0, 1, 1], [], []>} : vector<8x8xbf16>, vector<8x64xbf16>, vector<8x64xf32> -> vector<8x64xf32>
    %84 = vector.broadcast %67 : vector<1x64xf32> to vector<8x64xf32>
    %85 = arith.mulf %83, %84 : vector<8x64xf32>
    %86 = arith.truncf %85 : vector<8x64xf32> to vector<8x64xbf16>
    %cst_46 = arith.constant dense<0.000000e+00> : vector<8x8xf32>
    %87 = tpu.matmul %86, %36, %cst_46 {dimension_numbers = #tpu.dot_dimension_numbers<[1], [0], [0], [1], [0, 0, 1, 1], [], []>} : vector<8x64xbf16>, vector<64x8xbf16>, vector<8x8xf32> -> vector<8x8xf32>
    %88 = vector.extract_strided_slice %49 {offsets = [0, 0], sizes = [8, 8], strides = [1, 1]} : vector<8x32xf32> to vector<8x8xf32>
    %89 = arith.mulf %87, %88 : vector<8x8xf32>
    %90 = vector.extract_strided_slice %42 {offsets = [0, 64], sizes = [8, 64], strides = [1, 1]} : vector<8x288xf32> to vector<8x64xf32>
    %91 = vector.extract_strided_slice %64 {offsets = [1, 0], sizes = [1, 64], strides = [1, 1]} : vector<4x128xf32> to vector<1x64xf32>
    %92 = vector.extract_strided_slice %64 {offsets = [1, 64], sizes = [1, 64], strides = [1, 1]} : vector<4x128xf32> to vector<1x64xf32>
    %93 = vector.broadcast %91 : vector<1x64xf32> to vector<8x64xf32>
    %94 = arith.mulf %90, %93 : vector<8x64xf32>
    %95 = arith.truncf %94 : vector<8x64xf32> to vector<8x64xbf16>
    %cst_47 = arith.constant dense<0.000000e+00> : vector<8x8xf32>
    %96 = tpu.matmul %95, %34, %cst_47 {dimension_numbers = #tpu.dot_dimension_numbers<[1], [0], [0], [1], [0, 0, 1, 1], [], []>} : vector<8x64xbf16>, vector<64x8xbf16>, vector<8x8xf32> -> vector<8x8xf32>
    %cst_48 = arith.constant dense<0xFF800000> : vector<8xf32>
    %97 = vector.multi_reduction <maximumf>, %96, %cst_48 [1] : vector<8x8xf32> to vector<8xf32>
    %98 = vector.shape_cast %97 : vector<8xf32> to vector<8x1xf32>
    %99 = vector.broadcast %98 : vector<8x1xf32> to vector<8x8xf32>
    %100 = arith.subf %96, %99 : vector<8x8xf32>
    %101 = math.exp %100 : vector<8x8xf32>
    %cst_49 = arith.constant dense<0.000000e+00> : vector<8xf32>
    %102 = vector.multi_reduction <add>, %101, %cst_49 [1] : vector<8x8xf32> to vector<8xf32>
    %103 = vector.shape_cast %102 : vector<8xf32> to vector<8x1xf32>
    %104 = tpu.reciprocal %103 {approx = true} : vector<8x1xf32> -> vector<8x1xf32>
    %105 = vector.broadcast %104 : vector<8x1xf32> to vector<8x8xf32>
    %106 = arith.mulf %101, %105 : vector<8x8xf32>
    %107 = arith.truncf %106 : vector<8x8xf32> to vector<8x8xbf16>
    %cst_50 = arith.constant dense<0.000000e+00> : vector<8x64xf32>
    %108 = tpu.matmul %107, %35, %cst_50 {dimension_numbers = #tpu.dot_dimension_numbers<[1], [0], [0], [1], [0, 0, 1, 1], [], []>} : vector<8x8xbf16>, vector<8x64xbf16>, vector<8x64xf32> -> vector<8x64xf32>
    %109 = vector.broadcast %92 : vector<1x64xf32> to vector<8x64xf32>
    %110 = arith.mulf %108, %109 : vector<8x64xf32>
    %111 = arith.truncf %110 : vector<8x64xf32> to vector<8x64xbf16>
    %cst_51 = arith.constant dense<0.000000e+00> : vector<8x8xf32>
    %112 = tpu.matmul %111, %36, %cst_51 {dimension_numbers = #tpu.dot_dimension_numbers<[1], [0], [0], [1], [0, 0, 1, 1], [], []>} : vector<8x64xbf16>, vector<64x8xbf16>, vector<8x8xf32> -> vector<8x8xf32>
    %113 = vector.extract_strided_slice %49 {offsets = [0, 8], sizes = [8, 8], strides = [1, 1]} : vector<8x32xf32> to vector<8x8xf32>
    %114 = arith.mulf %112, %113 : vector<8x8xf32>
    %115 = vector.extract_strided_slice %42 {offsets = [0, 128], sizes = [8, 64], strides = [1, 1]} : vector<8x288xf32> to vector<8x64xf32>
    %116 = vector.extract_strided_slice %64 {offsets = [2, 0], sizes = [1, 64], strides = [1, 1]} : vector<4x128xf32> to vector<1x64xf32>
    %117 = vector.extract_strided_slice %64 {offsets = [2, 64], sizes = [1, 64], strides = [1, 1]} : vector<4x128xf32> to vector<1x64xf32>
    %118 = vector.broadcast %116 : vector<1x64xf32> to vector<8x64xf32>
    %119 = arith.mulf %115, %118 : vector<8x64xf32>
    %120 = arith.truncf %119 : vector<8x64xf32> to vector<8x64xbf16>
    %cst_52 = arith.constant dense<0.000000e+00> : vector<8x8xf32>
    %121 = tpu.matmul %120, %34, %cst_52 {dimension_numbers = #tpu.dot_dimension_numbers<[1], [0], [0], [1], [0, 0, 1, 1], [], []>} : vector<8x64xbf16>, vector<64x8xbf16>, vector<8x8xf32> -> vector<8x8xf32>
    %cst_53 = arith.constant dense<0xFF800000> : vector<8xf32>
    %122 = vector.multi_reduction <maximumf>, %121, %cst_53 [1] : vector<8x8xf32> to vector<8xf32>
    %123 = vector.shape_cast %122 : vector<8xf32> to vector<8x1xf32>
    %124 = vector.broadcast %123 : vector<8x1xf32> to vector<8x8xf32>
    %125 = arith.subf %121, %124 : vector<8x8xf32>
    %126 = math.exp %125 : vector<8x8xf32>
    %cst_54 = arith.constant dense<0.000000e+00> : vector<8xf32>
    %127 = vector.multi_reduction <add>, %126, %cst_54 [1] : vector<8x8xf32> to vector<8xf32>
    %128 = vector.shape_cast %127 : vector<8xf32> to vector<8x1xf32>
    %129 = tpu.reciprocal %128 {approx = true} : vector<8x1xf32> -> vector<8x1xf32>
    %130 = vector.broadcast %129 : vector<8x1xf32> to vector<8x8xf32>
    %131 = arith.mulf %126, %130 : vector<8x8xf32>
    %132 = arith.truncf %131 : vector<8x8xf32> to vector<8x8xbf16>
    %cst_55 = arith.constant dense<0.000000e+00> : vector<8x64xf32>
    %133 = tpu.matmul %132, %35, %cst_55 {dimension_numbers = #tpu.dot_dimension_numbers<[1], [0], [0], [1], [0, 0, 1, 1], [], []>} : vector<8x8xbf16>, vector<8x64xbf16>, vector<8x64xf32> -> vector<8x64xf32>
    %134 = vector.broadcast %117 : vector<1x64xf32> to vector<8x64xf32>
    %135 = arith.mulf %133, %134 : vector<8x64xf32>
    %136 = arith.truncf %135 : vector<8x64xf32> to vector<8x64xbf16>
    %cst_56 = arith.constant dense<0.000000e+00> : vector<8x8xf32>
    %137 = tpu.matmul %136, %36, %cst_56 {dimension_numbers = #tpu.dot_dimension_numbers<[1], [0], [0], [1], [0, 0, 1, 1], [], []>} : vector<8x64xbf16>, vector<64x8xbf16>, vector<8x8xf32> -> vector<8x8xf32>
    %138 = vector.extract_strided_slice %49 {offsets = [0, 16], sizes = [8, 8], strides = [1, 1]} : vector<8x32xf32> to vector<8x8xf32>
    %139 = arith.mulf %137, %138 : vector<8x8xf32>
    %140 = vector.extract_strided_slice %42 {offsets = [0, 192], sizes = [8, 64], strides = [1, 1]} : vector<8x288xf32> to vector<8x64xf32>
    %141 = vector.extract_strided_slice %64 {offsets = [3, 0], sizes = [1, 64], strides = [1, 1]} : vector<4x128xf32> to vector<1x64xf32>
    %142 = vector.extract_strided_slice %64 {offsets = [3, 64], sizes = [1, 64], strides = [1, 1]} : vector<4x128xf32> to vector<1x64xf32>
    %143 = vector.broadcast %141 : vector<1x64xf32> to vector<8x64xf32>
    %144 = arith.mulf %140, %143 : vector<8x64xf32>
    %145 = arith.truncf %144 : vector<8x64xf32> to vector<8x64xbf16>
    %cst_57 = arith.constant dense<0.000000e+00> : vector<8x8xf32>
    %146 = tpu.matmul %145, %34, %cst_57 {dimension_numbers = #tpu.dot_dimension_numbers<[1], [0], [0], [1], [0, 0, 1, 1], [], []>} : vector<8x64xbf16>, vector<64x8xbf16>, vector<8x8xf32> -> vector<8x8xf32>
    %cst_58 = arith.constant dense<0xFF800000> : vector<8xf32>
    %147 = vector.multi_reduction <maximumf>, %146, %cst_58 [1] : vector<8x8xf32> to vector<8xf32>
    %148 = vector.shape_cast %147 : vector<8xf32> to vector<8x1xf32>
    %149 = vector.broadcast %148 : vector<8x1xf32> to vector<8x8xf32>
    %150 = arith.subf %146, %149 : vector<8x8xf32>
    %151 = math.exp %150 : vector<8x8xf32>
    %cst_59 = arith.constant dense<0.000000e+00> : vector<8xf32>
    %152 = vector.multi_reduction <add>, %151, %cst_59 [1] : vector<8x8xf32> to vector<8xf32>
    %153 = vector.shape_cast %152 : vector<8xf32> to vector<8x1xf32>
    %154 = tpu.reciprocal %153 {approx = true} : vector<8x1xf32> -> vector<8x1xf32>
    %155 = vector.broadcast %154 : vector<8x1xf32> to vector<8x8xf32>
    %156 = arith.mulf %151, %155 : vector<8x8xf32>
    %157 = arith.truncf %156 : vector<8x8xf32> to vector<8x8xbf16>
    %cst_60 = arith.constant dense<0.000000e+00> : vector<8x64xf32>
    %158 = tpu.matmul %157, %35, %cst_60 {dimension_numbers = #tpu.dot_dimension_numbers<[1], [0], [0], [1], [0, 0, 1, 1], [], []>} : vector<8x8xbf16>, vector<8x64xbf16>, vector<8x64xf32> -> vector<8x64xf32>
    %159 = vector.broadcast %142 : vector<1x64xf32> to vector<8x64xf32>
    %160 = arith.mulf %158, %159 : vector<8x64xf32>
    %161 = arith.truncf %160 : vector<8x64xf32> to vector<8x64xbf16>
    %cst_61 = arith.constant dense<0.000000e+00> : vector<8x8xf32>
    %162 = tpu.matmul %161, %36, %cst_61 {dimension_numbers = #tpu.dot_dimension_numbers<[1], [0], [0], [1], [0, 0, 1, 1], [], []>} : vector<8x64xbf16>, vector<64x8xbf16>, vector<8x8xf32> -> vector<8x8xf32>
    %163 = vector.extract_strided_slice %49 {offsets = [0, 24], sizes = [8, 8], strides = [1, 1]} : vector<8x32xf32> to vector<8x8xf32>
    %164 = arith.mulf %162, %163 : vector<8x8xf32>
    %165 = tpu.concatenate %89, %114, %139, %164 in 1 : vector<8x8xf32>, vector<8x8xf32>, vector<8x8xf32>, vector<8x8xf32> -> vector<8x32xf32>
    %c0_62 = arith.constant 0 : index
    %c0_63 = arith.constant 0 : index
    %c0_64 = arith.constant 0 : index
    %166 = vector.load %arg14[%c0_62, %c0_63, %c0_64] : memref<2x32x32xbf16, #tpu.memory_space<vmem>>, vector<1x32x32xbf16>
    %167 = vector.shape_cast %166 : vector<1x32x32xbf16> to vector<32x32xbf16>
    %168 = arith.truncf %165 : vector<8x32xf32> to vector<8x32xbf16>
    %cst_65 = arith.constant dense<0.000000e+00> : vector<8x32xf32>
    %169 = tpu.matmul %168, %167, %cst_65 {dimension_numbers = #tpu.dot_dimension_numbers<[1], [0], [0], [1], [0, 0, 1, 1], [], []>} : vector<8x32xbf16>, vector<32x32xbf16>, vector<8x32xf32> -> vector<8x32xf32>
    %170 = arith.addf %169, %33 : vector<8x32xf32>
    %171 = vector.extract_strided_slice %38 {offsets = [0, 0], sizes = [1, 32], strides = [1, 1]} : vector<4x32xf32> to vector<1x32xf32>
    %172 = vector.extract_strided_slice %38 {offsets = [1, 0], sizes = [1, 32], strides = [1, 1]} : vector<4x32xf32> to vector<1x32xf32>
    %cst_66 = arith.constant dense<0.000000e+00> : vector<8xf32>
    %173 = vector.multi_reduction <add>, %170, %cst_66 [1] : vector<8x32xf32> to vector<8xf32>
    %174 = vector.shape_cast %173 : vector<8xf32> to vector<8x1xf32>
    %cst_67 = arith.constant 3.200000e+01 : f32
    %175 = vector.broadcast %cst_67 : f32 to vector<8x1xf32>
    %176 = arith.divf %174, %175 : vector<8x1xf32>
    %177 = vector.broadcast %176 : vector<8x1xf32> to vector<8x32xf32>
    %178 = arith.subf %170, %177 : vector<8x32xf32>
    %179 = arith.mulf %178, %178 : vector<8x32xf32>
    %cst_68 = arith.constant dense<0.000000e+00> : vector<8xf32>
    %180 = vector.multi_reduction <add>, %179, %cst_68 [1] : vector<8x32xf32> to vector<8xf32>
    %181 = vector.shape_cast %180 : vector<8xf32> to vector<8x1xf32>
    %cst_69 = arith.constant 3.200000e+01 : f32
    %182 = vector.broadcast %cst_69 : f32 to vector<8x1xf32>
    %183 = arith.divf %181, %182 : vector<8x1xf32>
    %184 = vector.broadcast %176 : vector<8x1xf32> to vector<8x32xf32>
    %185 = arith.subf %170, %184 : vector<8x32xf32>
    %cst_70 = arith.constant 9.99999974E-6 : f32
    %186 = vector.broadcast %cst_70 : f32 to vector<8x1xf32>
    %187 = arith.addf %183, %186 : vector<8x1xf32>
    %188 = math.rsqrt %187 : vector<8x1xf32>
    %189 = vector.broadcast %188 : vector<8x1xf32> to vector<8x32xf32>
    %190 = arith.mulf %185, %189 : vector<8x32xf32>
    %191 = vector.broadcast %171 : vector<1x32xf32> to vector<8x32xf32>
    %192 = arith.mulf %190, %191 : vector<8x32xf32>
    %193 = vector.broadcast %172 : vector<1x32xf32> to vector<8x32xf32>
    %194 = arith.addf %192, %193 : vector<8x32xf32>
    %c0_71 = arith.constant 0 : index
    %c0_72 = arith.constant 0 : index
    %c0_73 = arith.constant 0 : index
    %195 = vector.load %arg16[%c0_71, %c0_72, %c0_73] : memref<2x32x256xbf16, #tpu.memory_space<vmem>>, vector<1x32x256xbf16>
    %196 = vector.shape_cast %195 : vector<1x32x256xbf16> to vector<32x256xbf16>
    %197 = arith.truncf %194 : vector<8x32xf32> to vector<8x32xbf16>
    %cst_74 = arith.constant dense<0.000000e+00> : vector<8x256xf32>
    %198 = tpu.matmul %197, %196, %cst_74 {dimension_numbers = #tpu.dot_dimension_numbers<[1], [0], [0], [1], [0, 0, 1, 1], [], []>} : vector<8x32xbf16>, vector<32x256xbf16>, vector<8x256xf32> -> vector<8x256xf32>
    %c0_75 = arith.constant 0 : index
    %c0_76 = arith.constant 0 : index
    %c0_77 = arith.constant 0 : index
    %199 = vector.load %arg17[%c0_75, %c0_76, %c0_77] : memref<2x1x256xf32, #tpu.memory_space<vmem>>, vector<1x1x256xf32>
    %200 = vector.shape_cast %199 : vector<1x1x256xf32> to vector<1x256xf32>
    %201 = vector.broadcast %200 : vector<1x256xf32> to vector<8x256xf32>
    %202 = arith.addf %198, %201 : vector<8x256xf32>
    %203 = vector.extract_strided_slice %202 {offsets = [0, 0], sizes = [8, 128], strides = [1, 1]} : vector<8x256xf32> to vector<8x128xf32>
    %204 = vector.extract_strided_slice %202 {offsets = [0, 128], sizes = [8, 128], strides = [1, 1]} : vector<8x256xf32> to vector<8x128xf32>
    %205 = arith.mulf %204, %204 : vector<8x128xf32>
    %206 = arith.mulf %204, %205 : vector<8x128xf32>
    %cst_78 = arith.constant 4.471500e-02 : f32
    %207 = vector.broadcast %cst_78 : f32 to vector<8x128xf32>
    %208 = arith.mulf %207, %206 : vector<8x128xf32>
    %209 = arith.addf %204, %208 : vector<8x128xf32>
    %cst_79 = arith.constant 0.797884583 : f32
    %210 = vector.broadcast %cst_79 : f32 to vector<8x128xf32>
    %211 = arith.mulf %210, %209 : vector<8x128xf32>
    %212 = math.tanh %211 : vector<8x128xf32>
    %cst_80 = arith.constant 1.000000e+00 : f32
    %213 = vector.broadcast %cst_80 : f32 to vector<8x128xf32>
    %214 = arith.addf %213, %212 : vector<8x128xf32>
    %cst_81 = arith.constant 5.000000e-01 : f32
    %215 = vector.broadcast %cst_81 : f32 to vector<8x128xf32>
    %216 = arith.mulf %215, %214 : vector<8x128xf32>
    %217 = arith.mulf %204, %216 : vector<8x128xf32>
    %218 = arith.mulf %203, %217 : vector<8x128xf32>
    %c0_82 = arith.constant 0 : index
    %c0_83 = arith.constant 0 : index
    %c0_84 = arith.constant 0 : index
    %219 = vector.load %arg18[%c0_82, %c0_83, %c0_84] : memref<2x128x32xbf16, #tpu.memory_space<vmem>>, vector<1x128x32xbf16>
    %220 = vector.shape_cast %219 : vector<1x128x32xbf16> to vector<128x32xbf16>
    %221 = arith.truncf %218 : vector<8x128xf32> to vector<8x128xbf16>
    %cst_85 = arith.constant dense<0.000000e+00> : vector<8x32xf32>
    %222 = tpu.matmul %221, %220, %cst_85 {dimension_numbers = #tpu.dot_dimension_numbers<[1], [0], [0], [1], [0, 0, 1, 1], [], []>} : vector<8x128xbf16>, vector<128x32xbf16>, vector<8x32xf32> -> vector<8x32xf32>
    %c0_86 = arith.constant 0 : index
    %c0_87 = arith.constant 0 : index
    %c0_88 = arith.constant 0 : index
    %223 = vector.load %arg19[%c0_86, %c0_87, %c0_88] : memref<2x1x32xf32, #tpu.memory_space<vmem>>, vector<1x1x32xf32>
    %224 = vector.shape_cast %223 : vector<1x1x32xf32> to vector<1x32xf32>
    %225 = vector.broadcast %224 : vector<1x32xf32> to vector<8x32xf32>
    %226 = arith.addf %222, %225 : vector<8x32xf32>
    %227 = arith.addf %226, %194 : vector<8x32xf32>
    %228 = vector.extract_strided_slice %38 {offsets = [2, 0], sizes = [1, 32], strides = [1, 1]} : vector<4x32xf32> to vector<1x32xf32>
    %229 = vector.extract_strided_slice %38 {offsets = [3, 0], sizes = [1, 32], strides = [1, 1]} : vector<4x32xf32> to vector<1x32xf32>
    %cst_89 = arith.constant dense<0.000000e+00> : vector<8xf32>
    %230 = vector.multi_reduction <add>, %227, %cst_89 [1] : vector<8x32xf32> to vector<8xf32>
    %231 = vector.shape_cast %230 : vector<8xf32> to vector<8x1xf32>
    %cst_90 = arith.constant 3.200000e+01 : f32
    %232 = vector.broadcast %cst_90 : f32 to vector<8x1xf32>
    %233 = arith.divf %231, %232 : vector<8x1xf32>
    %234 = vector.broadcast %233 : vector<8x1xf32> to vector<8x32xf32>
    %235 = arith.subf %227, %234 : vector<8x32xf32>
    %236 = arith.mulf %235, %235 : vector<8x32xf32>
    %cst_91 = arith.constant dense<0.000000e+00> : vector<8xf32>
    %237 = vector.multi_reduction <add>, %236, %cst_91 [1] : vector<8x32xf32> to vector<8xf32>
    %238 = vector.shape_cast %237 : vector<8xf32> to vector<8x1xf32>
    %cst_92 = arith.constant 3.200000e+01 : f32
    %239 = vector.broadcast %cst_92 : f32 to vector<8x1xf32>
    %240 = arith.divf %238, %239 : vector<8x1xf32>
    %241 = vector.broadcast %233 : vector<8x1xf32> to vector<8x32xf32>
    %242 = arith.subf %227, %241 : vector<8x32xf32>
    %cst_93 = arith.constant 9.99999974E-6 : f32
    %243 = vector.broadcast %cst_93 : f32 to vector<8x1xf32>
    %244 = arith.addf %240, %243 : vector<8x1xf32>
    %245 = math.rsqrt %244 : vector<8x1xf32>
    %246 = vector.broadcast %245 : vector<8x1xf32> to vector<8x32xf32>
    %247 = arith.mulf %242, %246 : vector<8x32xf32>
    %248 = vector.broadcast %228 : vector<1x32xf32> to vector<8x32xf32>
    %249 = arith.mulf %247, %248 : vector<8x32xf32>
    %250 = vector.broadcast %229 : vector<1x32xf32> to vector<8x32xf32>
    %251 = arith.addf %249, %250 : vector<8x32xf32>
    %c1 = arith.constant 1 : index
    %c0_94 = arith.constant 0 : index
    %c0_95 = arith.constant 0 : index
    %252 = vector.load %arg15[%c1, %c0_94, %c0_95] : memref<2x4x32xf32, #tpu.memory_space<vmem>>, vector<1x4x32xf32>
    %253 = vector.shape_cast %252 : vector<1x4x32xf32> to vector<4x32xf32>
    %c1_96 = arith.constant 1 : index
    %c0_97 = arith.constant 0 : index
    %c0_98 = arith.constant 0 : index
    %254 = vector.load %arg10[%c1_96, %c0_97, %c0_98] : memref<2x32x288xbf16, #tpu.memory_space<vmem>>, vector<1x32x288xbf16>
    %255 = vector.shape_cast %254 : vector<1x32x288xbf16> to vector<32x288xbf16>
    %256 = arith.truncf %251 : vector<8x32xf32> to vector<8x32xbf16>
    %cst_99 = arith.constant dense<0.000000e+00> : vector<8x288xf32>
    %257 = tpu.matmul %256, %255, %cst_99 {dimension_numbers = #tpu.dot_dimension_numbers<[1], [0], [0], [1], [0, 0, 1, 1], [], []>} : vector<8x32xbf16>, vector<32x288xbf16>, vector<8x288xf32> -> vector<8x288xf32>
    %258 = vector.extract_strided_slice %257 {offsets = [0, 256], sizes = [8, 32], strides = [1, 1]} : vector<8x288xf32> to vector<8x32xf32>
    %259 = arith.negf %258 : vector<8x32xf32>
    %260 = math.exp %259 : vector<8x32xf32>
    %cst_100 = arith.constant 1.000000e+00 : f32
    %261 = vector.broadcast %cst_100 : f32 to vector<8x32xf32>
    %262 = arith.addf %261, %260 : vector<8x32xf32>
    %263 = arith.divf %261, %262 : vector<8x32xf32>
    %264 = arith.mulf %258, %263 : vector<8x32xf32>
    %265 = vector.extract_strided_slice %251 {offsets = [0, 0], sizes = [4, 32], strides = [1, 1]} : vector<8x32xf32> to vector<4x32xf32>
    %c1_101 = arith.constant 1 : index
    %c0_102 = arith.constant 0 : index
    %c0_103 = arith.constant 0 : index
    %266 = vector.load %arg11[%c1_101, %c0_102, %c0_103] : memref<2x32x128xbf16, #tpu.memory_space<vmem>>, vector<1x32x128xbf16>
    %267 = vector.shape_cast %266 : vector<1x32x128xbf16> to vector<32x128xbf16>
    %268 = arith.truncf %265 : vector<4x32xf32> to vector<4x32xbf16>
    %cst_104 = arith.constant dense<0.000000e+00> : vector<4x128xf32>
    %269 = tpu.matmul %268, %267, %cst_104 {dimension_numbers = #tpu.dot_dimension_numbers<[1], [0], [0], [1], [0, 0, 1, 1], [], []>} : vector<4x32xbf16>, vector<32x128xbf16>, vector<4x128xf32> -> vector<4x128xf32>
    %270 = vector.extract_strided_slice %251 {offsets = [4, 0], sizes = [4, 32], strides = [1, 1]} : vector<8x32xf32> to vector<4x32xf32>
    %c1_105 = arith.constant 1 : index
    %c0_106 = arith.constant 0 : index
    %c0_107 = arith.constant 0 : index
    %271 = vector.load %arg12[%c1_105, %c0_106, %c0_107] : memref<2x32x128xbf16, #tpu.memory_space<vmem>>, vector<1x32x128xbf16>
    %272 = vector.shape_cast %271 : vector<1x32x128xbf16> to vector<32x128xbf16>
    %273 = arith.truncf %270 : vector<4x32xf32> to vector<4x32xbf16>
    %cst_108 = arith.constant dense<0.000000e+00> : vector<4x128xf32>
    %274 = tpu.matmul %273, %272, %cst_108 {dimension_numbers = #tpu.dot_dimension_numbers<[1], [0], [0], [1], [0, 0, 1, 1], [], []>} : vector<4x32xbf16>, vector<32x128xbf16>, vector<4x128xf32> -> vector<4x128xf32>
    %275 = arith.addf %269, %274 : vector<4x128xf32>
    %c1_109 = arith.constant 1 : index
    %c0_110 = arith.constant 0 : index
    %c0_111 = arith.constant 0 : index
    %276 = vector.load %arg13[%c1_109, %c0_110, %c0_111] : memref<2x1x128xf32, #tpu.memory_space<vmem>>, vector<1x1x128xf32>
    %277 = vector.shape_cast %276 : vector<1x1x128xf32> to vector<1x128xf32>
    %278 = vector.broadcast %277 : vector<1x128xf32> to vector<4x128xf32>
    %279 = arith.addf %275, %278 : vector<4x128xf32>
    %280 = vector.extract_strided_slice %257 {offsets = [0, 0], sizes = [8, 64], strides = [1, 1]} : vector<8x288xf32> to vector<8x64xf32>
    %281 = vector.extract_strided_slice %279 {offsets = [0, 0], sizes = [1, 64], strides = [1, 1]} : vector<4x128xf32> to vector<1x64xf32>
    %282 = vector.extract_strided_slice %279 {offsets = [0, 64], sizes = [1, 64], strides = [1, 1]} : vector<4x128xf32> to vector<1x64xf32>
    %283 = vector.broadcast %281 : vector<1x64xf32> to vector<8x64xf32>
    %284 = arith.mulf %280, %283 : vector<8x64xf32>
    %285 = arith.truncf %284 : vector<8x64xf32> to vector<8x64xbf16>
    %cst_112 = arith.constant dense<0.000000e+00> : vector<8x8xf32>
    %286 = tpu.matmul %285, %34, %cst_112 {dimension_numbers = #tpu.dot_dimension_numbers<[1], [0], [0], [1], [0, 0, 1, 1], [], []>} : vector<8x64xbf16>, vector<64x8xbf16>, vector<8x8xf32> -> vector<8x8xf32>
    %cst_113 = arith.constant dense<0xFF800000> : vector<8xf32>
    %287 = vector.multi_reduction <maximumf>, %286, %cst_113 [1] : vector<8x8xf32> to vector<8xf32>
    %288 = vector.shape_cast %287 : vector<8xf32> to vector<8x1xf32>
    %289 = vector.broadcast %288 : vector<8x1xf32> to vector<8x8xf32>
    %290 = arith.subf %286, %289 : vector<8x8xf32>
    %291 = math.exp %290 : vector<8x8xf32>
    %cst_114 = arith.constant dense<0.000000e+00> : vector<8xf32>
    %292 = vector.multi_reduction <add>, %291, %cst_114 [1] : vector<8x8xf32> to vector<8xf32>
    %293 = vector.shape_cast %292 : vector<8xf32> to vector<8x1xf32>
    %294 = tpu.reciprocal %293 {approx = true} : vector<8x1xf32> -> vector<8x1xf32>
    %295 = vector.broadcast %294 : vector<8x1xf32> to vector<8x8xf32>
    %296 = arith.mulf %291, %295 : vector<8x8xf32>
    %297 = arith.truncf %296 : vector<8x8xf32> to vector<8x8xbf16>
    %cst_115 = arith.constant dense<0.000000e+00> : vector<8x64xf32>
    %298 = tpu.matmul %297, %35, %cst_115 {dimension_numbers = #tpu.dot_dimension_numbers<[1], [0], [0], [1], [0, 0, 1, 1], [], []>} : vector<8x8xbf16>, vector<8x64xbf16>, vector<8x64xf32> -> vector<8x64xf32>
    %299 = vector.broadcast %282 : vector<1x64xf32> to vector<8x64xf32>
    %300 = arith.mulf %298, %299 : vector<8x64xf32>
    %301 = arith.truncf %300 : vector<8x64xf32> to vector<8x64xbf16>
    %cst_116 = arith.constant dense<0.000000e+00> : vector<8x8xf32>
    %302 = tpu.matmul %301, %36, %cst_116 {dimension_numbers = #tpu.dot_dimension_numbers<[1], [0], [0], [1], [0, 0, 1, 1], [], []>} : vector<8x64xbf16>, vector<64x8xbf16>, vector<8x8xf32> -> vector<8x8xf32>
    %303 = vector.extract_strided_slice %264 {offsets = [0, 0], sizes = [8, 8], strides = [1, 1]} : vector<8x32xf32> to vector<8x8xf32>
    %304 = arith.mulf %302, %303 : vector<8x8xf32>
    %305 = vector.extract_strided_slice %257 {offsets = [0, 64], sizes = [8, 64], strides = [1, 1]} : vector<8x288xf32> to vector<8x64xf32>
    %306 = vector.extract_strided_slice %279 {offsets = [1, 0], sizes = [1, 64], strides = [1, 1]} : vector<4x128xf32> to vector<1x64xf32>
    %307 = vector.extract_strided_slice %279 {offsets = [1, 64], sizes = [1, 64], strides = [1, 1]} : vector<4x128xf32> to vector<1x64xf32>
    %308 = vector.broadcast %306 : vector<1x64xf32> to vector<8x64xf32>
    %309 = arith.mulf %305, %308 : vector<8x64xf32>
    %310 = arith.truncf %309 : vector<8x64xf32> to vector<8x64xbf16>
    %cst_117 = arith.constant dense<0.000000e+00> : vector<8x8xf32>
    %311 = tpu.matmul %310, %34, %cst_117 {dimension_numbers = #tpu.dot_dimension_numbers<[1], [0], [0], [1], [0, 0, 1, 1], [], []>} : vector<8x64xbf16>, vector<64x8xbf16>, vector<8x8xf32> -> vector<8x8xf32>
    %cst_118 = arith.constant dense<0xFF800000> : vector<8xf32>
    %312 = vector.multi_reduction <maximumf>, %311, %cst_118 [1] : vector<8x8xf32> to vector<8xf32>
    %313 = vector.shape_cast %312 : vector<8xf32> to vector<8x1xf32>
    %314 = vector.broadcast %313 : vector<8x1xf32> to vector<8x8xf32>
    %315 = arith.subf %311, %314 : vector<8x8xf32>
    %316 = math.exp %315 : vector<8x8xf32>
    %cst_119 = arith.constant dense<0.000000e+00> : vector<8xf32>
    %317 = vector.multi_reduction <add>, %316, %cst_119 [1] : vector<8x8xf32> to vector<8xf32>
    %318 = vector.shape_cast %317 : vector<8xf32> to vector<8x1xf32>
    %319 = tpu.reciprocal %318 {approx = true} : vector<8x1xf32> -> vector<8x1xf32>
    %320 = vector.broadcast %319 : vector<8x1xf32> to vector<8x8xf32>
    %321 = arith.mulf %316, %320 : vector<8x8xf32>
    %322 = arith.truncf %321 : vector<8x8xf32> to vector<8x8xbf16>
    %cst_120 = arith.constant dense<0.000000e+00> : vector<8x64xf32>
    %323 = tpu.matmul %322, %35, %cst_120 {dimension_numbers = #tpu.dot_dimension_numbers<[1], [0], [0], [1], [0, 0, 1, 1], [], []>} : vector<8x8xbf16>, vector<8x64xbf16>, vector<8x64xf32> -> vector<8x64xf32>
    %324 = vector.broadcast %307 : vector<1x64xf32> to vector<8x64xf32>
    %325 = arith.mulf %323, %324 : vector<8x64xf32>
    %326 = arith.truncf %325 : vector<8x64xf32> to vector<8x64xbf16>
    %cst_121 = arith.constant dense<0.000000e+00> : vector<8x8xf32>
    %327 = tpu.matmul %326, %36, %cst_121 {dimension_numbers = #tpu.dot_dimension_numbers<[1], [0], [0], [1], [0, 0, 1, 1], [], []>} : vector<8x64xbf16>, vector<64x8xbf16>, vector<8x8xf32> -> vector<8x8xf32>
    %328 = vector.extract_strided_slice %264 {offsets = [0, 8], sizes = [8, 8], strides = [1, 1]} : vector<8x32xf32> to vector<8x8xf32>
    %329 = arith.mulf %327, %328 : vector<8x8xf32>
    %330 = vector.extract_strided_slice %257 {offsets = [0, 128], sizes = [8, 64], strides = [1, 1]} : vector<8x288xf32> to vector<8x64xf32>
    %331 = vector.extract_strided_slice %279 {offsets = [2, 0], sizes = [1, 64], strides = [1, 1]} : vector<4x128xf32> to vector<1x64xf32>
    %332 = vector.extract_strided_slice %279 {offsets = [2, 64], sizes = [1, 64], strides = [1, 1]} : vector<4x128xf32> to vector<1x64xf32>
    %333 = vector.broadcast %331 : vector<1x64xf32> to vector<8x64xf32>
    %334 = arith.mulf %330, %333 : vector<8x64xf32>
    %335 = arith.truncf %334 : vector<8x64xf32> to vector<8x64xbf16>
    %cst_122 = arith.constant dense<0.000000e+00> : vector<8x8xf32>
    %336 = tpu.matmul %335, %34, %cst_122 {dimension_numbers = #tpu.dot_dimension_numbers<[1], [0], [0], [1], [0, 0, 1, 1], [], []>} : vector<8x64xbf16>, vector<64x8xbf16>, vector<8x8xf32> -> vector<8x8xf32>
    %cst_123 = arith.constant dense<0xFF800000> : vector<8xf32>
    %337 = vector.multi_reduction <maximumf>, %336, %cst_123 [1] : vector<8x8xf32> to vector<8xf32>
    %338 = vector.shape_cast %337 : vector<8xf32> to vector<8x1xf32>
    %339 = vector.broadcast %338 : vector<8x1xf32> to vector<8x8xf32>
    %340 = arith.subf %336, %339 : vector<8x8xf32>
    %341 = math.exp %340 : vector<8x8xf32>
    %cst_124 = arith.constant dense<0.000000e+00> : vector<8xf32>
    %342 = vector.multi_reduction <add>, %341, %cst_124 [1] : vector<8x8xf32> to vector<8xf32>
    %343 = vector.shape_cast %342 : vector<8xf32> to vector<8x1xf32>
    %344 = tpu.reciprocal %343 {approx = true} : vector<8x1xf32> -> vector<8x1xf32>
    %345 = vector.broadcast %344 : vector<8x1xf32> to vector<8x8xf32>
    %346 = arith.mulf %341, %345 : vector<8x8xf32>
    %347 = arith.truncf %346 : vector<8x8xf32> to vector<8x8xbf16>
    %cst_125 = arith.constant dense<0.000000e+00> : vector<8x64xf32>
    %348 = tpu.matmul %347, %35, %cst_125 {dimension_numbers = #tpu.dot_dimension_numbers<[1], [0], [0], [1], [0, 0, 1, 1], [], []>} : vector<8x8xbf16>, vector<8x64xbf16>, vector<8x64xf32> -> vector<8x64xf32>
    %349 = vector.broadcast %332 : vector<1x64xf32> to vector<8x64xf32>
    %350 = arith.mulf %348, %349 : vector<8x64xf32>
    %351 = arith.truncf %350 : vector<8x64xf32> to vector<8x64xbf16>
    %cst_126 = arith.constant dense<0.000000e+00> : vector<8x8xf32>
    %352 = tpu.matmul %351, %36, %cst_126 {dimension_numbers = #tpu.dot_dimension_numbers<[1], [0], [0], [1], [0, 0, 1, 1], [], []>} : vector<8x64xbf16>, vector<64x8xbf16>, vector<8x8xf32> -> vector<8x8xf32>
    %353 = vector.extract_strided_slice %264 {offsets = [0, 16], sizes = [8, 8], strides = [1, 1]} : vector<8x32xf32> to vector<8x8xf32>
    %354 = arith.mulf %352, %353 : vector<8x8xf32>
    %355 = vector.extract_strided_slice %257 {offsets = [0, 192], sizes = [8, 64], strides = [1, 1]} : vector<8x288xf32> to vector<8x64xf32>
    %356 = vector.extract_strided_slice %279 {offsets = [3, 0], sizes = [1, 64], strides = [1, 1]} : vector<4x128xf32> to vector<1x64xf32>
    %357 = vector.extract_strided_slice %279 {offsets = [3, 64], sizes = [1, 64], strides = [1, 1]} : vector<4x128xf32> to vector<1x64xf32>
    %358 = vector.broadcast %356 : vector<1x64xf32> to vector<8x64xf32>
    %359 = arith.mulf %355, %358 : vector<8x64xf32>
    %360 = arith.truncf %359 : vector<8x64xf32> to vector<8x64xbf16>
    %cst_127 = arith.constant dense<0.000000e+00> : vector<8x8xf32>
    %361 = tpu.matmul %360, %34, %cst_127 {dimension_numbers = #tpu.dot_dimension_numbers<[1], [0], [0], [1], [0, 0, 1, 1], [], []>} : vector<8x64xbf16>, vector<64x8xbf16>, vector<8x8xf32> -> vector<8x8xf32>
    %cst_128 = arith.constant dense<0xFF800000> : vector<8xf32>
    %362 = vector.multi_reduction <maximumf>, %361, %cst_128 [1] : vector<8x8xf32> to vector<8xf32>
    %363 = vector.shape_cast %362 : vector<8xf32> to vector<8x1xf32>
    %364 = vector.broadcast %363 : vector<8x1xf32> to vector<8x8xf32>
    %365 = arith.subf %361, %364 : vector<8x8xf32>
    %366 = math.exp %365 : vector<8x8xf32>
    %cst_129 = arith.constant dense<0.000000e+00> : vector<8xf32>
    %367 = vector.multi_reduction <add>, %366, %cst_129 [1] : vector<8x8xf32> to vector<8xf32>
    %368 = vector.shape_cast %367 : vector<8xf32> to vector<8x1xf32>
    %369 = tpu.reciprocal %368 {approx = true} : vector<8x1xf32> -> vector<8x1xf32>
    %370 = vector.broadcast %369 : vector<8x1xf32> to vector<8x8xf32>
    %371 = arith.mulf %366, %370 : vector<8x8xf32>
    %372 = arith.truncf %371 : vector<8x8xf32> to vector<8x8xbf16>
    %cst_130 = arith.constant dense<0.000000e+00> : vector<8x64xf32>
    %373 = tpu.matmul %372, %35, %cst_130 {dimension_numbers = #tpu.dot_dimension_numbers<[1], [0], [0], [1], [0, 0, 1, 1], [], []>} : vector<8x8xbf16>, vector<8x64xbf16>, vector<8x64xf32> -> vector<8x64xf32>
    %374 = vector.broadcast %357 : vector<1x64xf32> to vector<8x64xf32>
    %375 = arith.mulf %373, %374 : vector<8x64xf32>
    %376 = arith.truncf %375 : vector<8x64xf32> to vector<8x64xbf16>
    %cst_131 = arith.constant dense<0.000000e+00> : vector<8x8xf32>
    %377 = tpu.matmul %376, %36, %cst_131 {dimension_numbers = #tpu.dot_dimension_numbers<[1], [0], [0], [1], [0, 0, 1, 1], [], []>} : vector<8x64xbf16>, vector<64x8xbf16>, vector<8x8xf32> -> vector<8x8xf32>
    %378 = vector.extract_strided_slice %264 {offsets = [0, 24], sizes = [8, 8], strides = [1, 1]} : vector<8x32xf32> to vector<8x8xf32>
    %379 = arith.mulf %377, %378 : vector<8x8xf32>
    %380 = tpu.concatenate %304, %329, %354, %379 in 1 : vector<8x8xf32>, vector<8x8xf32>, vector<8x8xf32>, vector<8x8xf32> -> vector<8x32xf32>
    %c1_132 = arith.constant 1 : index
    %c0_133 = arith.constant 0 : index
    %c0_134 = arith.constant 0 : index
    %381 = vector.load %arg14[%c1_132, %c0_133, %c0_134] : memref<2x32x32xbf16, #tpu.memory_space<vmem>>, vector<1x32x32xbf16>
    %382 = vector.shape_cast %381 : vector<1x32x32xbf16> to vector<32x32xbf16>
    %383 = arith.truncf %380 : vector<8x32xf32> to vector<8x32xbf16>
    %cst_135 = arith.constant dense<0.000000e+00> : vector<8x32xf32>
    %384 = tpu.matmul %383, %382, %cst_135 {dimension_numbers = #tpu.dot_dimension_numbers<[1], [0], [0], [1], [0, 0, 1, 1], [], []>} : vector<8x32xbf16>, vector<32x32xbf16>, vector<8x32xf32> -> vector<8x32xf32>
    %385 = arith.addf %384, %251 : vector<8x32xf32>
    %386 = vector.extract_strided_slice %253 {offsets = [0, 0], sizes = [1, 32], strides = [1, 1]} : vector<4x32xf32> to vector<1x32xf32>
    %387 = vector.extract_strided_slice %253 {offsets = [1, 0], sizes = [1, 32], strides = [1, 1]} : vector<4x32xf32> to vector<1x32xf32>
    %cst_136 = arith.constant dense<0.000000e+00> : vector<8xf32>
    %388 = vector.multi_reduction <add>, %385, %cst_136 [1] : vector<8x32xf32> to vector<8xf32>
    %389 = vector.shape_cast %388 : vector<8xf32> to vector<8x1xf32>
    %cst_137 = arith.constant 3.200000e+01 : f32
    %390 = vector.broadcast %cst_137 : f32 to vector<8x1xf32>
    %391 = arith.divf %389, %390 : vector<8x1xf32>
    %392 = vector.broadcast %391 : vector<8x1xf32> to vector<8x32xf32>
    %393 = arith.subf %385, %392 : vector<8x32xf32>
    %394 = arith.mulf %393, %393 : vector<8x32xf32>
    %cst_138 = arith.constant dense<0.000000e+00> : vector<8xf32>
    %395 = vector.multi_reduction <add>, %394, %cst_138 [1] : vector<8x32xf32> to vector<8xf32>
    %396 = vector.shape_cast %395 : vector<8xf32> to vector<8x1xf32>
    %cst_139 = arith.constant 3.200000e+01 : f32
    %397 = vector.broadcast %cst_139 : f32 to vector<8x1xf32>
    %398 = arith.divf %396, %397 : vector<8x1xf32>
    %399 = vector.broadcast %391 : vector<8x1xf32> to vector<8x32xf32>
    %400 = arith.subf %385, %399 : vector<8x32xf32>
    %cst_140 = arith.constant 9.99999974E-6 : f32
    %401 = vector.broadcast %cst_140 : f32 to vector<8x1xf32>
    %402 = arith.addf %398, %401 : vector<8x1xf32>
    %403 = math.rsqrt %402 : vector<8x1xf32>
    %404 = vector.broadcast %403 : vector<8x1xf32> to vector<8x32xf32>
    %405 = arith.mulf %400, %404 : vector<8x32xf32>
    %406 = vector.broadcast %386 : vector<1x32xf32> to vector<8x32xf32>
    %407 = arith.mulf %405, %406 : vector<8x32xf32>
    %408 = vector.broadcast %387 : vector<1x32xf32> to vector<8x32xf32>
    %409 = arith.addf %407, %408 : vector<8x32xf32>
    %c1_141 = arith.constant 1 : index
    %c0_142 = arith.constant 0 : index
    %c0_143 = arith.constant 0 : index
    %410 = vector.load %arg16[%c1_141, %c0_142, %c0_143] : memref<2x32x256xbf16, #tpu.memory_space<vmem>>, vector<1x32x256xbf16>
    %411 = vector.shape_cast %410 : vector<1x32x256xbf16> to vector<32x256xbf16>
    %412 = arith.truncf %409 : vector<8x32xf32> to vector<8x32xbf16>
    %cst_144 = arith.constant dense<0.000000e+00> : vector<8x256xf32>
    %413 = tpu.matmul %412, %411, %cst_144 {dimension_numbers = #tpu.dot_dimension_numbers<[1], [0], [0], [1], [0, 0, 1, 1], [], []>} : vector<8x32xbf16>, vector<32x256xbf16>, vector<8x256xf32> -> vector<8x256xf32>
    %c1_145 = arith.constant 1 : index
    %c0_146 = arith.constant 0 : index
    %c0_147 = arith.constant 0 : index
    %414 = vector.load %arg17[%c1_145, %c0_146, %c0_147] : memref<2x1x256xf32, #tpu.memory_space<vmem>>, vector<1x1x256xf32>
    %415 = vector.shape_cast %414 : vector<1x1x256xf32> to vector<1x256xf32>
    %416 = vector.broadcast %415 : vector<1x256xf32> to vector<8x256xf32>
    %417 = arith.addf %413, %416 : vector<8x256xf32>
    %418 = vector.extract_strided_slice %417 {offsets = [0, 0], sizes = [8, 128], strides = [1, 1]} : vector<8x256xf32> to vector<8x128xf32>
    %419 = vector.extract_strided_slice %417 {offsets = [0, 128], sizes = [8, 128], strides = [1, 1]} : vector<8x256xf32> to vector<8x128xf32>
    %420 = arith.mulf %419, %419 : vector<8x128xf32>
    %421 = arith.mulf %419, %420 : vector<8x128xf32>
    %cst_148 = arith.constant 4.471500e-02 : f32
    %422 = vector.broadcast %cst_148 : f32 to vector<8x128xf32>
    %423 = arith.mulf %422, %421 : vector<8x128xf32>
    %424 = arith.addf %419, %423 : vector<8x128xf32>
    %cst_149 = arith.constant 0.797884583 : f32
    %425 = vector.broadcast %cst_149 : f32 to vector<8x128xf32>
    %426 = arith.mulf %425, %424 : vector<8x128xf32>
    %427 = math.tanh %426 : vector<8x128xf32>
    %cst_150 = arith.constant 1.000000e+00 : f32
    %428 = vector.broadcast %cst_150 : f32 to vector<8x128xf32>
    %429 = arith.addf %428, %427 : vector<8x128xf32>
    %cst_151 = arith.constant 5.000000e-01 : f32
    %430 = vector.broadcast %cst_151 : f32 to vector<8x128xf32>
    %431 = arith.mulf %430, %429 : vector<8x128xf32>
    %432 = arith.mulf %419, %431 : vector<8x128xf32>
    %433 = arith.mulf %418, %432 : vector<8x128xf32>
    %c1_152 = arith.constant 1 : index
    %c0_153 = arith.constant 0 : index
    %c0_154 = arith.constant 0 : index
    %434 = vector.load %arg18[%c1_152, %c0_153, %c0_154] : memref<2x128x32xbf16, #tpu.memory_space<vmem>>, vector<1x128x32xbf16>
    %435 = vector.shape_cast %434 : vector<1x128x32xbf16> to vector<128x32xbf16>
    %436 = arith.truncf %433 : vector<8x128xf32> to vector<8x128xbf16>
    %cst_155 = arith.constant dense<0.000000e+00> : vector<8x32xf32>
    %437 = tpu.matmul %436, %435, %cst_155 {dimension_numbers = #tpu.dot_dimension_numbers<[1], [0], [0], [1], [0, 0, 1, 1], [], []>} : vector<8x128xbf16>, vector<128x32xbf16>, vector<8x32xf32> -> vector<8x32xf32>
    %c1_156 = arith.constant 1 : index
    %c0_157 = arith.constant 0 : index
    %c0_158 = arith.constant 0 : index
    %438 = vector.load %arg19[%c1_156, %c0_157, %c0_158] : memref<2x1x32xf32, #tpu.memory_space<vmem>>, vector<1x1x32xf32>
    %439 = vector.shape_cast %438 : vector<1x1x32xf32> to vector<1x32xf32>
    %440 = vector.broadcast %439 : vector<1x32xf32> to vector<8x32xf32>
    %441 = arith.addf %437, %440 : vector<8x32xf32>
    %442 = arith.addf %441, %409 : vector<8x32xf32>
    %443 = vector.extract_strided_slice %253 {offsets = [2, 0], sizes = [1, 32], strides = [1, 1]} : vector<4x32xf32> to vector<1x32xf32>
    %444 = vector.extract_strided_slice %253 {offsets = [3, 0], sizes = [1, 32], strides = [1, 1]} : vector<4x32xf32> to vector<1x32xf32>
    %cst_159 = arith.constant dense<0.000000e+00> : vector<8xf32>
    %445 = vector.multi_reduction <add>, %442, %cst_159 [1] : vector<8x32xf32> to vector<8xf32>
    %446 = vector.shape_cast %445 : vector<8xf32> to vector<8x1xf32>
    %cst_160 = arith.constant 3.200000e+01 : f32
    %447 = vector.broadcast %cst_160 : f32 to vector<8x1xf32>
    %448 = arith.divf %446, %447 : vector<8x1xf32>
    %449 = vector.broadcast %448 : vector<8x1xf32> to vector<8x32xf32>
    %450 = arith.subf %442, %449 : vector<8x32xf32>
    %451 = arith.mulf %450, %450 : vector<8x32xf32>
    %cst_161 = arith.constant dense<0.000000e+00> : vector<8xf32>
    %452 = vector.multi_reduction <add>, %451, %cst_161 [1] : vector<8x32xf32> to vector<8xf32>
    %453 = vector.shape_cast %452 : vector<8xf32> to vector<8x1xf32>
    %cst_162 = arith.constant 3.200000e+01 : f32
    %454 = vector.broadcast %cst_162 : f32 to vector<8x1xf32>
    %455 = arith.divf %453, %454 : vector<8x1xf32>
    %456 = vector.broadcast %448 : vector<8x1xf32> to vector<8x32xf32>
    %457 = arith.subf %442, %456 : vector<8x32xf32>
    %cst_163 = arith.constant 9.99999974E-6 : f32
    %458 = vector.broadcast %cst_163 : f32 to vector<8x1xf32>
    %459 = arith.addf %455, %458 : vector<8x1xf32>
    %460 = math.rsqrt %459 : vector<8x1xf32>
    %461 = vector.broadcast %460 : vector<8x1xf32> to vector<8x32xf32>
    %462 = arith.mulf %457, %461 : vector<8x32xf32>
    %463 = vector.broadcast %443 : vector<1x32xf32> to vector<8x32xf32>
    %464 = arith.mulf %462, %463 : vector<8x32xf32>
    %465 = vector.broadcast %444 : vector<1x32xf32> to vector<8x32xf32>
    %466 = arith.addf %464, %465 : vector<8x32xf32>
    %c0_164 = arith.constant 0 : index
    %c0_165 = arith.constant 0 : index
    %467 = vector.load %arg20[%c0_164, %c0_165] : memref<32x128xbf16, #tpu.memory_space<vmem>>, vector<32x128xbf16>
    %468 = arith.truncf %466 : vector<8x32xf32> to vector<8x32xbf16>
    %cst_166 = arith.constant dense<0.000000e+00> : vector<8x128xf32>
    %469 = tpu.matmul %468, %467, %cst_166 {dimension_numbers = #tpu.dot_dimension_numbers<[1], [0], [0], [1], [0, 0, 1, 1], [], []>} : vector<8x32xbf16>, vector<32x128xbf16>, vector<8x128xf32> -> vector<8x128xf32>
    %c0_167 = arith.constant 0 : index
    %c0_168 = arith.constant 0 : index
    %470 = vector.load %arg21[%c0_167, %c0_168] : memref<1x128xf32, #tpu.memory_space<vmem>>, vector<1x128xf32>
    %471 = vector.broadcast %470 : vector<1x128xf32> to vector<8x128xf32>
    %472 = arith.addf %469, %471 : vector<8x128xf32>
    %c0_169 = arith.constant 0 : index
    %c0_170 = arith.constant 0 : index
    %c0_171 = arith.constant 0 : index
    %473 = vector.load %arg22[%c0_169, %c0_170, %c0_171] : memref<1x8x128xf32, #tpu.memory_space<vmem>>, vector<1x8x128xf32>
    %474 = vector.shape_cast %473 : vector<1x8x128xf32> to vector<8x128xf32>
    %475 = vector.shape_cast %472 : vector<8x128xf32> to vector<1x8x128xf32>
    tpu.vector_store %arg22[%c0_169, %c0_170, %c0_171], %475 {strides = array<i32>} : memref<1x8x128xf32, #tpu.memory_space<vmem>>, vector<1x8x128xf32>,
    return
  }
  func.func @transform_0(%arg0: i32) -> (i32, i32, i32) {
    %c0_i32 = arith.constant 0 : i32
    %c0_i32_0 = arith.constant 0 : i32
    %c0_i32_1 = arith.constant 0 : i32
    return %arg0, %c0_i32, %c0_i32_0 : i32, i32, i32
  }
  func.func @transform_1(%arg0: i32) -> (i32, i32) {
    %c0_i32 = arith.constant 0 : i32
    %c0_i32_0 = arith.constant 0 : i32
    %c0_i32_1 = arith.constant 0 : i32
    return %c0_i32, %c0_i32_0 : i32, i32
  }
  func.func @transform_2(%arg0: i32) -> (i32, i32) {
    %c0_i32 = arith.constant 0 : i32
    %c0_i32_0 = arith.constant 0 : i32
    %c0_i32_1 = arith.constant 0 : i32
    return %c0_i32, %c0_i32_0 : i32, i32
  }
  func.func @transform_3(%arg0: i32) -> (i32, i32) {
    %c0_i32 = arith.constant 0 : i32
    %c0_i32_0 = arith.constant 0 : i32
    %c0_i32_1 = arith.constant 0 : i32
    return %c0_i32, %c0_i32_0 : i32, i32
  }
  func.func @transform_4(%arg0: i32) -> (i32, i32) {
    %c0_i32 = arith.constant 0 : i32
    %c0_i32_0 = arith.constant 0 : i32
    %c0_i32_1 = arith.constant 0 : i32
    return %c0_i32, %c0_i32_0 : i32, i32
  }
  func.func @transform_5(%arg0: i32) -> (i32, i32) {
    %c0_i32 = arith.constant 0 : i32
    %c0_i32_0 = arith.constant 0 : i32
    %c0_i32_1 = arith.constant 0 : i32
    return %c0_i32, %c0_i32_0 : i32, i32
  }
  func.func @transform_6(%arg0: i32) -> (i32, i32) {
    %c0_i32 = arith.constant 0 : i32
    %c0_i32_0 = arith.constant 0 : i32
    %c0_i32_1 = arith.constant 0 : i32
    return %c0_i32, %c0_i32_0 : i32, i32
  }
  func.func @transform_7(%arg0: i32) -> (i32, i32) {
    %c0_i32 = arith.constant 0 : i32
    %c0_i32_0 = arith.constant 0 : i32
    %c0_i32_1 = arith.constant 0 : i32
    return %c0_i32, %c0_i32_0 : i32, i32
  }
  func.func @transform_8(%arg0: i32) -> (i32, i32) {
    %c0_i32 = arith.constant 0 : i32
    %c0_i32_0 = arith.constant 0 : i32
    %c0_i32_1 = arith.constant 0 : i32
    return %c0_i32, %c0_i32_0 : i32, i32
  }
  func.func @transform_9(%arg0: i32) -> (i32, i32, i32) {
    %c0_i32 = arith.constant 0 : i32
    %c0_i32_0 = arith.constant 0 : i32
    %c0_i32_1 = arith.constant 0 : i32
    %c0_i32_2 = arith.constant 0 : i32
    return %c0_i32, %c0_i32_0, %c0_i32_1 : i32, i32, i32
  }
  func.func @transform_10(%arg0: i32) -> (i32, i32, i32) {
    %c0_i32 = arith.constant 0 : i32
    %c0_i32_0 = arith.constant 0 : i32
    %c0_i32_1 = arith.constant 0 : i32
    %c0_i32_2 = arith.constant 0 : i32
    return %c0_i32, %c0_i32_0, %c0_i32_1 : i32, i32, i32
  }
  func.func @transform_11(%arg0: i32) -> (i32, i32, i32) {
    %c0_i32 = arith.constant 0 : i32
    %c0_i32_0 = arith.constant 0 : i32
    %c0_i32_1 = arith.constant 0 : i32
    %c0_i32_2 = arith.constant 0 : i32
    return %c0_i32, %c0_i32_0, %c0_i32_1 : i32, i32, i32
  }
  func.func @transform_12(%arg0: i32) -> (i32, i32, i32) {
    %c0_i32 = arith.constant 0 : i32
    %c0_i32_0 = arith.constant 0 : i32
    %c0_i32_1 = arith.constant 0 : i32
    %c0_i32_2 = arith.constant 0 : i32
    return %c0_i32, %c0_i32_0, %c0_i32_1 : i32, i32, i32
  }
  func.func @transform_13(%arg0: i32) -> (i32, i32, i32) {
    %c0_i32 = arith.constant 0 : i32
    %c0_i32_0 = arith.constant 0 : i32
    %c0_i32_1 = arith.constant 0 : i32
    %c0_i32_2 = arith.constant 0 : i32
    return %c0_i32, %c0_i32_0, %c0_i32_1 : i32, i32, i32
  }
  func.func @transform_14(%arg0: i32) -> (i32, i32, i32) {
    %c0_i32 = arith.constant 0 : i32
    %c0_i32_0 = arith.constant 0 : i32
    %c0_i32_1 = arith.constant 0 : i32
    %c0_i32_2 = arith.constant 0 : i32
    return %c0_i32, %c0_i32_0, %c0_i32_1 : i32, i32, i32
  }
  func.func @transform_15(%arg0: i32) -> (i32, i32, i32) {
    %c0_i32 = arith.constant 0 : i32
    %c0_i32_0 = arith.constant 0 : i32
    %c0_i32_1 = arith.constant 0 : i32
    %c0_i32_2 = arith.constant 0 : i32
    return %c0_i32, %c0_i32_0, %c0_i32_1 : i32, i32, i32
  }
  func.func @transform_16(%arg0: i32) -> (i32, i32, i32) {
    %c0_i32 = arith.constant 0 : i32
    %c0_i32_0 = arith.constant 0 : i32
    %c0_i32_1 = arith.constant 0 : i32
    %c0_i32_2 = arith.constant 0 : i32
    return %c0_i32, %c0_i32_0, %c0_i32_1 : i32, i32, i32
  }
  func.func @transform_17(%arg0: i32) -> (i32, i32, i32) {
    %c0_i32 = arith.constant 0 : i32
    %c0_i32_0 = arith.constant 0 : i32
    %c0_i32_1 = arith.constant 0 : i32
    %c0_i32_2 = arith.constant 0 : i32
    return %c0_i32, %c0_i32_0, %c0_i32_1 : i32, i32, i32
  }
  func.func @transform_18(%arg0: i32) -> (i32, i32, i32) {
    %c0_i32 = arith.constant 0 : i32
    %c0_i32_0 = arith.constant 0 : i32
    %c0_i32_1 = arith.constant 0 : i32
    %c0_i32_2 = arith.constant 0 : i32
    return %c0_i32, %c0_i32_0, %c0_i32_1 : i32, i32, i32
  }
  func.func @transform_19(%arg0: i32) -> (i32, i32) {
    %c0_i32 = arith.constant 0 : i32
    %c0_i32_0 = arith.constant 0 : i32
    %c0_i32_1 = arith.constant 0 : i32
    return %c0_i32, %c0_i32_0 : i32, i32
  }
  func.func @transform_20(%arg0: i32) -> (i32, i32) {
    %c0_i32 = arith.constant 0 : i32
    %c0_i32_0 = arith.constant 0 : i32
    %c0_i32_1 = arith.constant 0 : i32
    return %c0_i32, %c0_i32_0 : i32, i32
  }
  func.func @transform_21(%arg0: i32) -> (i32, i32, i32) {
    %c0_i32 = arith.constant 0 : i32
    %c0_i32_0 = arith.constant 0 : i32
    %c0_i32_1 = arith.constant 0 : i32
    return %arg0, %c0_i32, %c0_i32_0 : i32, i32, i32
  }
}

</mosaic_0001>

<llo_original>
// kernel: itransformer_forward.1
$region0: #{itransformer_forward.1}
  #allocation0 [shape = 'u32[]', space=smem, size = 0x4, offset = 0x4, fixed_abs, tag = 'smem constant byte address 0x4 - core index']
  #allocation1 [shape = 'u32[72,128]{1,0:T(1,128)}', space=vmem, size = 0x9000, scoped, tag = 'internal scratch']
  %s0 = inlined_call_operand.vmem [shape: f32[2,4,8], index: 0, kind: input, shape index: {}]
  %s1 = inlined_call_operand.vmem [shape: f32[4,32], index: 1, kind: input, shape index: {}]
  %s2 = inlined_call_operand.hbm [shape: bf16[8,32], index: 2, kind: input, shape index: {}]
  %s3 = inlined_call_operand.vmem [shape: f32[1,32], index: 3, kind: input, shape index: {}]
  %s4 = inlined_call_operand.vmem [shape: f32[1,32], index: 4, kind: input, shape index: {}]
  %s5 = inlined_call_operand.hbm [shape: f32[1,32], index: 5, kind: input, shape index: {}]
  %s6 = inlined_call_operand.vmem [shape: bf16[64,8], index: 6, kind: input, shape index: {}]
  %s7 = inlined_call_operand.hbm [shape: bf16[8,64], index: 7, kind: input, shape index: {}]
  %s8 = inlined_call_operand.vmem [shape: bf16[64,8], index: 8, kind: input, shape index: {}]
  %s9 = inlined_call_operand.vmem [shape: bf16[2,32,288], index: 9, kind: input, shape index: {}]
  %s10 = inlined_call_operand.vmem [shape: bf16[2,32,128], index: 10, kind: input, shape index: {}]
  %s11 = inlined_call_operand.hbm [shape: bf16[2,32,128], index: 11, kind: input, shape index: {}]
  %s12 = inlined_call_operand.hbm [shape: f32[2,1,128], index: 12, kind: input, shape index: {}]
  %s13 = inlined_call_operand.hbm [shape: bf16[2,32,32], index: 13, kind: input, shape index: {}]
  %s14 = inlined_call_operand.hbm [shape: f32[2,4,32], index: 14, kind: input, shape index: {}]
  %s15 = inlined_call_operand.vmem [shape: bf16[2,32,256], index: 15, kind: input, shape index: {}]
  %s16 = inlined_call_operand.hbm [shape: f32[2,1,256], index: 16, kind: input, shape index: {}]
  %s17 = inlined_call_operand.vmem [shape: bf16[2,128,32], index: 17, kind: input, shape index: {}]
  %s18 = inlined_call_operand.hbm [shape: f32[2,1,32], index: 18, kind: input, shape index: {}]
  %s19 = inlined_call_operand.hbm [shape: bf16[32,128], index: 19, kind: input, shape index: {}]
  %s20 = inlined_call_operand.hbm [shape: f32[1,128], index: 20, kind: input, shape index: {}]
  %s21 = inlined_call_operand.vmem [shape: f32[2,8,128], index: 21, kind: output, shape index: {}]
  %s22 = sld [smem:[#allocation0]]
  $region161: #{itransformer_forward.1} parent=0
    _
  %s24 = ssub.s32 1, %s22
  %s25 = scalar_select 0, %s24, %s22
  $region1: #{itransformer_forward.1} parent=0
    #allocation2 [shape = 'u8[2048]{0}', space=vmem, size = 0x800, scoped, tag = 'input window, operand 2, single buffered']
    #allocation3 [shape = 's32[2]{0}', space=sflag, size = 0x8, scoped, tag = 'scoped memory for itransformer_forward.1']
    #allocation4 [shape = 'u8[512]{0}', space=vmem, size = 0x400, scoped, tag = 'input window, operand 5, single buffered']
    #allocation5 [shape = 's32[1]{0}', space=sflag, size = 0x4, scoped, tag = 'scoped memory for itransformer_forward.1']
    #allocation6 [shape = 'u8[2048]{0}', space=vmem, size = 0x800, scoped, tag = 'input window, operand 7, single buffered']
    #allocation7 [shape = 'u8[16384]{0}', space=vmem, size = 0x4000, scoped, tag = 'input window, operand 11, single buffered']
    #allocation8 [shape = 's32[1]{0}', space=sflag, size = 0x4, scoped, tag = 'scoped memory for itransformer_forward.1']
    #allocation9 [shape = 'u8[1024]{0}', space=vmem, size = 0x400, scoped, tag = 'input window, operand 12, single buffered']
    #allocation10 [shape = 'u8[16384]{0}', space=vmem, size = 0x4000, scoped, tag = 'input window, operand 13, single buffered']
    #allocation11 [shape = 's32[1]{0}', space=sflag, size = 0x4, scoped, tag = 'scoped memory for itransformer_forward.1']
    #allocation12 [shape = 'u8[4096]{0}', space=vmem, size = 0x1000, scoped, tag = 'input window, operand 14, single buffered']
    #allocation13 [shape = 'u8[2048]{0}', space=vmem, size = 0x800, scoped, tag = 'input window, operand 16, single buffered']
    #allocation14 [shape = 's32[1]{0}', space=sflag, size = 0x4, scoped, tag = 'scoped memory for itransformer_forward.1']
    #allocation15 [shape = 'u8[1024]{0}', space=vmem, size = 0x400, scoped, tag = 'input window, operand 18, single buffered']
    #allocation16 [shape = 'u8[8192]{0}', space=vmem, size = 0x2000, scoped, tag = 'input window, operand 19, single buffered']
    #allocation17 [shape = 's32[1]{0}', space=sflag, size = 0x4, scoped, tag = 'scoped memory for itransformer_forward.1']
    #allocation18 [shape = 'u8[512]{0}', space=vmem, size = 0x400, scoped, tag = 'input window, operand 20, single buffered']
    %26 = vsyncpa [#allocation3], 0
    %27 = vsyncpa [#allocation5], 0
    %28 = vsyncpa [#allocation8], 0
    %29 = vsyncpa [#allocation11], 0
    %30 = vsyncpa [#allocation14], 0
    %31 = vsyncpa [#allocation17], 0
    loop: start=0, step=1, limit=4
    $region2: #{itransformer_forward.1} parent=1 // loop_pre_header
      _
    $region3: #{itransformer_forward.1} parent=1 // loop_header
      %s33 = sphi 0, %s37
      %p34 = scmp.ge.s32.totalorder %s33, 4
      %s43 = sphi 0, %s45
      %s46 = sphi 0, %s43
      %s47 = sphi 0, %s46
      %s63 = sphi 0, %s47
      %s67 = sphi 0, %s67
      %s69 = sphi 0, %s67
      %s70 = sphi 0, %s69
      %s84 = sphi 0, %s70
      %s88 = sphi 0, %s88
      %s90 = sphi 0, %s88
      %s91 = sphi 0, %s90
      %s105 = sphi 0, %s91
      %s109 = sphi 0, %s109
      %s111 = sphi 0, %s109
      %s112 = sphi 0, %s111
      %s126 = sphi 0, %s112
      %s130 = sphi 0, %s130
      %s132 = sphi 0, %s130
      %s133 = sphi 0, %s132
      %s147 = sphi 0, %s133
      %s151 = sphi 0, %s151
      %s153 = sphi 0, %s151
      %s154 = sphi 0, %s153
      %s168 = sphi 0, %s154
      %s172 = sphi 0, %s172
      %s174 = sphi 0, %s172
      %s175 = sphi 0, %s174
      %s189 = sphi 0, %s175
      %s193 = sphi 0, %s193
      %s195 = sphi 0, %s193
      %s196 = sphi 0, %s195
      %s210 = sphi 0, %s196
      %s214 = sphi 0, %s214
      %s216 = sphi 0, %s214
      %s217 = sphi 0, %s216
      %s231 = sphi 0, %s217
      %s235 = sphi 0, %s235
      %s237 = sphi 0, %s235
      %s238 = sphi 0, %s237
      %s252 = sphi 0, %s238
      %s256 = sphi 0, %s256
      %s258 = sphi 0, %s256
      %s259 = sphi 0, %s258
      %s273 = sphi 0, %s259
      %s277 = sphi 0, %s277
      %s279 = sphi 0, %s277
      %s280 = sphi 0, %s279
      %s294 = sphi 0, %s280
      %s298 = sphi 0, %s298
      %s300 = sphi 0, %s298
      %s301 = sphi 0, %s300
      %s315 = sphi 0, %s301
      %s319 = sphi 0, %s319
      %s321 = sphi 0, %s319
      %s322 = sphi 0, %s321
      %s336 = sphi 0, %s322
      %s340 = sphi 0, %s340
      %s342 = sphi 0, %s340
      %s343 = sphi 0, %s342
      %s357 = sphi 0, %s343
      %s361 = sphi 0, %s361
      %s363 = sphi 0, %s361
      %s364 = sphi 0, %s363
      %s378 = sphi 0, %s364
      %s382 = sphi 0, %s382
      %s384 = sphi 0, %s382
      %s385 = sphi 0, %s384
      %s399 = sphi 0, %s385
      %s403 = sphi 0, %s403
      %s405 = sphi 0, %s403
      %s406 = sphi 0, %s405
      %s420 = sphi 0, %s406
      %s424 = sphi 0, %s424
      %s426 = sphi 0, %s424
      %s427 = sphi 0, %s426
      %s441 = sphi 0, %s427
      %s445 = sphi 0, %s445
      %s447 = sphi 0, %s445
      %s448 = sphi 0, %s447
      %s462 = sphi 0, %s448
      %s466 = sphi 0, %s466
      %s468 = sphi 0, %s466
      %s469 = sphi 0, %s468
      %s483 = sphi 0, %s469
      %s489 = sphi 0, %s491
      %s492 = sphi 0, %s489
      %s493 = sphi 0, %s492
      %s509 = sphi 0, %s493
    $region4: #{itransformer_forward.1} parent=1 // loop_header_branch
      %36 = sbr.rel (%p34) target = $region8
    $region5: #{itransformer_forward.1} parent=1 // loop_body
      %s38 = ssub.s32 %s33, 1
      %s39 = ssub.s32 %s33, 2
      %s40 = sadd.s32 %s33, 1
      %s41 = ssub.s32 %s33, %s40
      %p42 = scmp.eq.s32.totalorder %s41, 0
      %s44 = sadd.s32 %s43, 1
      %s45 = scalar_select %p42, %s43, %s44
      %p48 = pneg %p42
      %p49 = scmp.eq.s32.totalorder %s33, 1
      %p50 = por %p48, %p49
      %p51 = scmp.ne.s32.totalorder %s43, %s46
      %p52 = scmp.eq.s32.totalorder %s33, 0
      %p53 = por %p51, %p52
      %p54 = scmp.ne.s32.totalorder %s43, %s46
      %p55 = scmp.eq.s32.totalorder %s38, 1
      %p56 = por %p54, %p55
      %p57 = scmp.ne.s32.totalorder %s46, %s47
      %p58 = scmp.eq.s32.totalorder %s38, 0
      %p59 = por %p57, %p58
      %p60 = scmp.ne.s32.totalorder %s46, %s47
      %p61 = scmp.eq.s32.totalorder %s39, 1
      %p62 = por %p60, %p61
      %p64 = scmp.ne.s32.totalorder %s47, %s63
      %p65 = scmp.eq.s32.totalorder %s39, 0
      %p66 = por %p64, %p65
      %s68 = sadd.s32 %s67, 1
      %p71 = scmp.eq.s32.totalorder %s33, 1
      %p72 = scmp.ne.s32.totalorder %s67, %s69
      %p73 = scmp.eq.s32.totalorder %s33, 0
      %p74 = por %p72, %p73
      %p75 = scmp.ne.s32.totalorder %s67, %s69
      %p76 = scmp.eq.s32.totalorder %s38, 1
      %p77 = por %p75, %p76
      %p78 = scmp.ne.s32.totalorder %s69, %s70
      %p79 = scmp.eq.s32.totalorder %s38, 0
      %p80 = por %p78, %p79
      %p81 = scmp.ne.s32.totalorder %s69, %s70
      %p82 = scmp.eq.s32.totalorder %s39, 1
      %p83 = por %p81, %p82
      %p85 = scmp.ne.s32.totalorder %s70, %s84
      %p86 = scmp.eq.s32.totalorder %s39, 0
      %p87 = por %p85, %p86
      %s89 = sadd.s32 %s88, 1
      %p92 = scmp.eq.s32.totalorder %s33, 1
      %p93 = scmp.ne.s32.totalorder %s88, %s90
      %p94 = scmp.eq.s32.totalorder %s33, 0
      %p95 = por %p93, %p94
      %p96 = scmp.ne.s32.totalorder %s88, %s90
      %p97 = scmp.eq.s32.totalorder %s38, 1
      %p98 = por %p96, %p97
      %p99 = scmp.ne.s32.totalorder %s90, %s91
      %p100 = scmp.eq.s32.totalorder %s38, 0
      %p101 = por %p99, %p100
      %p102 = scmp.ne.s32.totalorder %s90, %s91
      %p103 = scmp.eq.s32.totalorder %s39, 1
      %p104 = por %p102, %p103
      %p106 = scmp.ne.s32.totalorder %s91, %s105
      %p107 = scmp.eq.s32.totalorder %s39, 0
      %p108 = por %p106, %p107
      %s110 = sadd.s32 %s109, 1
      %p113 = scmp.eq.s32.totalorder %s33, 1
      %p114 = scmp.ne.s32.totalorder %s109, %s111
      %p115 = scmp.eq.s32.totalorder %s33, 0
      %p116 = por %p114, %p115
      %p117 = scmp.ne.s32.totalorder %s109, %s111
      %p118 = scmp.eq.s32.totalorder %s38, 1
      %p119 = por %p117, %p118
      %p120 = scmp.ne.s32.totalorder %s111, %s112
      %p121 = scmp.eq.s32.totalorder %s38, 0
      %p122 = por %p120, %p121
      %p123 = scmp.ne.s32.totalorder %s111, %s112
      %p124 = scmp.eq.s32.totalorder %s39, 1
      %p125 = por %p123, %p124
      %p127 = scmp.ne.s32.totalorder %s112, %s126
      %p128 = scmp.eq.s32.totalorder %s39, 0
      %p129 = por %p127, %p128
      %s131 = sadd.s32 %s130, 1
      %p134 = scmp.eq.s32.totalorder %s33, 1
      %p135 = scmp.ne.s32.totalorder %s130, %s132
      %p136 = scmp.eq.s32.totalorder %s33, 0
      %p137 = por %p135, %p136
      %p138 = scmp.ne.s32.totalorder %s130, %s132
      %p139 = scmp.eq.s32.totalorder %s38, 1
      %p140 = por %p138, %p139
      %p141 = scmp.ne.s32.totalorder %s132, %s133
      %p142 = scmp.eq.s32.totalorder %s38, 0
      %p143 = por %p141, %p142
      %p144 = scmp.ne.s32.totalorder %s132, %s133
      %p145 = scmp.eq.s32.totalorder %s39, 1
      %p146 = por %p144, %p145
      %p148 = scmp.ne.s32.totalorder %s133, %s147
      %p149 = scmp.eq.s32.totalorder %s39, 0
      %p150 = por %p148, %p149
      %s152 = sadd.s32 %s151, 1
      %p155 = scmp.eq.s32.totalorder %s33, 1
      %p156 = scmp.ne.s32.totalorder %s151, %s153
      %p157 = scmp.eq.s32.totalorder %s33, 0
      %p158 = por %p156, %p157
      %p159 = scmp.ne.s32.totalorder %s151, %s153
      %p160 = scmp.eq.s32.totalorder %s38, 1
      %p161 = por %p159, %p160
      %p162 = scmp.ne.s32.totalorder %s153, %s154
      %p163 = scmp.eq.s32.totalorder %s38, 0
      %p164 = por %p162, %p163
      %p165 = scmp.ne.s32.totalorder %s153, %s154
      %p166 = scmp.eq.s32.totalorder %s39, 1
      %p167 = por %p165, %p166
      %p169 = scmp.ne.s32.totalorder %s154, %s168
      %p170 = scmp.eq.s32.totalorder %s39, 0
      %p171 = por %p169, %p170
      %s173 = sadd.s32 %s172, 1
      %p176 = scmp.eq.s32.totalorder %s33, 1
      %p177 = scmp.ne.s32.totalorder %s172, %s174
      %p178 = scmp.eq.s32.totalorder %s33, 0
      %p179 = por %p177, %p178
      %p180 = scmp.ne.s32.totalorder %s172, %s174
      %p181 = scmp.eq.s32.totalorder %s38, 1
      %p182 = por %p180, %p181
      %p183 = scmp.ne.s32.totalorder %s174, %s175
      %p184 = scmp.eq.s32.totalorder %s38, 0
      %p185 = por %p183, %p184
      %p186 = scmp.ne.s32.totalorder %s174, %s175
      %p187 = scmp.eq.s32.totalorder %s39, 1
      %p188 = por %p186, %p187
      %p190 = scmp.ne.s32.totalorder %s175, %s189
      %p191 = scmp.eq.s32.totalorder %s39, 0
      %p192 = por %p190, %p191
      %s194 = sadd.s32 %s193, 1
      %p197 = scmp.eq.s32.totalorder %s33, 1
      %p198 = scmp.ne.s32.totalorder %s193, %s195
      %p199 = scmp.eq.s32.totalorder %s33, 0
      %p200 = por %p198, %p199
      %p201 = scmp.ne.s32.totalorder %s193, %s195
      %p202 = scmp.eq.s32.totalorder %s38, 1
      %p203 = por %p201, %p202
      %p204 = scmp.ne.s32.totalorder %s195, %s196
      %p205 = scmp.eq.s32.totalorder %s38, 0
      %p206 = por %p204, %p205
      %p207 = scmp.ne.s32.totalorder %s195, %s196
      %p208 = scmp.eq.s32.totalorder %s39, 1
      %p209 = por %p207, %p208
      %p211 = scmp.ne.s32.totalorder %s196, %s210
      %p212 = scmp.eq.s32.totalorder %s39, 0
      %p213 = por %p211, %p212
      %s215 = sadd.s32 %s214, 1
      %p218 = scmp.eq.s32.totalorder %s33, 1
      %p219 = scmp.ne.s32.totalorder %s214, %s216
      %p220 = scmp.eq.s32.totalorder %s33, 0
      %p221 = por %p219, %p220
      %p222 = scmp.ne.s32.totalorder %s214, %s216
      %p223 = scmp.eq.s32.totalorder %s38, 1
      %p224 = por %p222, %p223
      %p225 = scmp.ne.s32.totalorder %s216, %s217
      %p226 = scmp.eq.s32.totalorder %s38, 0
      %p227 = por %p225, %p226
      %p228 = scmp.ne.s32.totalorder %s216, %s217
      %p229 = scmp.eq.s32.totalorder %s39, 1
      %p230 = por %p228, %p229
      %p232 = scmp.ne.s32.totalorder %s217, %s231
      %p233 = scmp.eq.s32.totalorder %s39, 0
      %p234 = por %p232, %p233
      %s236 = sadd.s32 %s235, 1
      %p239 = scmp.eq.s32.totalorder %s33, 1
      %p240 = scmp.ne.s32.totalorder %s235, %s237
      %p241 = scmp.eq.s32.totalorder %s33, 0
      %p242 = por %p240, %p241
      %p243 = scmp.ne.s32.totalorder %s235, %s237
      %p244 = scmp.eq.s32.totalorder %s38, 1
      %p245 = por %p243, %p244
      %p246 = scmp.ne.s32.totalorder %s237, %s238
      %p247 = scmp.eq.s32.totalorder %s38, 0
      %p248 = por %p246, %p247
      %p249 = scmp.ne.s32.totalorder %s237, %s238
      %p250 = scmp.eq.s32.totalorder %s39, 1
      %p251 = por %p249, %p250
      %p253 = scmp.ne.s32.totalorder %s238, %s252
      %p254 = scmp.eq.s32.totalorder %s39, 0
      %p255 = por %p253, %p254
      %s257 = sadd.s32 %s256, 1
      %p260 = scmp.eq.s32.totalorder %s33, 1
      %p261 = scmp.ne.s32.totalorder %s256, %s258
      %p262 = scmp.eq.s32.totalorder %s33, 0
      %p263 = por %p261, %p262
      %p264 = scmp.ne.s32.totalorder %s256, %s258
      %p265 = scmp.eq.s32.totalorder %s38, 1
      %p266 = por %p264, %p265
      %p267 = scmp.ne.s32.totalorder %s258, %s259
      %p268 = scmp.eq.s32.totalorder %s38, 0
      %p269 = por %p267, %p268
      %p270 = scmp.ne.s32.totalorder %s258, %s259
      %p271 = scmp.eq.s32.totalorder %s39, 1
      %p272 = por %p270, %p271
      %p274 = scmp.ne.s32.totalorder %s259, %s273
      %p275 = scmp.eq.s32.totalorder %s39, 0
      %p276 = por %p274, %p275
      %s278 = sadd.s32 %s277, 1
      %p281 = scmp.eq.s32.totalorder %s33, 1
      %p282 = scmp.ne.s32.totalorder %s277, %s279
      %p283 = scmp.eq.s32.totalorder %s33, 0
      %p284 = por %p282, %p283
      %p285 = scmp.ne.s32.totalorder %s277, %s279
      %p286 = scmp.eq.s32.totalorder %s38, 1
      %p287 = por %p285, %p286
      %p288 = scmp.ne.s32.totalorder %s279, %s280
      %p289 = scmp.eq.s32.totalorder %s38, 0
      %p290 = por %p288, %p289
      %p291 = scmp.ne.s32.totalorder %s279, %s280
      %p292 = scmp.eq.s32.totalorder %s39, 1
      %p293 = por %p291, %p292
      %p295 = scmp.ne.s32.totalorder %s280, %s294
      %p296 = scmp.eq.s32.totalorder %s39, 0
      %p297 = por %p295, %p296
      %s299 = sadd.s32 %s298, 1
      %p302 = scmp.eq.s32.totalorder %s33, 1
      %p303 = scmp.ne.s32.totalorder %s298, %s300
      %p304 = scmp.eq.s32.totalorder %s33, 0
      %p305 = por %p303, %p304
      %p306 = scmp.ne.s32.totalorder %s298, %s300
      %p307 = scmp.eq.s32.totalorder %s38, 1
      %p308 = por %p306, %p307
      %p309 = scmp.ne.s32.totalorder %s300, %s301
      %p310 = scmp.eq.s32.totalorder %s38, 0
      %p311 = por %p309, %p310
      %p312 = scmp.ne.s32.totalorder %s300, %s301
      %p313 = scmp.eq.s32.totalorder %s39, 1
      %p314 = por %p312, %p313
      %p316 = scmp.ne.s32.totalorder %s301, %s315
      %p317 = scmp.eq.s32.totalorder %s39, 0
      %p318 = por %p316, %p317
      %s320 = sadd.s32 %s319, 1
      %p323 = scmp.eq.s32.totalorder %s33, 1
      %p324 = scmp.ne.s32.totalorder %s319, %s321
      %p325 = scmp.eq.s32.totalorder %s33, 0
      %p326 = por %p324, %p325
      %p327 = scmp.ne.s32.totalorder %s319, %s321
      %p328 = scmp.eq.s32.totalorder %s38, 1
      %p329 = por %p327, %p328
      %p330 = scmp.ne.s32.totalorder %s321, %s322
      %p331 = scmp.eq.s32.totalorder %s38, 0
      %p332 = por %p330, %p331
      %p333 = scmp.ne.s32.totalorder %s321, %s322
      %p334 = scmp.eq.s32.totalorder %s39, 1
      %p335 = por %p333, %p334
      %p337 = scmp.ne.s32.totalorder %s322, %s336
      %p338 = scmp.eq.s32.totalorder %s39, 0
      %p339 = por %p337, %p338
      %s341 = sadd.s32 %s340, 1
      %p344 = scmp.eq.s32.totalorder %s33, 1
      %p345 = scmp.ne.s32.totalorder %s340, %s342
      %p346 = scmp.eq.s32.totalorder %s33, 0
      %p347 = por %p345, %p346
      %p348 = scmp.ne.s32.totalorder %s340, %s342
      %p349 = scmp.eq.s32.totalorder %s38, 1
      %p350 = por %p348, %p349
      %p351 = scmp.ne.s32.totalorder %s342, %s343
      %p352 = scmp.eq.s32.totalorder %s38, 0
      %p353 = por %p351, %p352
      %p354 = scmp.ne.s32.totalorder %s342, %s343
      %p355 = scmp.eq.s32.totalorder %s39, 1
      %p356 = por %p354, %p355
      %p358 = scmp.ne.s32.totalorder %s343, %s357
      %p359 = scmp.eq.s32.totalorder %s39, 0
      %p360 = por %p358, %p359
      %s362 = sadd.s32 %s361, 1
      %p365 = scmp.eq.s32.totalorder %s33, 1
      %p366 = scmp.ne.s32.totalorder %s361, %s363
      %p367 = scmp.eq.s32.totalorder %s33, 0
      %p368 = por %p366, %p367
      %p369 = scmp.ne.s32.totalorder %s361, %s363
      %p370 = scmp.eq.s32.totalorder %s38, 1
      %p371 = por %p369, %p370
      %p372 = scmp.ne.s32.totalorder %s363, %s364
      %p373 = scmp.eq.s32.totalorder %s38, 0
      %p374 = por %p372, %p373
      %p375 = scmp.ne.s32.totalorder %s363, %s364
      %p376 = scmp.eq.s32.totalorder %s39, 1
      %p377 = por %p375, %p376
      %p379 = scmp.ne.s32.totalorder %s364, %s378
      %p380 = scmp.eq.s32.totalorder %s39, 0
      %p381 = por %p379, %p380
      %s383 = sadd.s32 %s382, 1
      %p386 = scmp.eq.s32.totalorder %s33, 1
      %p387 = scmp.ne.s32.totalorder %s382, %s384
      %p388 = scmp.eq.s32.totalorder %s33, 0
      %p389 = por %p387, %p388
      %p390 = scmp.ne.s32.totalorder %s382, %s384
      %p391 = scmp.eq.s32.totalorder %s38, 1
      %p392 = por %p390, %p391
      %p393 = scmp.ne.s32.totalorder %s384, %s385
      %p394 = scmp.eq.s32.totalorder %s38, 0
      %p395 = por %p393, %p394
      %p396 = scmp.ne.s32.totalorder %s384, %s385
      %p397 = scmp.eq.s32.totalorder %s39, 1
      %p398 = por %p396, %p397
      %p400 = scmp.ne.s32.totalorder %s385, %s399
      %p401 = scmp.eq.s32.totalorder %s39, 0
      %p402 = por %p400, %p401
      %s404 = sadd.s32 %s403, 1
      %p407 = scmp.eq.s32.totalorder %s33, 1
      %p408 = scmp.ne.s32.totalorder %s403, %s405
      %p409 = scmp.eq.s32.totalorder %s33, 0
      %p410 = por %p408, %p409
      %p411 = scmp.ne.s32.totalorder %s403, %s405
      %p412 = scmp.eq.s32.totalorder %s38, 1
      %p413 = por %p411, %p412
      %p414 = scmp.ne.s32.totalorder %s405, %s406
      %p415 = scmp.eq.s32.totalorder %s38, 0
      %p416 = por %p414, %p415
      %p417 = scmp.ne.s32.totalorder %s405, %s406
      %p418 = scmp.eq.s32.totalorder %s39, 1
      %p419 = por %p417, %p418
      %p421 = scmp.ne.s32.totalorder %s406, %s420
      %p422 = scmp.eq.s32.totalorder %s39, 0
      %p423 = por %p421, %p422
      %s425 = sadd.s32 %s424, 1
      %p428 = scmp.eq.s32.totalorder %s33, 1
      %p429 = scmp.ne.s32.totalorder %s424, %s426
      %p430 = scmp.eq.s32.totalorder %s33, 0
      %p431 = por %p429, %p430
      %p432 = scmp.ne.s32.totalorder %s424, %s426
      %p433 = scmp.eq.s32.totalorder %s38, 1
      %p434 = por %p432, %p433
      %p435 = scmp.ne.s32.totalorder %s426, %s427
      %p436 = scmp.eq.s32.totalorder %s38, 0
      %p437 = por %p435, %p436
      %p438 = scmp.ne.s32.totalorder %s426, %s427
      %p439 = scmp.eq.s32.totalorder %s39, 1
      %p440 = por %p438, %p439
      %p442 = scmp.ne.s32.totalorder %s427, %s441
      %p443 = scmp.eq.s32.totalorder %s39, 0
      %p444 = por %p442, %p443
      %s446 = sadd.s32 %s445, 1
      %p449 = scmp.eq.s32.totalorder %s33, 1
      %p450 = scmp.ne.s32.totalorder %s445, %s447
      %p451 = scmp.eq.s32.totalorder %s33, 0
      %p452 = por %p450, %p451
      %p453 = scmp.ne.s32.totalorder %s445, %s447
      %p454 = scmp.eq.s32.totalorder %s38, 1
      %p455 = por %p453, %p454
      %p456 = scmp.ne.s32.totalorder %s447, %s448
      %p457 = scmp.eq.s32.totalorder %s38, 0
      %p458 = por %p456, %p457
      %p459 = scmp.ne.s32.totalorder %s447, %s448
      %p460 = scmp.eq.s32.totalorder %s39, 1
      %p461 = por %p459, %p460
      %p463 = scmp.ne.s32.totalorder %s448, %s462
      %p464 = scmp.eq.s32.totalorder %s39, 0
      %p465 = por %p463, %p464
      %s467 = sadd.s32 %s466, 1
      %p470 = scmp.eq.s32.totalorder %s33, 1
      %p471 = scmp.ne.s32.totalorder %s466, %s468
      %p472 = scmp.eq.s32.totalorder %s33, 0
      %p473 = por %p471, %p472
      %p474 = scmp.ne.s32.totalorder %s466, %s468
      %p475 = scmp.eq.s32.totalorder %s38, 1
      %p476 = por %p474, %p475
      %p477 = scmp.ne.s32.totalorder %s468, %s469
      %p478 = scmp.eq.s32.totalorder %s38, 0
      %p479 = por %p477, %p478
      %p480 = scmp.ne.s32.totalorder %s468, %s469
      %p481 = scmp.eq.s32.totalorder %s39, 1
      %p482 = por %p480, %p481
      %p484 = scmp.ne.s32.totalorder %s469, %s483
      %p485 = scmp.eq.s32.totalorder %s39, 0
      %p486 = por %p484, %p485
      %s487 = ssub.s32 %s33, %s40
      %p488 = scmp.eq.s32.totalorder %s487, 0
      %s490 = sadd.s32 %s489, 1
      %s491 = scalar_select %p488, %s489, %s490
      %p494 = pneg %p488
      %p495 = scmp.eq.s32.totalorder %s33, 1
      %p496 = por %p494, %p495
      %p497 = scmp.ne.s32.totalorder %s489, %s492
      %p498 = scmp.eq.s32.totalorder %s33, 0
      %p499 = por %p497, %p498
      %p500 = scmp.ne.s32.totalorder %s489, %s492
      %p501 = scmp.eq.s32.totalorder %s38, 1
      %p502 = por %p500, %p501
      %p503 = scmp.ne.s32.totalorder %s492, %s493
      %p504 = scmp.eq.s32.totalorder %s38, 0
      %p505 = por %p503, %p504
      %p506 = scmp.ne.s32.totalorder %s492, %s493
      %p507 = scmp.eq.s32.totalorder %s39, 1
      %p508 = por %p506, %p507
      %p510 = scmp.ne.s32.totalorder %s493, %s509
      %p511 = scmp.eq.s32.totalorder %s39, 0
      %p512 = por %p510, %p511
      %p513 = scmp.le.s32.totalorder 1, %s33
      %p514 = scmp.lt.s32.totalorder %s33, 3
      %p515 = pnand %p513, %p514
      %p516 = pneg %p515
      // Predicated region
      $region9: #{itransformer_forward.1} parent=5 // pred_check
        _
      $region10: #{itransformer_forward.1} parent=5 // pred_check_branch
        %518 = sbr.rel (%p515) target = $region12
      $region11: #{itransformer_forward.1} parent=5 // pred_region
        %s519 = ssub.s32 %s33, 1
        // Predicated region
        $region13: #{itransformer_forward.1} parent=11 // pred_check
          %p520 = pneg %p80
        $region14: #{itransformer_forward.1} parent=11 // pred_check_branch
          %522 = sbr.rel (%p520) target = $region16
        $region15: #{itransformer_forward.1} parent=11 // pred_region
          _
        $region16: #{itransformer_forward.1} parent=11 // pred_fallthru
          _
        // Predicated region
        $region17: #{itransformer_forward.1} parent=11 // pred_check
          %p523 = pneg %p101
        $region18: #{itransformer_forward.1} parent=11 // pred_check_branch
          %525 = sbr.rel (%p523) target = $region20
        $region19: #{itransformer_forward.1} parent=11 // pred_region
          %527 = vsyncadd [#allocation3], 0
          %s529 = sshll.u32 %s2, 4
          %s530 = int_to_ptr.hbm [resolvable:$true] %s529
          %s531 = sshll.u32 [#allocation2], 4
          %s532 = int_to_ptr.vmem [resolvable:$true] %s531
          %534 = dma.hbm_to_vmem [thread:$0]  %s530, 64, %s532, [#allocation3]
        $region20: #{itransformer_forward.1} parent=11 // pred_fallthru
          _
        // Predicated region
        $region21: #{itransformer_forward.1} parent=11 // pred_check
          %p535 = pneg %p122
        $region22: #{itransformer_forward.1} parent=11 // pred_check_branch
          %537 = sbr.rel (%p535) target = $region24
        $region23: #{itransformer_forward.1} parent=11 // pred_region
          _
        $region24: #{itransformer_forward.1} parent=11 // pred_fallthru
          _
        // Predicated region
        $region25: #{itransformer_forward.1} parent=11 // pred_check
          %p538 = pneg %p143
        $region26: #{itransformer_forward.1} parent=11 // pred_check_branch
          %540 = sbr.rel (%p538) target = $region28
        $region27: #{itransformer_forward.1} parent=11 // pred_region
          _
        $region28: #{itransformer_forward.1} parent=11 // pred_fallthru
          _
        // Predicated region
        $region29: #{itransformer_forward.1} parent=11 // pred_check
          %p541 = pneg %p164
        $region30: #{itransformer_forward.1} parent=11 // pred_check_branch
          %543 = sbr.rel (%p541) target = $region32
        $region31: #{itransformer_forward.1} parent=11 // pred_region
          %545 = vsyncadd [#allocation5], 0
          %s547 = sshll.u32 %s5, 4
          %s548 = int_to_ptr.hbm [resolvable:$true] %s547
          %s549 = sshll.u32 [#allocation4], 4
          %s550 = int_to_ptr.vmem [resolvable:$true] %s549
          %552 = dma.hbm_to_vmem [thread:$0]  %s548, 16, %s550, [#allocation5]
        $region32: #{itransformer_forward.1} parent=11 // pred_fallthru
          _
        // Predicated region
        $region33: #{itransformer_forward.1} parent=11 // pred_check
          %p553 = pneg %p185
        $region34: #{itransformer_forward.1} parent=11 // pred_check_branch
          %555 = sbr.rel (%p553) target = $region36
        $region35: #{itransformer_forward.1} parent=11 // pred_region
          _
        $region36: #{itransformer_forward.1} parent=11 // pred_fallthru
          _
        // Predicated region
        $region37: #{itransformer_forward.1} parent=11 // pred_check
          %p556 = pneg %p206
        $region38: #{itransformer_forward.1} parent=11 // pred_check_branch
          %558 = sbr.rel (%p556) target = $region40
        $region39: #{itransformer_forward.1} parent=11 // pred_region
          %560 = vsyncadd [#allocation5], 0
          %s562 = sshll.u32 %s7, 4
          %s563 = int_to_ptr.hbm [resolvable:$true] %s562
          %s564 = sshll.u32 [#allocation6], 4
          %s565 = int_to_ptr.vmem [resolvable:$true] %s564
          %567 = dma.hbm_to_vmem [thread:$0]  %s563, 64, %s565, [#allocation5]
        $region40: #{itransformer_forward.1} parent=11 // pred_fallthru
          _
        // Predicated region
        $region41: #{itransformer_forward.1} parent=11 // pred_check
          %p568 = pneg %p227
        $region42: #{itransformer_forward.1} parent=11 // pred_check_branch
          %570 = sbr.rel (%p568) target = $region44
        $region43: #{itransformer_forward.1} parent=11 // pred_region
          _
        $region44: #{itransformer_forward.1} parent=11 // pred_fallthru
          _
        // Predicated region
        $region45: #{itransformer_forward.1} parent=11 // pred_check
          %p571 = pneg %p248
        $region46: #{itransformer_forward.1} parent=11 // pred_check_branch
          %573 = sbr.rel (%p571) target = $region48
        $region47: #{itransformer_forward.1} parent=11 // pred_region
          _
        $region48: #{itransformer_forward.1} parent=11 // pred_fallthru
          _
        // Predicated region
        $region49: #{itransformer_forward.1} parent=11 // pred_check
          %p574 = pneg %p269
        $region50: #{itransformer_forward.1} parent=11 // pred_check_branch
          %576 = sbr.rel (%p574) target = $region52
        $region51: #{itransformer_forward.1} parent=11 // pred_region
          _
        $region52: #{itransformer_forward.1} parent=11 // pred_fallthru
          _
        // Predicated region
        $region53: #{itransformer_forward.1} parent=11 // pred_check
          %p577 = pneg %p290
        $region54: #{itransformer_forward.1} parent=11 // pred_check_branch
          %579 = sbr.rel (%p577) target = $region56
        $region55: #{itransformer_forward.1} parent=11 // pred_region
          %581 = vsyncadd [#allocation8], 0
          %s582 = sshll.u32 %s11, 4
          %s583 = int_to_ptr.hbm [resolvable:$true] %s582
          %s584 = sshll.u32 [#allocation7], 4
          %s585 = int_to_ptr.vmem [resolvable:$true] %s584
          %590 = dma.hbm_to_vmem [thread:$0]  %s583, 512, %s585, [#allocation8], 64, 64, 4
        $region56: #{itransformer_forward.1} parent=11 // pred_fallthru
          _
        // Predicated region
        $region57: #{itransformer_forward.1} parent=11 // pred_check
          %p591 = pneg %p311
        $region58: #{itransformer_forward.1} parent=11 // pred_check_branch
          %593 = sbr.rel (%p591) target = $region60
        $region59: #{itransformer_forward.1} parent=11 // pred_region
          %595 = vsyncadd [#allocation8], 0
          %s596 = sshll.u32 %s12, 4
          %s597 = int_to_ptr.hbm [resolvable:$true] %s596
          %s598 = sshll.u32 [#allocation9], 4
          %s599 = int_to_ptr.vmem [resolvable:$true] %s598
          %604 = dma.hbm_to_vmem [thread:$0]  %s597, 32, %s599, [#allocation8], 16, 16, 1
        $region60: #{itransformer_forward.1} parent=11 // pred_fallthru
          _
        // Predicated region
        $region61: #{itransformer_forward.1} parent=11 // pred_check
          %p605 = pneg %p332
        $region62: #{itransformer_forward.1} parent=11 // pred_check_branch
          %607 = sbr.rel (%p605) target = $region64
        $region63: #{itransformer_forward.1} parent=11 // pred_region
          %609 = vsyncadd [#allocation11], 0
          %s610 = sshll.u32 %s13, 4
          %s611 = int_to_ptr.hbm [resolvable:$true] %s610
          %s612 = sshll.u32 [#allocation10], 4
          %s613 = int_to_ptr.vmem [resolvable:$true] %s612
          %618 = dma.hbm_to_vmem [thread:$0]  %s611, 512, %s613, [#allocation11], 64, 64, 4
        $region64: #{itransformer_forward.1} parent=11 // pred_fallthru
          _
        // Predicated region
        $region65: #{itransformer_forward.1} parent=11 // pred_check
          %p619 = pneg %p353
        $region66: #{itransformer_forward.1} parent=11 // pred_check_branch
          %621 = sbr.rel (%p619) target = $region68
        $region67: #{itransformer_forward.1} parent=11 // pred_region
          %623 = vsyncadd [#allocation11], 0
          %s624 = sshll.u32 %s14, 4
          %s625 = int_to_ptr.hbm [resolvable:$true] %s624
          %s626 = sshll.u32 [#allocation12], 4
          %s627 = int_to_ptr.vmem [resolvable:$true] %s626
          %632 = dma.hbm_to_vmem [thread:$0]  %s625, 128, %s627, [#allocation11], 64, 64, 4
        $region68: #{itransformer_forward.1} parent=11 // pred_fallthru
          _
        // Predicated region
        $region69: #{itransformer_forward.1} parent=11 // pred_check
          %p633 = pneg %p374
        $region70: #{itransformer_forward.1} parent=11 // pred_check_branch
          %635 = sbr.rel (%p633) target = $region72
        $region71: #{itransformer_forward.1} parent=11 // pred_region
          _
        $region72: #{itransformer_forward.1} parent=11 // pred_fallthru
          _
        // Predicated region
        $region73: #{itransformer_forward.1} parent=11 // pred_check
          %p636 = pneg %p395
        $region74: #{itransformer_forward.1} parent=11 // pred_check_branch
          %638 = sbr.rel (%p636) target = $region76
        $region75: #{itransformer_forward.1} parent=11 // pred_region
          %640 = vsyncadd [#allocation14], 0
          %s641 = sshll.u32 %s16, 4
          %s642 = int_to_ptr.hbm [resolvable:$true] %s641
          %s643 = sshll.u32 [#allocation13], 4
          %s644 = int_to_ptr.vmem [resolvable:$true] %s643
          %649 = dma.hbm_to_vmem [thread:$0]  %s642, 64, %s644, [#allocation14], 32, 32, 2
        $region76: #{itransformer_forward.1} parent=11 // pred_fallthru
          _
        // Predicated region
        $region77: #{itransformer_forward.1} parent=11 // pred_check
          %p650 = pneg %p416
        $region78: #{itransformer_forward.1} parent=11 // pred_check_branch
          %652 = sbr.rel (%p650) target = $region80
        $region79: #{itransformer_forward.1} parent=11 // pred_region
          _
        $region80: #{itransformer_forward.1} parent=11 // pred_fallthru
          _
        // Predicated region
        $region81: #{itransformer_forward.1} parent=11 // pred_check
          %p653 = pneg %p437
        $region82: #{itransformer_forward.1} parent=11 // pred_check_branch
          %655 = sbr.rel (%p653) target = $region84
        $region83: #{itransformer_forward.1} parent=11 // pred_region
          %657 = vsyncadd [#allocation14], 0
          %s658 = sshll.u32 %s18, 4
          %s659 = int_to_ptr.hbm [resolvable:$true] %s658
          %s660 = sshll.u32 [#allocation15], 4
          %s661 = int_to_ptr.vmem [resolvable:$true] %s660
          %666 = dma.hbm_to_vmem [thread:$0]  %s659, 32, %s661, [#allocation14], 16, 16, 1
        $region84: #{itransformer_forward.1} parent=11 // pred_fallthru
          _
        // Predicated region
        $region85: #{itransformer_forward.1} parent=11 // pred_check
          %p667 = pneg %p458
        $region86: #{itransformer_forward.1} parent=11 // pred_check_branch
          %669 = sbr.rel (%p667) target = $region88
        $region87: #{itransformer_forward.1} parent=11 // pred_region
          %671 = vsyncadd [#allocation17], 0
          %s672 = sshll.u32 %s19, 4
          %s673 = int_to_ptr.hbm [resolvable:$true] %s672
          %s674 = sshll.u32 [#allocation16], 4
          %s675 = int_to_ptr.vmem [resolvable:$true] %s674
          %680 = dma.hbm_to_vmem [thread:$0]  %s673, 256, %s675, [#allocation17], 64, 64, 4
        $region88: #{itransformer_forward.1} parent=11 // pred_fallthru
          _
        // Predicated region
        $region89: #{itransformer_forward.1} parent=11 // pred_check
          %p681 = pneg %p479
        $region90: #{itransformer_forward.1} parent=11 // pred_check_branch
          %683 = sbr.rel (%p681) target = $region92
        $region91: #{itransformer_forward.1} parent=11 // pred_region
          %685 = vsyncadd [#allocation17], 0
          %s687 = sshll.u32 %s20, 4
          %s688 = int_to_ptr.hbm [resolvable:$true] %s687
          %s689 = sshll.u32 [#allocation18], 4
          %s690 = int_to_ptr.vmem [resolvable:$true] %s689
          %692 = dma.hbm_to_vmem [thread:$0]  %s688, 16, %s690, [#allocation17]
        $region92: #{itransformer_forward.1} parent=11 // pred_fallthru
          _
      $region12: #{itransformer_forward.1} parent=5 // pred_fallthru
        _
      %p693 = scmp.lt.s32.totalorder %s33, 2
      // Predicated region
      $region93: #{itransformer_forward.1} parent=5 // pred_check
        %p694 = pneg %p693
      $region94: #{itransformer_forward.1} parent=5 // pred_check_branch
        %696 = sbr.rel (%p694) target = $region96
      $region95: #{itransformer_forward.1} parent=5 // pred_region
        // Predicated region
        $region97: #{itransformer_forward.1} parent=95 // pred_check
          %p697 = pneg %p53
        $region98: #{itransformer_forward.1} parent=95 // pred_check_branch
          %699 = sbr.rel (%p697) target = $region100
        $region99: #{itransformer_forward.1} parent=95 // pred_region
          %p700 = scmp.lt.s32.totalorder %s33, 1
          %s701 = scalar_select %p700, %s33, 1
          %s702 = smul.addr %s701, 4
          %s703 = scalar_lea.vmem %s0, %s702
        $region100: #{itransformer_forward.1} parent=95 // pred_fallthru
          _
      $region96: #{itransformer_forward.1} parent=5 // pred_fallthru
        _
      %p704 = scmp.le.s32.totalorder 1, %s33
      %p705 = scmp.lt.s32.totalorder %s33, 3
      %p706 = pnand %p704, %p705
      %p707 = pneg %p706
      // Predicated region
      $region101: #{itransformer_forward.1} parent=5 // pred_check
        _
      $region102: #{itransformer_forward.1} parent=5 // pred_check_branch
        %709 = sbr.rel (%p706) target = $region104
      $region103: #{itransformer_forward.1} parent=5 // pred_region
        %s710 = ssub.s32 %s33, 1
        // Predicated region
        $region105: #{itransformer_forward.1} parent=103 // pred_check
          %p711 = pneg %p101
        $region106: #{itransformer_forward.1} parent=103 // pred_check_branch
          %713 = sbr.rel (%p711) target = $region108
        $region107: #{itransformer_forward.1} parent=103 // pred_region
          %715 = dma.done [#allocation3], 64
        $region108: #{itransformer_forward.1} parent=103 // pred_fallthru
          _
        // Predicated region
        $region109: #{itransformer_forward.1} parent=103 // pred_check
          %p716 = pneg %p164
        $region110: #{itransformer_forward.1} parent=103 // pred_check_branch
          %718 = sbr.rel (%p716) target = $region112
        $region111: #{itransformer_forward.1} parent=103 // pred_region
          %720 = dma.done [#allocation5], 16
        $region112: #{itransformer_forward.1} parent=103 // pred_fallthru
          _
        // Predicated region
        $region113: #{itransformer_forward.1} parent=103 // pred_check
          %p721 = pneg %p206
        $region114: #{itransformer_forward.1} parent=103 // pred_check_branch
          %723 = sbr.rel (%p721) target = $region116
        $region115: #{itransformer_forward.1} parent=103 // pred_region
          %725 = dma.done [#allocation5], 64
        $region116: #{itransformer_forward.1} parent=103 // pred_fallthru
          _
        // Predicated region
        $region117: #{itransformer_forward.1} parent=103 // pred_check
          %p726 = pneg %p290
        $region118: #{itransformer_forward.1} parent=103 // pred_check_branch
          %728 = sbr.rel (%p726) target = $region120
        $region119: #{itransformer_forward.1} parent=103 // pred_region
          %730 = dma.done [#allocation8], 512
        $region120: #{itransformer_forward.1} parent=103 // pred_fallthru
          _
        // Predicated region
        $region121: #{itransformer_forward.1} parent=103 // pred_check
          %p731 = pneg %p311
        $region122: #{itransformer_forward.1} parent=103 // pred_check_branch
          %733 = sbr.rel (%p731) target = $region124
        $region123: #{itransformer_forward.1} parent=103 // pred_region
          %735 = dma.done [#allocation8], 32
        $region124: #{itransformer_forward.1} parent=103 // pred_fallthru
          _
        // Predicated region
        $region125: #{itransformer_forward.1} parent=103 // pred_check
          %p736 = pneg %p332
        $region126: #{itransformer_forward.1} parent=103 // pred_check_branch
          %738 = sbr.rel (%p736) target = $region128
        $region127: #{itransformer_forward.1} parent=103 // pred_region
          %740 = dma.done [#allocation11], 512
        $region128: #{itransformer_forward.1} parent=103 // pred_fallthru
          _
        // Predicated region
        $region129: #{itransformer_forward.1} parent=103 // pred_check
          %p741 = pneg %p353
        $region130: #{itransformer_forward.1} parent=103 // pred_check_branch
          %743 = sbr.rel (%p741) target = $region132
        $region131: #{itransformer_forward.1} parent=103 // pred_region
          %745 = dma.done [#allocation11], 128
        $region132: #{itransformer_forward.1} parent=103 // pred_fallthru
          _
        // Predicated region
        $region133: #{itransformer_forward.1} parent=103 // pred_check
          %p746 = pneg %p395
        $region134: #{itransformer_forward.1} parent=103 // pred_check_branch
          %748 = sbr.rel (%p746) target = $region136
        $region135: #{itransformer_forward.1} parent=103 // pred_region
          %750 = dma.done [#allocation14], 64
        $region136: #{itransformer_forward.1} parent=103 // pred_fallthru
          _
        // Predicated region
        $region137: #{itransformer_forward.1} parent=103 // pred_check
          %p751 = pneg %p437
        $region138: #{itransformer_forward.1} parent=103 // pred_check_branch
          %753 = sbr.rel (%p751) target = $region140
        $region139: #{itransformer_forward.1} parent=103 // pred_region
          %755 = dma.done [#allocation14], 32
        $region140: #{itransformer_forward.1} parent=103 // pred_fallthru
          _
        // Predicated region
        $region141: #{itransformer_forward.1} parent=103 // pred_check
          %p756 = pneg %p458
        $region142: #{itransformer_forward.1} parent=103 // pred_check_branch
          %758 = sbr.rel (%p756) target = $region144
        $region143: #{itransformer_forward.1} parent=103 // pred_region
          %760 = dma.done [#allocation17], 256
        $region144: #{itransformer_forward.1} parent=103 // pred_fallthru
          _
        // Predicated region
        $region145: #{itransformer_forward.1} parent=103 // pred_check
          %p761 = pneg %p479
        $region146: #{itransformer_forward.1} parent=103 // pred_check_branch
          %763 = sbr.rel (%p761) target = $region148
        $region147: #{itransformer_forward.1} parent=103 // pred_region
          %765 = dma.done [#allocation17], 16
        $region148: #{itransformer_forward.1} parent=103 // pred_fallthru
          _
        %p766 = scmp.lt.s32.totalorder %s38, 1
        %s767 = scalar_select %p766, %s38, 1
        %s768 = smul.addr %s767, 4
        %s769 = scalar_lea.vmem %s0, %s768
        %p770 = pneg %p59
        %p771 = pneg %p56
        %p772 = pneg %p80
        %p773 = pneg %p77
        %p774 = pneg %p101
        %p775 = pneg %p98
        %p776 = pneg %p122
        %p777 = pneg %p119
        %p778 = pneg %p143
        %p779 = pneg %p140
        %p780 = pneg %p164
        %p781 = pneg %p161
        %p782 = pneg %p185
        %p783 = pneg %p182
        %p784 = pneg %p206
        %p785 = pneg %p203
        %p786 = pneg %p227
        %p787 = pneg %p224
        %p788 = pneg %p248
        %p789 = pneg %p245
        %p790 = pneg %p269
        %p791 = pneg %p266
        %p792 = pneg %p290
        %p793 = pneg %p287
        %p794 = pneg %p311
        %p795 = pneg %p308
        %p796 = pneg %p332
        %p797 = pneg %p329
        %p798 = pneg %p353
        %p799 = pneg %p350
        %p800 = pneg %p374
        %p801 = pneg %p371
        %p802 = pneg %p395
        %p803 = pneg %p392
        %p804 = pneg %p416
        %p805 = pneg %p413
        %p806 = pneg %p437
        %p807 = pneg %p434
        %p808 = pneg %p458
        %p809 = pneg %p455
        %p810 = pneg %p479
        %p811 = pneg %p476
        %p812 = pneg %p505
        %p813 = pneg %p502
        %p814 = scmp.lt.s32.totalorder %s38, 1
        %s815 = scalar_select %p814, %s38, 1
        %s816 = smul.addr %s815, 8
        %s817 = scalar_lea.vmem %s21, %s816
        %p818 = scmp.lt.s32.totalorder %s38, 1
        %s819 = scalar_select %p818, %s38, 1
        %s820 = smul.addr %s819, 4
        %s821 = scalar_lea.vmem %s0, %s820
        %p822 = scmp.lt.s32.totalorder %s38, 1
        %s823 = scalar_select %p822, %s38, 1
        %s824 = smul.addr %s823, 8
        %s825 = scalar_lea.vmem %s21, %s824
        %v827 = vld [vmem:[%s821] sm:$0xf]
        %v828 = vld [vmem:[#allocation2] sm:$0xf]
        %v829 = vpack.c.bf16 %v827, %v827
        %v830 = vld [vmem:[%s3] sm:$0x1]
        %v832 = vperm.slane %v830, 0
        %vm834 = vcmask 64512
        %v836 = vsel %vm834, %v829, 0
        %vm838 = vcmask 1043456
        %v840 = vsel %vm838, %v828, 0
        %842 = vmatpush.bf16.msra.mxu0 0
        %843 = vmatpush.bf16.msra.mxu0 0
        %844 = vmatpush.bf16.msra.mxu0 0
        %845 = vmatpush.bf16.msra.mxu0 0
        %846 = vmatpush.bf16.msra.mxu0 0
        %847 = vmatpush.bf16.msra.mxu0 0
        %848 = vmatpush.bf16.msra.mxu0 0
        %849 = vmatpush.bf16.msra.mxu0 %v840
        %850 = vmatmul.bf16.gmra.mxu0 %v836
        %v851 = vpop.f32.mrf.mxu0
        %v852 = vadd.f32 %v832, %v851
        %v853 = vpop.f32.mrf.mxu0
        %854 = vdwg.mxu0
        %v855 = vld [vmem:[%s4] sm:$0x1]
        %v856 = vld [vmem:[#allocation4] sm:$0x1]
        %vm857 = vcmask 257024
        %v858 = vsel %vm857, %v852, 0.0
        %859 = vadd.xlane.f32.xlu0 %v858
        %v860 = vpop.xlane.xlu0 %859
        %v861 = vrcp.pop 32.0
        %v862 = vmul.f32 32.0, %v861
        %v863 = vsub.f32 1.0, %v862
        %v864 = vmul.f32 %v861, %v863
        %v865 = vadd.f32 %v861, %v864
        %vm866 = vweird.f32 %v861
        %v867 = vsel %vm866, %v861, %v865
        %v868 = vmul.f32 %v860, %v867
        %v869 = vsub.f32 %v852, %v868
        %v870 = vmul.f32 %v869, %v869
        %v871 = vsel %vm857, %v870, 0.0
        %872 = vadd.xlane.f32.xlu0 %v871
        %v873 = vpop.xlane.xlu0 %872
        %v874 = vmul.f32 %v873, %v867
        %v875 = vadd.f32 %v874, 1e-05
        %v876 = vrsqrt.pop %v875
        %v877 = vmul.f32 %v876, %v875
        %v878 = vmul.f32 %v877, %v876
        %v879 = vmul.f32 0.5, %v878
        %v880 = vsub.f32 1.5, %v879
        %v881 = vmul.f32 %v876, %v880
        %vm882 = vweird.f32 %v875
        %vm883 = vweird.f32 %v876
        %vm884 = vmor %vm882, %vm883
        %v885 = vsel %vm884, %v876, %v881
        %v886 = vmul.f32 %v869, %v885
        %v888 = vperm.slane %v855, 0
        %v890 = vmul.f32 %v886, %v888
        %v892 = vperm.slane %v856, 0
        %v894 = vadd.f32 %v890, %v892
        %v895 = vld [vmem:[%s1] sm:$0xf]
        %v897 = vrot.slane %v894, 4
        %v899 = vsel %vm838, %v895, %v897
        %v900 = vld [vmem:[%s6] sm:$0xf]
        %v901 = vld [vmem:[%s6 + $0x4] sm:$0xf]
        %v902 = vld [vmem:[%s6 + $0x8] sm:$0xf]
        %v903 = vld [vmem:[%s6 + $0xc] sm:$0xf]
        %v904 = vld [vmem:[%s6 + $0x10] sm:$0xf]
        %v905 = vld [vmem:[%s6 + $0x14] sm:$0xf]
        %v906 = vld [vmem:[%s6 + $0x18] sm:$0xf]
        %v907 = vld [vmem:[%s6 + $0x1c] sm:$0xf]
        %v908 = vld [vmem:[#allocation6] sm:$0xf]
        %v909 = vld [vmem:[%s8] sm:$0xf]
        %v910 = vld [vmem:[%s8 + $0x4] sm:$0xf]
        %v911 = vld [vmem:[%s8 + $0x8] sm:$0xf]
        %v912 = vld [vmem:[%s8 + $0xc] sm:$0xf]
        %v913 = vld [vmem:[%s8 + $0x10] sm:$0xf]
        %v914 = vld [vmem:[%s8 + $0x14] sm:$0xf]
        %v915 = vld [vmem:[%s8 + $0x18] sm:$0xf]
        %v916 = vld [vmem:[%s8 + $0x1c] sm:$0xf]
        %v917 = vld [vmem:[#allocation12] sm:$0xf]
        %v918 = vld [vmem:[%s9] sm:$0xff]
        %v919 = vld [vmem:[%s9 + $0x8] sm:$0xf]
        %v920 = vld [vmem:[%s9 + $0xc] sm:$0xff]
        %v921 = vld [vmem:[%s9 + $0x14] sm:$0xf]
        %v922 = vld [vmem:[%s9 + $0x18] sm:$0xff]
        %v923 = vld [vmem:[%s9 + $0x20] sm:$0xf]
        %v924 = vld [vmem:[%s9 + $0x24] sm:$0xff]
        %v925 = vld [vmem:[%s9 + $0x2c] sm:$0xf]
        %v926 = vpack.c.bf16 %v899, %v899
        %v935 = vunpack.c.l.b16 %v918
        %v936 = vunpack.c.h.b16 %v918
        %v937 = vunpack.c.l.b16 %v919
        %v938 = vunpack.c.l.b16 %v920
        %v939 = vunpack.c.h.b16 %v920
        %v940 = vunpack.c.l.b16 %v921
        %v941 = vunpack.c.l.b16 %v922
        %v942 = vunpack.c.h.b16 %v922
        %v943 = vunpack.c.l.b16 %v923
        %v944 = vunpack.c.l.b16 %v924
        %v945 = vunpack.c.h.b16 %v924
        %v946 = vunpack.c.l.b16 %v925
        %v947 = vpack.c.b16 %v938, %v935
        %v948 = vpack.c.b16 %v939, %v936
        %v949 = vpack.c.b16 %v940, %v937
        %v950 = vpack.c.b16 %v944, %v941
        %v951 = vpack.c.b16 %v945, %v942
        %v952 = vpack.c.b16 %v946, %v943
        %vm959 = vcmask 261120
        %v961 = vsel %vm959, %v926, 0
        %963 = vmatpush.bf16.msra.mxu0 0
        %964 = vmatpush.bf16.msra.mxu0 0
        %965 = vmatpush.bf16.msra.mxu0 0
        %966 = vmatpush.bf16.msra.mxu0 0
        %967 = vmatpush.bf16.msra.mxu0 0
        %968 = vmatpush.bf16.msra.mxu0 0
        %969 = vmatpush.bf16.msra.mxu0 %v950
        %970 = vmatpush.bf16.msra.mxu0 %v947
        %971 = vmatmul.bf16.gmra.mxu0 %v961
        %v972 = vpop.f32.mrf.mxu0
        %v973 = vadd.f32 0.0, %v972
        %v974 = vpop.f32.mrf.mxu0
        %975 = vdwg.mxu0
        %976 = vmatpush.bf16.msra.mxu0 0
        %977 = vmatpush.bf16.msra.mxu0 0
        %978 = vmatpush.bf16.msra.mxu0 0
        %979 = vmatpush.bf16.msra.mxu0 0
        %980 = vmatpush.bf16.msra.mxu0 0
        %981 = vmatpush.bf16.msra.mxu0 0
        %982 = vmatpush.bf16.msra.mxu0 %v951
        %983 = vmatpush.bf16.msra.mxu0 %v948
        %984 = vmatmul.bf16.gmra.mxu0 %v961
        %v985 = vpop.f32.mrf.mxu0
        %v986 = vadd.f32 0.0, %v985
        %v987 = vpop.f32.mrf.mxu0
        %988 = vdwg.mxu0
        %989 = vmatpush.bf16.msra.mxu0 0
        %990 = vmatpush.bf16.msra.mxu0 0
        %991 = vmatpush.bf16.msra.mxu0 0
        %992 = vmatpush.bf16.msra.mxu0 0
        %993 = vmatpush.bf16.msra.mxu0 0
        %994 = vmatpush.bf16.msra.mxu0 0
        %995 = vmatpush.bf16.msra.mxu0 %v952
        %996 = vmatpush.bf16.msra.mxu0 %v949
        %997 = vmatmul.bf16.gmra.mxu0 %v961
        %v998 = vpop.f32.mrf.mxu0
        %v999 = vadd.f32 0.0, %v998
        %v1000 = vpop.f32.mrf.mxu0
        %1001 = vdwg.mxu0
        %v1002 = vxor.u32 %v999, 2147483648
        %v1003 = vmul.f32 %v1002, 1.442695
        %v1004 = vpow.pop %v1003
        %v1005 = vadd.f32 %v1004, 1.0
        %v1006 = vrcp.pop %v1005
        %v1007 = vmul.f32 %v1005, %v1006
        %v1008 = vsub.f32 1.0, %v1007
        %v1009 = vmul.f32 %v1006, %v1008
        %v1010 = vadd.f32 %v1006, %v1009
        %vm1011 = vweird.f32 %v1005
        %vm1012 = vweird.f32 %v1006
        %vm1013 = vmor %vm1011, %vm1012
        %v1014 = vsel %vm1013, %v1006, %v1010
        %v1015 = vand.u32 2147483647, %v1005
        %vm1016 = vcmp.eq.f32.partialorder %v1015, 8.507059e+37
        %v1017 = vand.u32 %v1005, 2147483648
        %v1018 = vor.u32 1.1754944e-38, %v1017
        %v1019 = vsel %vm1016, %v1018, %v1014
        %v1020 = vmul.f32 1.0, %v1019
        %v1021 = vmul.f32 %v999, %v1020
        %v1022 = vld [vmem:[%s10] sm:$0xf]
        %v1023 = vld [vmem:[%s10 + $0x4] sm:$0xf]
        %v1024 = vld [vmem:[%s10 + $0x8] sm:$0xf]
        %v1025 = vld [vmem:[%s10 + $0xc] sm:$0xf]
        %v1026 = vld [vmem:[#allocation7] sm:$0xf]
        %v1027 = vld [vmem:[#allocation7 + $0x4] sm:$0xf]
        %v1028 = vld [vmem:[#allocation7 + $0x8] sm:$0xf]
        %v1029 = vld [vmem:[#allocation7 + $0xc] sm:$0xf]
        %v1031 = vrot.slane %v926, 2
        %v1036 = vunpack.c.l.b16 %v1026
        %v1037 = vunpack.c.l.b16 %v1027
        %v1038 = vunpack.c.l.b16 %v1028
        %v1039 = vunpack.c.l.b16 %v1029
        %v1040 = vpack.c.b16 %v1037, %v1036
        %v1041 = vpack.c.b16 %v1039, %v1038
        %v1045 = vsel %vm959, %v1031, 0
        %1047 = vmatpush.bf16.msra.mxu0 0
        %1048 = vmatpush.bf16.msra.mxu0 0
        %1049 = vmatpush.bf16.msra.mxu0 0
        %1050 = vmatpush.bf16.msra.mxu0 0
        %1051 = vmatpush.bf16.msra.mxu0 0
        %1052 = vmatpush.bf16.msra.mxu0 0
        %1053 = vmatpush.bf16.msra.mxu0 %v1041
        %1054 = vmatpush.bf16.msra.mxu0 %v1040
        %1055 = vmatmul.bf16.gmra.mxu0 %v1045
        %v1056 = vpop.f32.mrf.mxu0
        %v1057 = vadd.f32 0.0, %v1056
        %v1058 = vpop.f32.mrf.mxu0
        %1059 = vdwg.mxu0
        %v1064 = vunpack.c.l.b16 %v1022
        %v1065 = vunpack.c.l.b16 %v1023
        %v1066 = vunpack.c.l.b16 %v1024
        %v1067 = vunpack.c.l.b16 %v1025
        %v1068 = vpack.c.b16 %v1065, %v1064
        %v1069 = vpack.c.b16 %v1067, %v1066
        %1072 = vmatpush.bf16.msra.mxu0 0
        %1073 = vmatpush.bf16.msra.mxu0 0
        %1074 = vmatpush.bf16.msra.mxu0 0
        %1075 = vmatpush.bf16.msra.mxu0 0
        %1076 = vmatpush.bf16.msra.mxu0 0
        %1077 = vmatpush.bf16.msra.mxu0 0
        %1078 = vmatpush.bf16.msra.mxu0 %v1069
        %1079 = vmatpush.bf16.msra.mxu0 %v1068
        %1080 = vmatmul.bf16.gmra.mxu0 %v961
        %v1081 = vpop.f32.mrf.mxu0
        %v1082 = vadd.f32 %v1057, %v1081
        %v1083 = vpop.f32.mrf.mxu0
        %1084 = vdwg.mxu0
        %v1085 = vld [vmem:[#allocation9] sm:$0x1]
        %v1087 = vperm.slane %v1085, 0
        %v1089 = vadd.f32 %v1082, %v1087
        %v1090 = vperm.slane %v1089, 0
        %v1091 = vmul.f32 %v973, %v1090
        %v1092 = vpack.c.bf16 %v1091, %v1091
        %v1101 = vunpack.c.l.b16 %v900
        %v1102 = vunpack.c.l.b16 %v901
        %v1103 = vunpack.c.l.b16 %v902
        %v1104 = vunpack.c.l.b16 %v903
        %v1105 = vunpack.c.l.b16 %v904
        %v1106 = vunpack.c.l.b16 %v905
        %v1107 = vunpack.c.l.b16 %v906
        %v1108 = vunpack.c.l.b16 %v907
        %v1109 = vpack.c.b16 %v1102, %v1101
        %v1110 = vpack.c.b16 %v1104, %v1103
        %v1111 = vpack.c.b16 %v1106, %v1105
        %v1112 = vpack.c.b16 %v1108, %v1107
        %vm1117 = vcmask 523264
        %v1119 = vsel %vm1117, %v1092, 0
        %1121 = vmatpush.bf16.msra.mxu0 0
        %1122 = vmatpush.bf16.msra.mxu0 0
        %1123 = vmatpush.bf16.msra.mxu0 0
        %1124 = vmatpush.bf16.msra.mxu0 0
        %1125 = vmatpush.bf16.msra.mxu0 %v1112
        %1126 = vmatpush.bf16.msra.mxu0 %v1111
        %1127 = vmatpush.bf16.msra.mxu0 %v1110
        %1128 = vmatpush.bf16.msra.mxu0 %v1109
        %1129 = vmatmul.bf16.gmra.mxu0 %v1119
        %v1130 = vpop.f32.mrf.mxu0
        %v1131 = vadd.f32 0.0, %v1130
        %v1132 = vpop.f32.mrf.mxu0
        %1133 = vdwg.mxu0
        %v1134 = vsel %vm834, %v1131, -inf
        %1135 = vmax.xlane.f32.xlu0 %v1134
        %v1136 = vpop.xlane.xlu0 %1135
        %v1137 = vsub.f32 %v1131, %v1136
        %v1138 = vmul.f32 %v1137, 1.442695
        %v1139 = vpow.pop %v1138
        %v1140 = vsel %vm834, %v1139, 0.0
        %1141 = vadd.xlane.f32.xlu0 %v1140
        %v1142 = vpop.xlane.xlu0 %1141
        %v1143 = vrcp.pop %v1142
        %v1144 = vmul.f32 %v1139, %v1143
        %v1145 = vpack.c.bf16 %v1144, %v1144
        %v1147 = vsel %vm834, %v1145, 0
        %v1150 = vsel %vm838, %v908, 0
        %1152 = vmatpush.bf16.msra.mxu0 0
        %1153 = vmatpush.bf16.msra.mxu0 0
        %1154 = vmatpush.bf16.msra.mxu0 0
        %1155 = vmatpush.bf16.msra.mxu0 0
        %1156 = vmatpush.bf16.msra.mxu0 0
        %1157 = vmatpush.bf16.msra.mxu0 0
        %1158 = vmatpush.bf16.msra.mxu0 0
        %1159 = vmatpush.bf16.msra.mxu0 %v1150
        %1160 = vmatmul.bf16.gmra.mxu0 %v1147
        %v1161 = vpop.f32.mrf.mxu0
        %v1162 = vadd.f32 0.0, %v1161
        %v1163 = vpop.f32.mrf.mxu0
        %1164 = vdwg.mxu0
        %1166 = vrot.lane.b32.xlu0 %v1090, 64
        %v1167 = vpop.permute.xlu0 %1166
        %v1169 = vmul.f32 %v1162, %v1167
        %v1170 = vpack.c.bf16 %v1169, %v1169
        %v1179 = vunpack.c.l.b16 %v909
        %v1180 = vunpack.c.l.b16 %v910
        %v1181 = vunpack.c.l.b16 %v911
        %v1182 = vunpack.c.l.b16 %v912
        %v1183 = vunpack.c.l.b16 %v913
        %v1184 = vunpack.c.l.b16 %v914
        %v1185 = vunpack.c.l.b16 %v915
        %v1186 = vunpack.c.l.b16 %v916
        %v1187 = vpack.c.b16 %v1180, %v1179
        %v1188 = vpack.c.b16 %v1182, %v1181
        %v1189 = vpack.c.b16 %v1184, %v1183
        %v1190 = vpack.c.b16 %v1186, %v1185
        %v1196 = vsel %vm1117, %v1170, 0
        %1198 = vmatpush.bf16.msra.mxu0 0
        %1199 = vmatpush.bf16.msra.mxu0 0
        %1200 = vmatpush.bf16.msra.mxu0 0
        %1201 = vmatpush.bf16.msra.mxu0 0
        %1202 = vmatpush.bf16.msra.mxu0 %v1190
        %1203 = vmatpush.bf16.msra.mxu0 %v1189
        %1204 = vmatpush.bf16.msra.mxu0 %v1188
        %1205 = vmatpush.bf16.msra.mxu0 %v1187
        %1206 = vmatmul.bf16.gmra.mxu0 %v1196
        %v1207 = vpop.f32.mrf.mxu0
        %v1208 = vadd.f32 0.0, %v1207
        %v1209 = vpop.f32.mrf.mxu0
        %1210 = vdwg.mxu0
        %v1211 = vmul.f32 %v1208, %v1021
        %v1212 = vperm.slane %v1089, 1
        %1214 = vrot.lane.b32.xlu0 %v1212, 64
        %v1215 = vpop.permute.xlu0 %1214
        %v1217 = vmul.f32 %v973, %v1215
        %v1218 = vpack.c.bf16 %v1217, %v1217
        %1220 = vrot.lane.b32.xlu0 %v1218, 64
        %v1221 = vpop.permute.xlu0 %1220
        %v1223 = vsel %vm1117, %v1221, 0
        %1225 = vmatpush.bf16.msra.mxu0 0
        %1226 = vmatpush.bf16.msra.mxu0 0
        %1227 = vmatpush.bf16.msra.mxu0 0
        %1228 = vmatpush.bf16.msra.mxu0 0
        %1229 = vmatpush.bf16.msra.mxu0 %v1112
        %1230 = vmatpush.bf16.msra.mxu0 %v1111
        %1231 = vmatpush.bf16.msra.mxu0 %v1110
        %1232 = vmatpush.bf16.msra.mxu0 %v1109
        %1233 = vmatmul.bf16.gmra.mxu0 %v1223
        %v1234 = vpop.f32.mrf.mxu0
        %v1235 = vadd.f32 0.0, %v1234
        %v1236 = vpop.f32.mrf.mxu0
        %1237 = vdwg.mxu0
        %v1238 = vsel %vm834, %v1235, -inf
        %1239 = vmax.xlane.f32.xlu0 %v1238
        %v1240 = vpop.xlane.xlu0 %1239
        %v1241 = vsub.f32 %v1235, %v1240
        %v1242 = vmul.f32 %v1241, 1.442695
        %v1243 = vpow.pop %v1242
        %v1244 = vsel %vm834, %v1243, 0.0
        %1245 = vadd.xlane.f32.xlu0 %v1244
        %v1246 = vpop.xlane.xlu0 %1245
        %v1247 = vrcp.pop %v1246
        %v1248 = vmul.f32 %v1243, %v1247
        %v1249 = vpack.c.bf16 %v1248, %v1248
        %v1251 = vsel %vm834, %v1249, 0
        %1253 = vmatpush.bf16.msra.mxu0 0
        %1254 = vmatpush.bf16.msra.mxu0 0
        %1255 = vmatpush.bf16.msra.mxu0 0
        %1256 = vmatpush.bf16.msra.mxu0 0
        %1257 = vmatpush.bf16.msra.mxu0 0
        %1258 = vmatpush.bf16.msra.mxu0 0
        %1259 = vmatpush.bf16.msra.mxu0 0
        %1260 = vmatpush.bf16.msra.mxu0 %v1150
        %1261 = vmatmul.bf16.gmra.mxu0 %v1251
        %v1262 = vpop.f32.mrf.mxu0
        %v1263 = vadd.f32 0.0, %v1262
        %v1264 = vpop.f32.mrf.mxu0
        %1265 = vdwg.mxu0
        %v1266 = vmul.f32 %v1263, %v1215
        %v1267 = vpack.c.bf16 %v1266, %v1266
        %v1269 = vsel %vm1117, %v1267, 0
        %1271 = vmatpush.bf16.msra.mxu0 0
        %1272 = vmatpush.bf16.msra.mxu0 0
        %1273 = vmatpush.bf16.msra.mxu0 0
        %1274 = vmatpush.bf16.msra.mxu0 0
        %1275 = vmatpush.bf16.msra.mxu0 %v1190
        %1276 = vmatpush.bf16.msra.mxu0 %v1189
        %1277 = vmatpush.bf16.msra.mxu0 %v1188
        %1278 = vmatpush.bf16.msra.mxu0 %v1187
        %1279 = vmatmul.bf16.gmra.mxu0 %v1269
        %v1280 = vpop.f32.mrf.mxu0
        %v1281 = vadd.f32 0.0, %v1280
        %v1282 = vpop.f32.mrf.mxu0
        %1283 = vdwg.mxu0
        %1285 = vrot.lane.b32.xlu0 %v1021, 120
        %v1286 = vpop.permute.xlu0 %1285
        %v1288 = vmul.f32 %v1281, %v1286
        %v1289 = vperm.slane %v1089, 2
        %v1290 = vmul.f32 %v986, %v1289
        %v1291 = vpack.c.bf16 %v1290, %v1290
        %v1293 = vsel %vm1117, %v1291, 0
        %1295 = vmatpush.bf16.msra.mxu0 0
        %1296 = vmatpush.bf16.msra.mxu0 0
        %1297 = vmatpush.bf16.msra.mxu0 0
        %1298 = vmatpush.bf16.msra.mxu0 0
        %1299 = vmatpush.bf16.msra.mxu0 %v1112
        %1300 = vmatpush.bf16.msra.mxu0 %v1111
        %1301 = vmatpush.bf16.msra.mxu0 %v1110
        %1302 = vmatpush.bf16.msra.mxu0 %v1109
        %1303 = vmatmul.bf16.gmra.mxu0 %v1293
        %v1304 = vpop.f32.mrf.mxu0
        %v1305 = vadd.f32 0.0, %v1304
        %v1306 = vpop.f32.mrf.mxu0
        %1307 = vdwg.mxu0
        %v1308 = vsel %vm834, %v1305, -inf
        %1309 = vmax.xlane.f32.xlu0 %v1308
        %v1310 = vpop.xlane.xlu0 %1309
        %v1311 = vsub.f32 %v1305, %v1310
        %v1312 = vmul.f32 %v1311, 1.442695
        %v1313 = vpow.pop %v1312
        %v1314 = vsel %vm834, %v1313, 0.0
        %1315 = vadd.xlane.f32.xlu0 %v1314
        %v1316 = vpop.xlane.xlu0 %1315
        %v1317 = vrcp.pop %v1316
        %v1318 = vmul.f32 %v1313, %v1317
        %v1319 = vpack.c.bf16 %v1318, %v1318
        %v1321 = vsel %vm834, %v1319, 0
        %1323 = vmatpush.bf16.msra.mxu0 0
        %1324 = vmatpush.bf16.msra.mxu0 0
        %1325 = vmatpush.bf16.msra.mxu0 0
        %1326 = vmatpush.bf16.msra.mxu0 0
        %1327 = vmatpush.bf16.msra.mxu0 0
        %1328 = vmatpush.bf16.msra.mxu0 0
        %1329 = vmatpush.bf16.msra.mxu0 0
        %1330 = vmatpush.bf16.msra.mxu0 %v1150
        %1331 = vmatmul.bf16.gmra.mxu0 %v1321
        %v1332 = vpop.f32.mrf.mxu0
        %v1333 = vadd.f32 0.0, %v1332
        %v1334 = vpop.f32.mrf.mxu0
        %1335 = vdwg.mxu0
        %1337 = vrot.lane.b32.xlu0 %v1289, 64
        %v1338 = vpop.permute.xlu0 %1337
        %v1340 = vmul.f32 %v1333, %v1338
        %v1341 = vpack.c.bf16 %v1340, %v1340
        %v1343 = vsel %vm1117, %v1341, 0
        %1345 = vmatpush.bf16.msra.mxu0 0
        %1346 = vmatpush.bf16.msra.mxu0 0
        %1347 = vmatpush.bf16.msra.mxu0 0
        %1348 = vmatpush.bf16.msra.mxu0 0
        %1349 = vmatpush.bf16.msra.mxu0 %v1190
        %1350 = vmatpush.bf16.msra.mxu0 %v1189
        %1351 = vmatpush.bf16.msra.mxu0 %v1188
        %1352 = vmatpush.bf16.msra.mxu0 %v1187
        %1353 = vmatmul.bf16.gmra.mxu0 %v1343
        %v1354 = vpop.f32.mrf.mxu0
        %v1355 = vadd.f32 0.0, %v1354
        %v1356 = vpop.f32.mrf.mxu0
        %1357 = vdwg.mxu0
        %1358 = vrot.lane.b32.xlu0 %v1021, 112
        %v1359 = vpop.permute.xlu0 %1358
        %v1361 = vmul.f32 %v1355, %v1359
        %v1362 = vperm.slane %v1089, 3
        %1364 = vrot.lane.b32.xlu0 %v1362, 64
        %v1365 = vpop.permute.xlu0 %1364
        %v1367 = vmul.f32 %v986, %v1365
        %v1368 = vpack.c.bf16 %v1367, %v1367
        %1370 = vrot.lane.b32.xlu0 %v1368, 64
        %v1371 = vpop.permute.xlu0 %1370
        %v1373 = vsel %vm1117, %v1371, 0
        %1375 = vmatpush.bf16.msra.mxu0 0
        %1376 = vmatpush.bf16.msra.mxu0 0
        %1377 = vmatpush.bf16.msra.mxu0 0
        %1378 = vmatpush.bf16.msra.mxu0 0
        %1379 = vmatpush.bf16.msra.mxu0 %v1112
        %1380 = vmatpush.bf16.msra.mxu0 %v1111
        %1381 = vmatpush.bf16.msra.mxu0 %v1110
        %1382 = vmatpush.bf16.msra.mxu0 %v1109
        %1383 = vmatmul.bf16.gmra.mxu0 %v1373
        %v1384 = vpop.f32.mrf.mxu0
        %v1385 = vadd.f32 0.0, %v1384
        %v1386 = vpop.f32.mrf.mxu0
        %1387 = vdwg.mxu0
        %v1388 = vsel %vm834, %v1385, -inf
        %1389 = vmax.xlane.f32.xlu0 %v1388
        %v1390 = vpop.xlane.xlu0 %1389
        %v1391 = vsub.f32 %v1385, %v1390
        %v1392 = vmul.f32 %v1391, 1.442695
        %v1393 = vpow.pop %v1392
        %v1394 = vsel %vm834, %v1393, 0.0
        %1395 = vadd.xlane.f32.xlu0 %v1394
        %v1396 = vpop.xlane.xlu0 %1395
        %v1397 = vrcp.pop %v1396
        %v1398 = vmul.f32 %v1393, %v1397
        %v1399 = vpack.c.bf16 %v1398, %v1398
        %v1401 = vsel %vm834, %v1399, 0
        %1403 = vmatpush.bf16.msra.mxu0 0
        %1404 = vmatpush.bf16.msra.mxu0 0
        %1405 = vmatpush.bf16.msra.mxu0 0
        %1406 = vmatpush.bf16.msra.mxu0 0
        %1407 = vmatpush.bf16.msra.mxu0 0
        %1408 = vmatpush.bf16.msra.mxu0 0
        %1409 = vmatpush.bf16.msra.mxu0 0
        %1410 = vmatpush.bf16.msra.mxu0 %v1150
        %1411 = vmatmul.bf16.gmra.mxu0 %v1401
        %v1412 = vpop.f32.mrf.mxu0
        %v1413 = vadd.f32 0.0, %v1412
        %v1414 = vpop.f32.mrf.mxu0
        %1415 = vdwg.mxu0
        %v1416 = vmul.f32 %v1413, %v1365
        %v1417 = vpack.c.bf16 %v1416, %v1416
        %v1419 = vsel %vm1117, %v1417, 0
        %1421 = vmatpush.bf16.msra.mxu0 0
        %1422 = vmatpush.bf16.msra.mxu0 0
        %1423 = vmatpush.bf16.msra.mxu0 0
        %1424 = vmatpush.bf16.msra.mxu0 0
        %1425 = vmatpush.bf16.msra.mxu0 %v1190
        %1426 = vmatpush.bf16.msra.mxu0 %v1189
        %1427 = vmatpush.bf16.msra.mxu0 %v1188
        %1428 = vmatpush.bf16.msra.mxu0 %v1187
        %1429 = vmatmul.bf16.gmra.mxu0 %v1419
        %v1430 = vpop.f32.mrf.mxu0
        %v1431 = vadd.f32 0.0, %v1430
        %v1432 = vpop.f32.mrf.mxu0
        %1433 = vdwg.mxu0
        %1434 = vrot.lane.b32.xlu0 %v1021, 104
        %v1435 = vpop.permute.xlu0 %1434
        %v1437 = vmul.f32 %v1431, %v1435
        %1439 = vrot.lane.b32.xlu0 %v1288, 8
        %v1440 = vpop.permute.xlu0 %1439
        %1443 = vrot.lane.b32.xlu0 %v1361, 16
        %v1444 = vpop.permute.xlu0 %1443
        %1447 = vrot.lane.b32.xlu0 %v1437, 24
        %v1448 = vpop.permute.xlu0 %1447
        %v1450 = vsel %vm834, %v1211, %v1440
        %vm1451 = vcmask 130048
        %v1452 = vsel %vm1451, %v1450, %v1444
        %vm1453 = vcmask 195584
        %v1454 = vsel %vm1453, %v1452, %v1448
        %v1455 = vld [vmem:[#allocation10] sm:$0xf]
        %v1456 = vld [vmem:[#allocation10 + $0x4] sm:$0xf]
        %v1457 = vld [vmem:[#allocation10 + $0x8] sm:$0xf]
        %v1458 = vld [vmem:[#allocation10 + $0xc] sm:$0xf]
        %v1459 = vpack.c.bf16 %v1454, %v1454
        %v1464 = vunpack.c.l.b16 %v1455
        %v1465 = vunpack.c.l.b16 %v1456
        %v1466 = vunpack.c.l.b16 %v1457
        %v1467 = vunpack.c.l.b16 %v1458
        %v1468 = vpack.c.b16 %v1465, %v1464
        %v1469 = vpack.c.b16 %v1467, %v1466
        %v1473 = vsel %vm959, %v1459, 0
        %1475 = vmatpush.bf16.msra.mxu0 0
        %1476 = vmatpush.bf16.msra.mxu0 0
        %1477 = vmatpush.bf16.msra.mxu0 0
        %1478 = vmatpush.bf16.msra.mxu0 0
        %1479 = vmatpush.bf16.msra.mxu0 0
        %1480 = vmatpush.bf16.msra.mxu0 0
        %1481 = vmatpush.bf16.msra.mxu0 %v1469
        %1482 = vmatpush.bf16.msra.mxu0 %v1468
        %1483 = vmatmul.bf16.gmra.mxu0 %v1473
        %v1484 = vpop.f32.mrf.mxu0
        %v1485 = vadd.f32 %v899, %v1484
        %v1486 = vpop.f32.mrf.mxu0
        %1487 = vdwg.mxu0
        %v1488 = vsel %vm959, %v1485, 0.0
        %1489 = vadd.xlane.f32.xlu0 %v1488
        %v1490 = vpop.xlane.xlu0 %1489
        %v1491 = vmul.f32 %v1490, %v867
        %v1492 = vsub.f32 %v1485, %v1491
        %v1493 = vmul.f32 %v1492, %v1492
        %v1494 = vsel %vm959, %v1493, 0.0
        %1495 = vadd.xlane.f32.xlu0 %v1494
        %v1496 = vpop.xlane.xlu0 %1495
        %v1497 = vmul.f32 %v1496, %v867
        %v1498 = vadd.f32 %v1497, 1e-05
        %v1499 = vrsqrt.pop %v1498
        %v1500 = vmul.f32 %v1499, %v1498
        %v1501 = vmul.f32 %v1500, %v1499
        %v1502 = vmul.f32 0.5, %v1501
        %v1503 = vsub.f32 1.5, %v1502
        %v1504 = vmul.f32 %v1499, %v1503
        %vm1505 = vweird.f32 %v1498
        %vm1506 = vweird.f32 %v1499
        %vm1507 = vmor %vm1505, %vm1506
        %v1508 = vsel %vm1507, %v1499, %v1504
        %v1509 = vmul.f32 %v1492, %v1508
        %v1510 = vperm.slane %v917, 0
        %v1511 = vmul.f32 %v1509, %v1510
        %v1512 = vperm.slane %v917, 1
        %v1513 = vadd.f32 %v1511, %v1512
        %v1514 = vld [vmem:[%s15] sm:$0xff]
        %v1515 = vld [vmem:[%s15 + $0x8] sm:$0xff]
        %v1516 = vld [vmem:[%s15 + $0x10] sm:$0xff]
        %v1517 = vld [vmem:[%s15 + $0x18] sm:$0xff]
        %v1518 = vpack.c.bf16 %v1513, %v1513
        %v1519 = vld [vmem:[#allocation13] sm:$0x3]
        %v1521 = vperm.slane %v1519, 0
        %v1522 = vperm.slane %v1519, 1
        %v1529 = vunpack.c.l.b16 %v1514
        %v1530 = vunpack.c.h.b16 %v1514
        %v1531 = vunpack.c.l.b16 %v1515
        %v1532 = vunpack.c.h.b16 %v1515
        %v1533 = vunpack.c.l.b16 %v1516
        %v1534 = vunpack.c.h.b16 %v1516
        %v1535 = vunpack.c.l.b16 %v1517
        %v1536 = vunpack.c.h.b16 %v1517
        %v1537 = vpack.c.b16 %v1531, %v1529
        %v1538 = vpack.c.b16 %v1532, %v1530
        %v1539 = vpack.c.b16 %v1535, %v1533
        %v1540 = vpack.c.b16 %v1536, %v1534
        %v1546 = vsel %vm959, %v1518, 0
        %1548 = vmatpush.bf16.msra.mxu0 0
        %1549 = vmatpush.bf16.msra.mxu0 0
        %1550 = vmatpush.bf16.msra.mxu0 0
        %1551 = vmatpush.bf16.msra.mxu0 0
        %1552 = vmatpush.bf16.msra.mxu0 0
        %1553 = vmatpush.bf16.msra.mxu0 0
        %1554 = vmatpush.bf16.msra.mxu0 %v1539
        %1555 = vmatpush.bf16.msra.mxu0 %v1537
        %1556 = vmatmul.bf16.gmra.mxu0 %v1546
        %v1557 = vpop.f32.mrf.mxu0
        %v1558 = vadd.f32 %v1521, %v1557
        %v1559 = vpop.f32.mrf.mxu0
        %1560 = vdwg.mxu0
        %1561 = vmatpush.bf16.msra.mxu0 0
        %1562 = vmatpush.bf16.msra.mxu0 0
        %1563 = vmatpush.bf16.msra.mxu0 0
        %1564 = vmatpush.bf16.msra.mxu0 0
        %1565 = vmatpush.bf16.msra.mxu0 0
        %1566 = vmatpush.bf16.msra.mxu0 0
        %1567 = vmatpush.bf16.msra.mxu0 %v1540
        %1568 = vmatpush.bf16.msra.mxu0 %v1538
        %1569 = vmatmul.bf16.gmra.mxu0 %v1546
        %v1570 = vpop.f32.mrf.mxu0
        %v1571 = vadd.f32 %v1522, %v1570
        %v1572 = vpop.f32.mrf.mxu0
        %1573 = vdwg.mxu0
        %v1574 = vmul.f32 %v1571, %v1571
        %v1575 = vmul.f32 %v1571, %v1574
        %v1576 = vmul.f32 %v1575, 0.044715
        %v1577 = vadd.f32 %v1571, %v1576
        %v1578 = vmul.f32 %v1577, 0.7978846
        %v1579 = vtanh.pop %v1578
        %v1580 = vadd.f32 %v1579, 1.0
        %v1581 = vmul.f32 %v1580, 0.5
        %v1582 = vmul.f32 %v1571, %v1581
        %v1583 = vmul.f32 %v1558, %v1582
        %v1584 = vld [vmem:[%s17] sm:$0xf]
        %v1585 = vld [vmem:[%s17 + $0x4] sm:$0xf]
        %v1586 = vld [vmem:[%s17 + $0x8] sm:$0xf]
        %v1587 = vld [vmem:[%s17 + $0xc] sm:$0xf]
        %v1588 = vld [vmem:[%s17 + $0x10] sm:$0xf]
        %v1589 = vld [vmem:[%s17 + $0x14] sm:$0xf]
        %v1590 = vld [vmem:[%s17 + $0x18] sm:$0xf]
        %v1591 = vld [vmem:[%s17 + $0x1c] sm:$0xf]
        %v1592 = vld [vmem:[%s17 + $0x20] sm:$0xf]
        %v1593 = vld [vmem:[%s17 + $0x24] sm:$0xf]
        %v1594 = vld [vmem:[%s17 + $0x28] sm:$0xf]
        %v1595 = vld [vmem:[%s17 + $0x2c] sm:$0xf]
        %v1596 = vld [vmem:[%s17 + $0x30] sm:$0xf]
        %v1597 = vld [vmem:[%s17 + $0x34] sm:$0xf]
        %v1598 = vld [vmem:[%s17 + $0x38] sm:$0xf]
        %v1599 = vld [vmem:[%s17 + $0x3c] sm:$0xf]
        %v1600 = vpack.c.bf16 %v1583, %v1583
        %v1601 = vld [vmem:[#allocation15] sm:$0x1]
        %v1603 = vperm.slane %v1601, 0
        %v1621 = vunpack.c.l.b16 %v1584
        %v1622 = vunpack.c.l.b16 %v1585
        %v1623 = vunpack.c.l.b16 %v1586
        %v1624 = vunpack.c.l.b16 %v1587
        %v1625 = vunpack.c.l.b16 %v1588
        %v1626 = vunpack.c.l.b16 %v1589
        %v1627 = vunpack.c.l.b16 %v1590
        %v1628 = vunpack.c.l.b16 %v1591
        %v1629 = vunpack.c.l.b16 %v1592
        %v1630 = vunpack.c.l.b16 %v1593
        %v1631 = vunpack.c.l.b16 %v1594
        %v1632 = vunpack.c.l.b16 %v1595
        %v1633 = vunpack.c.l.b16 %v1596
        %v1634 = vunpack.c.l.b16 %v1597
        %v1635 = vunpack.c.l.b16 %v1598
        %v1636 = vunpack.c.l.b16 %v1599
        %v1637 = vpack.c.b16 %v1622, %v1621
        %v1638 = vpack.c.b16 %v1624, %v1623
        %v1639 = vpack.c.b16 %v1626, %v1625
        %v1640 = vpack.c.b16 %v1628, %v1627
        %v1641 = vpack.c.b16 %v1630, %v1629
        %v1642 = vpack.c.b16 %v1632, %v1631
        %v1643 = vpack.c.b16 %v1634, %v1633
        %v1644 = vpack.c.b16 %v1636, %v1635
        %1653 = vmatpush.bf16.msra.mxu0 %v1644
        %1654 = vmatpush.bf16.msra.mxu0 %v1643
        %1655 = vmatpush.bf16.msra.mxu0 %v1642
        %1656 = vmatpush.bf16.msra.mxu0 %v1641
        %1657 = vmatpush.bf16.msra.mxu0 %v1640
        %1658 = vmatpush.bf16.msra.mxu0 %v1639
        %1659 = vmatpush.bf16.msra.mxu0 %v1638
        %1660 = vmatpush.bf16.msra.mxu0 %v1637
        %1661 = vmatmul.bf16.gmra.mxu0 %v1600
        %v1662 = vpop.f32.mrf.mxu0
        %v1663 = vadd.f32 %v1603, %v1662
        %v1664 = vpop.f32.mrf.mxu0
        %1665 = vdwg.mxu0
        %v1666 = vadd.f32 %v1663, %v1513
        %v1667 = vsel %vm959, %v1666, 0.0
        %1668 = vadd.xlane.f32.xlu0 %v1667
        %v1669 = vpop.xlane.xlu0 %1668
        %v1670 = vmul.f32 %v1669, %v867
        %v1671 = vsub.f32 %v1666, %v1670
        %v1672 = vmul.f32 %v1671, %v1671
        %v1673 = vsel %vm959, %v1672, 0.0
        %1674 = vadd.xlane.f32.xlu0 %v1673
        %v1675 = vpop.xlane.xlu0 %1674
        %v1676 = vmul.f32 %v1675, %v867
        %v1677 = vadd.f32 %v1676, 1e-05
        %v1678 = vrsqrt.pop %v1677
        %v1679 = vmul.f32 %v1678, %v1677
        %v1680 = vmul.f32 %v1679, %v1678
        %v1681 = vmul.f32 0.5, %v1680
        %v1682 = vsub.f32 1.5, %v1681
        %v1683 = vmul.f32 %v1678, %v1682
        %vm1684 = vweird.f32 %v1677
        %vm1685 = vweird.f32 %v1678
        %vm1686 = vmor %vm1684, %vm1685
        %v1687 = vsel %vm1686, %v1678, %v1683
        %v1688 = vmul.f32 %v1671, %v1687
        %v1689 = vperm.slane %v917, 2
        %v1690 = vmul.f32 %v1688, %v1689
        %v1691 = vperm.slane %v917, 3
        %v1692 = vadd.f32 %v1690, %v1691
        %s1693 = scalar_lea.vmem [#allocation12], 4
        %v1694 = vld [vmem:[%s1693] sm:$0xf]
        %s1695 = scalar_lea.vmem %s9, 48
        %v1696 = vld [vmem:[%s1695] sm:$0xff]
        %v1697 = vld [vmem:[%s1695 + $0x8] sm:$0xf]
        %v1698 = vld [vmem:[%s1695 + $0xc] sm:$0xff]
        %v1699 = vld [vmem:[%s1695 + $0x14] sm:$0xf]
        %v1700 = vld [vmem:[%s1695 + $0x18] sm:$0xff]
        %v1701 = vld [vmem:[%s1695 + $0x20] sm:$0xf]
        %v1702 = vld [vmem:[%s1695 + $0x24] sm:$0xff]
        %v1703 = vld [vmem:[%s1695 + $0x2c] sm:$0xf]
        %v1704 = vpack.c.bf16 %v1692, %v1692
        %v1713 = vunpack.c.l.b16 %v1696
        %v1714 = vunpack.c.h.b16 %v1696
        %v1715 = vunpack.c.l.b16 %v1697
        %v1716 = vunpack.c.l.b16 %v1698
        %v1717 = vunpack.c.h.b16 %v1698
        %v1718 = vunpack.c.l.b16 %v1699
        %v1719 = vunpack.c.l.b16 %v1700
        %v1720 = vunpack.c.h.b16 %v1700
        %v1721 = vunpack.c.l.b16 %v1701
        %v1722 = vunpack.c.l.b16 %v1702
        %v1723 = vunpack.c.h.b16 %v1702
        %v1724 = vunpack.c.l.b16 %v1703
        %v1725 = vpack.c.b16 %v1716, %v1713
        %v1726 = vpack.c.b16 %v1717, %v1714
        %v1727 = vpack.c.b16 %v1718, %v1715
        %v1728 = vpack.c.b16 %v1722, %v1719
        %v1729 = vpack.c.b16 %v1723, %v1720
        %v1730 = vpack.c.b16 %v1724, %v1721
        %v1738 = vsel %vm959, %v1704, 0
        %1740 = vmatpush.bf16.msra.mxu0 0
        %1741 = vmatpush.bf16.msra.mxu0 0
        %1742 = vmatpush.bf16.msra.mxu0 0
        %1743 = vmatpush.bf16.msra.mxu0 0
        %1744 = vmatpush.bf16.msra.mxu0 0
        %1745 = vmatpush.bf16.msra.mxu0 0
        %1746 = vmatpush.bf16.msra.mxu0 %v1728
        %1747 = vmatpush.bf16.msra.mxu0 %v1725
        %1748 = vmatmul.bf16.gmra.mxu0 %v1738
        %v1749 = vpop.f32.mrf.mxu0
        %v1750 = vadd.f32 0.0, %v1749
        %v1751 = vpop.f32.mrf.mxu0
        %1752 = vdwg.mxu0
        %1753 = vmatpush.bf16.msra.mxu0 0
        %1754 = vmatpush.bf16.msra.mxu0 0
        %1755 = vmatpush.bf16.msra.mxu0 0
        %1756 = vmatpush.bf16.msra.mxu0 0
        %1757 = vmatpush.bf16.msra.mxu0 0
        %1758 = vmatpush.bf16.msra.mxu0 0
        %1759 = vmatpush.bf16.msra.mxu0 %v1729
        %1760 = vmatpush.bf16.msra.mxu0 %v1726
        %1761 = vmatmul.bf16.gmra.mxu0 %v1738
        %v1762 = vpop.f32.mrf.mxu0
        %v1763 = vadd.f32 0.0, %v1762
        %v1764 = vpop.f32.mrf.mxu0
        %1765 = vdwg.mxu0
        %1766 = vmatpush.bf16.msra.mxu0 0
        %1767 = vmatpush.bf16.msra.mxu0 0
        %1768 = vmatpush.bf16.msra.mxu0 0
        %1769 = vmatpush.bf16.msra.mxu0 0
        %1770 = vmatpush.bf16.msra.mxu0 0
        %1771 = vmatpush.bf16.msra.mxu0 0
        %1772 = vmatpush.bf16.msra.mxu0 %v1730
        %1773 = vmatpush.bf16.msra.mxu0 %v1727
        %1774 = vmatmul.bf16.gmra.mxu0 %v1738
        %v1775 = vpop.f32.mrf.mxu0
        %v1776 = vadd.f32 0.0, %v1775
        %v1777 = vpop.f32.mrf.mxu0
        %1778 = vdwg.mxu0
        %v1779 = vxor.u32 %v1776, 2147483648
        %v1780 = vmul.f32 %v1779, 1.442695
        %v1781 = vpow.pop %v1780
        %v1782 = vadd.f32 %v1781, 1.0
        %v1783 = vrcp.pop %v1782
        %v1784 = vmul.f32 %v1782, %v1783
        %v1785 = vsub.f32 1.0, %v1784
        %v1786 = vmul.f32 %v1783, %v1785
        %v1787 = vadd.f32 %v1783, %v1786
        %vm1788 = vweird.f32 %v1782
        %vm1789 = vweird.f32 %v1783
        %vm1790 = vmor %vm1788, %vm1789
        %v1791 = vsel %vm1790, %v1783, %v1787
        %v1792 = vand.u32 2147483647, %v1782
        %vm1793 = vcmp.eq.f32.partialorder %v1792, 8.507059e+37
        %v1794 = vand.u32 %v1782, 2147483648
        %v1795 = vor.u32 1.1754944e-38, %v1794
        %v1796 = vsel %vm1793, %v1795, %v1791
        %v1797 = vmul.f32 1.0, %v1796
        %v1798 = vmul.f32 %v1776, %v1797
        %s1799 = scalar_lea.vmem %s10, 16
        %v1800 = vld [vmem:[%s1799] sm:$0xf]
        %v1801 = vld [vmem:[%s1799 + $0x4] sm:$0xf]
        %v1802 = vld [vmem:[%s1799 + $0x8] sm:$0xf]
        %v1803 = vld [vmem:[%s1799 + $0xc] sm:$0xf]
        %s1804 = scalar_lea.vmem [#allocation7], 16
        %v1805 = vld [vmem:[%s1804] sm:$0xf]
        %v1806 = vld [vmem:[%s1804 + $0x4] sm:$0xf]
        %v1807 = vld [vmem:[%s1804 + $0x8] sm:$0xf]
        %v1808 = vld [vmem:[%s1804 + $0xc] sm:$0xf]
        %v1810 = vrot.slane %v1704, 2
        %v1815 = vunpack.c.l.b16 %v1805
        %v1816 = vunpack.c.l.b16 %v1806
        %v1817 = vunpack.c.l.b16 %v1807
        %v1818 = vunpack.c.l.b16 %v1808
        %v1819 = vpack.c.b16 %v1816, %v1815
        %v1820 = vpack.c.b16 %v1818, %v1817
        %v1824 = vsel %vm959, %v1810, 0
        %1826 = vmatpush.bf16.msra.mxu0 0
        %1827 = vmatpush.bf16.msra.mxu0 0
        %1828 = vmatpush.bf16.msra.mxu0 0
        %1829 = vmatpush.bf16.msra.mxu0 0
        %1830 = vmatpush.bf16.msra.mxu0 0
        %1831 = vmatpush.bf16.msra.mxu0 0
        %1832 = vmatpush.bf16.msra.mxu0 %v1820
        %1833 = vmatpush.bf16.msra.mxu0 %v1819
        %1834 = vmatmul.bf16.gmra.mxu0 %v1824
        %v1835 = vpop.f32.mrf.mxu0
        %v1836 = vadd.f32 0.0, %v1835
        %v1837 = vpop.f32.mrf.mxu0
        %1838 = vdwg.mxu0
        %v1843 = vunpack.c.l.b16 %v1800
        %v1844 = vunpack.c.l.b16 %v1801
        %v1845 = vunpack.c.l.b16 %v1802
        %v1846 = vunpack.c.l.b16 %v1803
        %v1847 = vpack.c.b16 %v1844, %v1843
        %v1848 = vpack.c.b16 %v1846, %v1845
        %1851 = vmatpush.bf16.msra.mxu0 0
        %1852 = vmatpush.bf16.msra.mxu0 0
        %1853 = vmatpush.bf16.msra.mxu0 0
        %1854 = vmatpush.bf16.msra.mxu0 0
        %1855 = vmatpush.bf16.msra.mxu0 0
        %1856 = vmatpush.bf16.msra.mxu0 0
        %1857 = vmatpush.bf16.msra.mxu0 %v1848
        %1858 = vmatpush.bf16.msra.mxu0 %v1847
        %1859 = vmatmul.bf16.gmra.mxu0 %v1738
        %v1860 = vpop.f32.mrf.mxu0
        %v1861 = vadd.f32 %v1836, %v1860
        %v1862 = vpop.f32.mrf.mxu0
        %1863 = vdwg.mxu0
        %s1864 = scalar_lea.vmem [#allocation9], 1
        %v1865 = vld [vmem:[%s1864] sm:$0x1]
        %v1867 = vperm.slane %v1865, 0
        %v1869 = vadd.f32 %v1861, %v1867
        %v1870 = vperm.slane %v1869, 0
        %v1871 = vmul.f32 %v1750, %v1870
        %v1872 = vpack.c.bf16 %v1871, %v1871
        %v1874 = vsel %vm1117, %v1872, 0
        %1876 = vmatpush.bf16.msra.mxu0 0
        %1877 = vmatpush.bf16.msra.mxu0 0
        %1878 = vmatpush.bf16.msra.mxu0 0
        %1879 = vmatpush.bf16.msra.mxu0 0
        %1880 = vmatpush.bf16.msra.mxu0 %v1112
        %1881 = vmatpush.bf16.msra.mxu0 %v1111
        %1882 = vmatpush.bf16.msra.mxu0 %v1110
        %1883 = vmatpush.bf16.msra.mxu0 %v1109
        %1884 = vmatmul.bf16.gmra.mxu0 %v1874
        %v1885 = vpop.f32.mrf.mxu0
        %v1886 = vadd.f32 0.0, %v1885
        %v1887 = vpop.f32.mrf.mxu0
        %1888 = vdwg.mxu0
        %v1889 = vsel %vm834, %v1886, -inf
        %1890 = vmax.xlane.f32.xlu0 %v1889
        %v1891 = vpop.xlane.xlu0 %1890
        %v1892 = vsub.f32 %v1886, %v1891
        %v1893 = vmul.f32 %v1892, 1.442695
        %v1894 = vpow.pop %v1893
        %v1895 = vsel %vm834, %v1894, 0.0
        %1896 = vadd.xlane.f32.xlu0 %v1895
        %v1897 = vpop.xlane.xlu0 %1896
        %v1898 = vrcp.pop %v1897
        %v1899 = vmul.f32 %v1894, %v1898
        %v1900 = vpack.c.bf16 %v1899, %v1899
        %v1902 = vsel %vm834, %v1900, 0
        %1904 = vmatpush.bf16.msra.mxu0 0
        %1905 = vmatpush.bf16.msra.mxu0 0
        %1906 = vmatpush.bf16.msra.mxu0 0
        %1907 = vmatpush.bf16.msra.mxu0 0
        %1908 = vmatpush.bf16.msra.mxu0 0
        %1909 = vmatpush.bf16.msra.mxu0 0
        %1910 = vmatpush.bf16.msra.mxu0 0
        %1911 = vmatpush.bf16.msra.mxu0 %v1150
        %1912 = vmatmul.bf16.gmra.mxu0 %v1902
        %v1913 = vpop.f32.mrf.mxu0
        %v1914 = vadd.f32 0.0, %v1913
        %v1915 = vpop.f32.mrf.mxu0
        %1916 = vdwg.mxu0
        %1918 = vrot.lane.b32.xlu0 %v1870, 64
        %v1919 = vpop.permute.xlu0 %1918
        %v1921 = vmul.f32 %v1914, %v1919
        %v1922 = vpack.c.bf16 %v1921, %v1921
        %v1924 = vsel %vm1117, %v1922, 0
        %1926 = vmatpush.bf16.msra.mxu0 0
        %1927 = vmatpush.bf16.msra.mxu0 0
        %1928 = vmatpush.bf16.msra.mxu0 0
        %1929 = vmatpush.bf16.msra.mxu0 0
        %1930 = vmatpush.bf16.msra.mxu0 %v1190
        %1931 = vmatpush.bf16.msra.mxu0 %v1189
        %1932 = vmatpush.bf16.msra.mxu0 %v1188
        %1933 = vmatpush.bf16.msra.mxu0 %v1187
        %1934 = vmatmul.bf16.gmra.mxu0 %v1924
        %v1935 = vpop.f32.mrf.mxu0
        %v1936 = vadd.f32 0.0, %v1935
        %v1937 = vpop.f32.mrf.mxu0
        %1938 = vdwg.mxu0
        %v1939 = vmul.f32 %v1936, %v1798
        %v1940 = vperm.slane %v1869, 1
        %1942 = vrot.lane.b32.xlu0 %v1940, 64
        %v1943 = vpop.permute.xlu0 %1942
        %v1945 = vmul.f32 %v1750, %v1943
        %v1946 = vpack.c.bf16 %v1945, %v1945
        %1948 = vrot.lane.b32.xlu0 %v1946, 64
        %v1949 = vpop.permute.xlu0 %1948
        %v1951 = vsel %vm1117, %v1949, 0
        %1953 = vmatpush.bf16.msra.mxu0 0
        %1954 = vmatpush.bf16.msra.mxu0 0
        %1955 = vmatpush.bf16.msra.mxu0 0
        %1956 = vmatpush.bf16.msra.mxu0 0
        %1957 = vmatpush.bf16.msra.mxu0 %v1112
        %1958 = vmatpush.bf16.msra.mxu0 %v1111
        %1959 = vmatpush.bf16.msra.mxu0 %v1110
        %1960 = vmatpush.bf16.msra.mxu0 %v1109
        %1961 = vmatmul.bf16.gmra.mxu0 %v1951
        %v1962 = vpop.f32.mrf.mxu0
        %v1963 = vadd.f32 0.0, %v1962
        %v1964 = vpop.f32.mrf.mxu0
        %1965 = vdwg.mxu0
        %v1966 = vsel %vm834, %v1963, -inf
        %1967 = vmax.xlane.f32.xlu0 %v1966
        %v1968 = vpop.xlane.xlu0 %1967
        %v1969 = vsub.f32 %v1963, %v1968
        %v1970 = vmul.f32 %v1969, 1.442695
        %v1971 = vpow.pop %v1970
        %v1972 = vsel %vm834, %v1971, 0.0
        %1973 = vadd.xlane.f32.xlu0 %v1972
        %v1974 = vpop.xlane.xlu0 %1973
        %v1975 = vrcp.pop %v1974
        %v1976 = vmul.f32 %v1971, %v1975
        %v1977 = vpack.c.bf16 %v1976, %v1976
        %v1979 = vsel %vm834, %v1977, 0
        %1981 = vmatpush.bf16.msra.mxu0 0
        %1982 = vmatpush.bf16.msra.mxu0 0
        %1983 = vmatpush.bf16.msra.mxu0 0
        %1984 = vmatpush.bf16.msra.mxu0 0
        %1985 = vmatpush.bf16.msra.mxu0 0
        %1986 = vmatpush.bf16.msra.mxu0 0
        %1987 = vmatpush.bf16.msra.mxu0 0
        %1988 = vmatpush.bf16.msra.mxu0 %v1150
        %1989 = vmatmul.bf16.gmra.mxu0 %v1979
        %v1990 = vpop.f32.mrf.mxu0
        %v1991 = vadd.f32 0.0, %v1990
        %v1992 = vpop.f32.mrf.mxu0
        %1993 = vdwg.mxu0
        %v1994 = vmul.f32 %v1991, %v1943
        %v1995 = vpack.c.bf16 %v1994, %v1994
        %v1997 = vsel %vm1117, %v1995, 0
        %1999 = vmatpush.bf16.msra.mxu0 0
        %2000 = vmatpush.bf16.msra.mxu0 0
        %2001 = vmatpush.bf16.msra.mxu0 0
        %2002 = vmatpush.bf16.msra.mxu0 0
        %2003 = vmatpush.bf16.msra.mxu0 %v1190
        %2004 = vmatpush.bf16.msra.mxu0 %v1189
        %2005 = vmatpush.bf16.msra.mxu0 %v1188
        %2006 = vmatpush.bf16.msra.mxu0 %v1187
        %2007 = vmatmul.bf16.gmra.mxu0 %v1997
        %v2008 = vpop.f32.mrf.mxu0
        %v2009 = vadd.f32 0.0, %v2008
        %v2010 = vpop.f32.mrf.mxu0
        %2011 = vdwg.mxu0
        %2013 = vrot.lane.b32.xlu0 %v1798, 120
        %v2014 = vpop.permute.xlu0 %2013
        %v2016 = vmul.f32 %v2009, %v2014
        %v2017 = vperm.slane %v1869, 2
        %v2018 = vmul.f32 %v1763, %v2017
        %v2019 = vpack.c.bf16 %v2018, %v2018
        %v2021 = vsel %vm1117, %v2019, 0
        %2023 = vmatpush.bf16.msra.mxu0 0
        %2024 = vmatpush.bf16.msra.mxu0 0
        %2025 = vmatpush.bf16.msra.mxu0 0
        %2026 = vmatpush.bf16.msra.mxu0 0
        %2027 = vmatpush.bf16.msra.mxu0 %v1112
        %2028 = vmatpush.bf16.msra.mxu0 %v1111
        %2029 = vmatpush.bf16.msra.mxu0 %v1110
        %2030 = vmatpush.bf16.msra.mxu0 %v1109
        %2031 = vmatmul.bf16.gmra.mxu0 %v2021
        %v2032 = vpop.f32.mrf.mxu0
        %v2033 = vadd.f32 0.0, %v2032
        %v2034 = vpop.f32.mrf.mxu0
        %2035 = vdwg.mxu0
        %v2036 = vsel %vm834, %v2033, -inf
        %2037 = vmax.xlane.f32.xlu0 %v2036
        %v2038 = vpop.xlane.xlu0 %2037
        %v2039 = vsub.f32 %v2033, %v2038
        %v2040 = vmul.f32 %v2039, 1.442695
        %v2041 = vpow.pop %v2040
        %v2042 = vsel %vm834, %v2041, 0.0
        %2043 = vadd.xlane.f32.xlu0 %v2042
        %v2044 = vpop.xlane.xlu0 %2043
        %v2045 = vrcp.pop %v2044
        %v2046 = vmul.f32 %v2041, %v2045
        %v2047 = vpack.c.bf16 %v2046, %v2046
        %v2049 = vsel %vm834, %v2047, 0
        %2051 = vmatpush.bf16.msra.mxu0 0
        %2052 = vmatpush.bf16.msra.mxu0 0
        %2053 = vmatpush.bf16.msra.mxu0 0
        %2054 = vmatpush.bf16.msra.mxu0 0
        %2055 = vmatpush.bf16.msra.mxu0 0
        %2056 = vmatpush.bf16.msra.mxu0 0
        %2057 = vmatpush.bf16.msra.mxu0 0
        %2058 = vmatpush.bf16.msra.mxu0 %v1150
        %2059 = vmatmul.bf16.gmra.mxu0 %v2049
        %v2060 = vpop.f32.mrf.mxu0
        %v2061 = vadd.f32 0.0, %v2060
        %v2062 = vpop.f32.mrf.mxu0
        %2063 = vdwg.mxu0
        %2065 = vrot.lane.b32.xlu0 %v2017, 64
        %v2066 = vpop.permute.xlu0 %2065
        %v2068 = vmul.f32 %v2061, %v2066
        %v2069 = vpack.c.bf16 %v2068, %v2068
        %v2071 = vsel %vm1117, %v2069, 0
        %2073 = vmatpush.bf16.msra.mxu0 0
        %2074 = vmatpush.bf16.msra.mxu0 0
        %2075 = vmatpush.bf16.msra.mxu0 0
        %2076 = vmatpush.bf16.msra.mxu0 0
        %2077 = vmatpush.bf16.msra.mxu0 %v1190
        %2078 = vmatpush.bf16.msra.mxu0 %v1189
        %2079 = vmatpush.bf16.msra.mxu0 %v1188
        %2080 = vmatpush.bf16.msra.mxu0 %v1187
        %2081 = vmatmul.bf16.gmra.mxu0 %v2071
        %v2082 = vpop.f32.mrf.mxu0
        %v2083 = vadd.f32 0.0, %v2082
        %v2084 = vpop.f32.mrf.mxu0
        %2085 = vdwg.mxu0
        %2086 = vrot.lane.b32.xlu0 %v1798, 112
        %v2087 = vpop.permute.xlu0 %2086
        %v2089 = vmul.f32 %v2083, %v2087
        %v2090 = vperm.slane %v1869, 3
        %2092 = vrot.lane.b32.xlu0 %v2090, 64
        %v2093 = vpop.permute.xlu0 %2092
        %v2095 = vmul.f32 %v1763, %v2093
        %v2096 = vpack.c.bf16 %v2095, %v2095
        %2098 = vrot.lane.b32.xlu0 %v2096, 64
        %v2099 = vpop.permute.xlu0 %2098
        %v2101 = vsel %vm1117, %v2099, 0
        %2103 = vmatpush.bf16.msra.mxu0 0
        %2104 = vmatpush.bf16.msra.mxu0 0
        %2105 = vmatpush.bf16.msra.mxu0 0
        %2106 = vmatpush.bf16.msra.mxu0 0
        %2107 = vmatpush.bf16.msra.mxu0 %v1112
        %2108 = vmatpush.bf16.msra.mxu0 %v1111
        %2109 = vmatpush.bf16.msra.mxu0 %v1110
        %2110 = vmatpush.bf16.msra.mxu0 %v1109
        %2111 = vmatmul.bf16.gmra.mxu0 %v2101
        %v2112 = vpop.f32.mrf.mxu0
        %v2113 = vadd.f32 0.0, %v2112
        %v2114 = vpop.f32.mrf.mxu0
        %2115 = vdwg.mxu0
        %v2116 = vsel %vm834, %v2113, -inf
        %2117 = vmax.xlane.f32.xlu0 %v2116
        %v2118 = vpop.xlane.xlu0 %2117
        %v2119 = vsub.f32 %v2113, %v2118
        %v2120 = vmul.f32 %v2119, 1.442695
        %v2121 = vpow.pop %v2120
        %v2122 = vsel %vm834, %v2121, 0.0
        %2123 = vadd.xlane.f32.xlu0 %v2122
        %v2124 = vpop.xlane.xlu0 %2123
        %v2125 = vrcp.pop %v2124
        %v2126 = vmul.f32 %v2121, %v2125
        %v2127 = vpack.c.bf16 %v2126, %v2126
        %v2129 = vsel %vm834, %v2127, 0
        %2131 = vmatpush.bf16.msra.mxu0 0
        %2132 = vmatpush.bf16.msra.mxu0 0
        %2133 = vmatpush.bf16.msra.mxu0 0
        %2134 = vmatpush.bf16.msra.mxu0 0
        %2135 = vmatpush.bf16.msra.mxu0 0
        %2136 = vmatpush.bf16.msra.mxu0 0
        %2137 = vmatpush.bf16.msra.mxu0 0
        %2138 = vmatpush.bf16.msra.mxu0 %v1150
        %2139 = vmatmul.bf16.gmra.mxu0 %v2129
        %v2140 = vpop.f32.mrf.mxu0
        %v2141 = vadd.f32 0.0, %v2140
        %v2142 = vpop.f32.mrf.mxu0
        %2143 = vdwg.mxu0
        %v2144 = vmul.f32 %v2141, %v2093
        %v2145 = vpack.c.bf16 %v2144, %v2144
        %v2147 = vsel %vm1117, %v2145, 0
        %2149 = vmatpush.bf16.msra.mxu0 0
        %2150 = vmatpush.bf16.msra.mxu0 0
        %2151 = vmatpush.bf16.msra.mxu0 0
        %2152 = vmatpush.bf16.msra.mxu0 0
        %2153 = vmatpush.bf16.msra.mxu0 %v1190
        %2154 = vmatpush.bf16.msra.mxu0 %v1189
        %2155 = vmatpush.bf16.msra.mxu0 %v1188
        %2156 = vmatpush.bf16.msra.mxu0 %v1187
        %2157 = vmatmul.bf16.gmra.mxu0 %v2147
        %v2158 = vpop.f32.mrf.mxu0
        %v2159 = vadd.f32 0.0, %v2158
        %v2160 = vpop.f32.mrf.mxu0
        %2161 = vdwg.mxu0
        %2162 = vrot.lane.b32.xlu0 %v1798, 104
        %v2163 = vpop.permute.xlu0 %2162
        %v2165 = vmul.f32 %v2159, %v2163
        %2167 = vrot.lane.b32.xlu0 %v2016, 8
        %v2168 = vpop.permute.xlu0 %2167
        %2171 = vrot.lane.b32.xlu0 %v2089, 16
        %v2172 = vpop.permute.xlu0 %2171
        %2175 = vrot.lane.b32.xlu0 %v2165, 24
        %v2176 = vpop.permute.xlu0 %2175
        %v2178 = vsel %vm834, %v1939, %v2168
        %v2179 = vsel %vm1451, %v2178, %v2172
        %v2180 = vsel %vm1453, %v2179, %v2176
        %s2181 = scalar_lea.vmem [#allocation10], 16
        %v2182 = vld [vmem:[%s2181] sm:$0xf]
        %v2183 = vld [vmem:[%s2181 + $0x4] sm:$0xf]
        %v2184 = vld [vmem:[%s2181 + $0x8] sm:$0xf]
        %v2185 = vld [vmem:[%s2181 + $0xc] sm:$0xf]
        %v2186 = vpack.c.bf16 %v2180, %v2180
        %v2191 = vunpack.c.l.b16 %v2182
        %v2192 = vunpack.c.l.b16 %v2183
        %v2193 = vunpack.c.l.b16 %v2184
        %v2194 = vunpack.c.l.b16 %v2185
        %v2195 = vpack.c.b16 %v2192, %v2191
        %v2196 = vpack.c.b16 %v2194, %v2193
        %v2200 = vsel %vm959, %v2186, 0
        %2202 = vmatpush.bf16.msra.mxu0 0
        %2203 = vmatpush.bf16.msra.mxu0 0
        %2204 = vmatpush.bf16.msra.mxu0 0
        %2205 = vmatpush.bf16.msra.mxu0 0
        %2206 = vmatpush.bf16.msra.mxu0 0
        %2207 = vmatpush.bf16.msra.mxu0 0
        %2208 = vmatpush.bf16.msra.mxu0 %v2196
        %2209 = vmatpush.bf16.msra.mxu0 %v2195
        %2210 = vmatmul.bf16.gmra.mxu0 %v2200
        %v2211 = vpop.f32.mrf.mxu0
        %v2212 = vadd.f32 %v1692, %v2211
        %v2213 = vpop.f32.mrf.mxu0
        %2214 = vdwg.mxu0
        %v2215 = vsel %vm959, %v2212, 0.0
        %2216 = vadd.xlane.f32.xlu0 %v2215
        %v2217 = vpop.xlane.xlu0 %2216
        %v2218 = vmul.f32 %v2217, %v867
        %v2219 = vsub.f32 %v2212, %v2218
        %v2220 = vmul.f32 %v2219, %v2219
        %v2221 = vsel %vm959, %v2220, 0.0
        %2222 = vadd.xlane.f32.xlu0 %v2221
        %v2223 = vpop.xlane.xlu0 %2222
        %v2224 = vmul.f32 %v2223, %v867
        %v2225 = vadd.f32 %v2224, 1e-05
        %v2226 = vrsqrt.pop %v2225
        %v2227 = vmul.f32 %v2226, %v2225
        %v2228 = vmul.f32 %v2227, %v2226
        %v2229 = vmul.f32 0.5, %v2228
        %v2230 = vsub.f32 1.5, %v2229
        %v2231 = vmul.f32 %v2226, %v2230
        %vm2232 = vweird.f32 %v2225
        %vm2233 = vweird.f32 %v2226
        %vm2234 = vmor %vm2232, %vm2233
        %v2235 = vsel %vm2234, %v2226, %v2231
        %v2236 = vmul.f32 %v2219, %v2235
        %v2237 = vperm.slane %v1694, 0
        %v2238 = vmul.f32 %v2236, %v2237
        %v2239 = vperm.slane %v1694, 1
        %v2240 = vadd.f32 %v2238, %v2239
        %s2241 = scalar_lea.vmem %s15, 32
        %v2242 = vld [vmem:[%s2241] sm:$0xff]
        %v2243 = vld [vmem:[%s2241 + $0x8] sm:$0xff]
        %v2244 = vld [vmem:[%s2241 + $0x10] sm:$0xff]
        %v2245 = vld [vmem:[%s2241 + $0x18] sm:$0xff]
        %v2246 = vpack.c.bf16 %v2240, %v2240
        %s2247 = scalar_lea.vmem [#allocation13], 2
        %v2248 = vld [vmem:[%s2247] sm:$0x3]
        %v2250 = vperm.slane %v2248, 0
        %v2251 = vperm.slane %v2248, 1
        %v2258 = vunpack.c.l.b16 %v2242
        %v2259 = vunpack.c.h.b16 %v2242
        %v2260 = vunpack.c.l.b16 %v2243
        %v2261 = vunpack.c.h.b16 %v2243
        %v2262 = vunpack.c.l.b16 %v2244
        %v2263 = vunpack.c.h.b16 %v2244
        %v2264 = vunpack.c.l.b16 %v2245
        %v2265 = vunpack.c.h.b16 %v2245
        %v2266 = vpack.c.b16 %v2260, %v2258
        %v2267 = vpack.c.b16 %v2261, %v2259
        %v2268 = vpack.c.b16 %v2264, %v2262
        %v2269 = vpack.c.b16 %v2265, %v2263
        %v2275 = vsel %vm959, %v2246, 0
        %2277 = vmatpush.bf16.msra.mxu0 0
        %2278 = vmatpush.bf16.msra.mxu0 0
        %2279 = vmatpush.bf16.msra.mxu0 0
        %2280 = vmatpush.bf16.msra.mxu0 0
        %2281 = vmatpush.bf16.msra.mxu0 0
        %2282 = vmatpush.bf16.msra.mxu0 0
        %2283 = vmatpush.bf16.msra.mxu0 %v2268
        %2284 = vmatpush.bf16.msra.mxu0 %v2266
        %2285 = vmatmul.bf16.gmra.mxu0 %v2275
        %v2286 = vpop.f32.mrf.mxu0
        %v2287 = vadd.f32 %v2250, %v2286
        %v2288 = vpop.f32.mrf.mxu0
        %2289 = vdwg.mxu0
        %2290 = vmatpush.bf16.msra.mxu0 0
        %2291 = vmatpush.bf16.msra.mxu0 0
        %2292 = vmatpush.bf16.msra.mxu0 0
        %2293 = vmatpush.bf16.msra.mxu0 0
        %2294 = vmatpush.bf16.msra.mxu0 0
        %2295 = vmatpush.bf16.msra.mxu0 0
        %2296 = vmatpush.bf16.msra.mxu0 %v2269
        %2297 = vmatpush.bf16.msra.mxu0 %v2267
        %2298 = vmatmul.bf16.gmra.mxu0 %v2275
        %v2299 = vpop.f32.mrf.mxu0
        %v2300 = vadd.f32 %v2251, %v2299
        %v2301 = vpop.f32.mrf.mxu0
        %2302 = vdwg.mxu0
        %v2303 = vmul.f32 %v2300, %v2300
        %v2304 = vmul.f32 %v2300, %v2303
        %v2305 = vmul.f32 %v2304, 0.044715
        %v2306 = vadd.f32 %v2300, %v2305
        %v2307 = vmul.f32 %v2306, 0.7978846
        %v2308 = vtanh.pop %v2307
        %v2309 = vadd.f32 %v2308, 1.0
        %v2310 = vmul.f32 %v2309, 0.5
        %v2311 = vmul.f32 %v2300, %v2310
        %v2312 = vmul.f32 %v2287, %v2311
        %s2313 = scalar_lea.vmem %s17, 64
        %v2314 = vld [vmem:[%s2313] sm:$0xf]
        %v2315 = vld [vmem:[%s2313 + $0x4] sm:$0xf]
        %v2316 = vld [vmem:[%s2313 + $0x8] sm:$0xf]
        %v2317 = vld [vmem:[%s2313 + $0xc] sm:$0xf]
        %v2318 = vld [vmem:[%s2313 + $0x10] sm:$0xf]
        %v2319 = vld [vmem:[%s2313 + $0x14] sm:$0xf]
        %v2320 = vld [vmem:[%s2313 + $0x18] sm:$0xf]
        %v2321 = vld [vmem:[%s2313 + $0x1c] sm:$0xf]
        %v2322 = vld [vmem:[%s2313 + $0x20] sm:$0xf]
        %v2323 = vld [vmem:[%s2313 + $0x24] sm:$0xf]
        %v2324 = vld [vmem:[%s2313 + $0x28] sm:$0xf]
        %v2325 = vld [vmem:[%s2313 + $0x2c] sm:$0xf]
        %v2326 = vld [vmem:[%s2313 + $0x30] sm:$0xf]
        %v2327 = vld [vmem:[%s2313 + $0x34] sm:$0xf]
        %v2328 = vld [vmem:[%s2313 + $0x38] sm:$0xf]
        %v2329 = vld [vmem:[%s2313 + $0x3c] sm:$0xf]
        %v2330 = vpack.c.bf16 %v2312, %v2312
        %s2331 = scalar_lea.vmem [#allocation15], 1
        %v2332 = vld [vmem:[%s2331] sm:$0x1]
        %v2334 = vperm.slane %v2332, 0
        %v2352 = vunpack.c.l.b16 %v2314
        %v2353 = vunpack.c.l.b16 %v2315
        %v2354 = vunpack.c.l.b16 %v2316
        %v2355 = vunpack.c.l.b16 %v2317
        %v2356 = vunpack.c.l.b16 %v2318
        %v2357 = vunpack.c.l.b16 %v2319
        %v2358 = vunpack.c.l.b16 %v2320
        %v2359 = vunpack.c.l.b16 %v2321
        %v2360 = vunpack.c.l.b16 %v2322
        %v2361 = vunpack.c.l.b16 %v2323
        %v2362 = vunpack.c.l.b16 %v2324
        %v2363 = vunpack.c.l.b16 %v2325
        %v2364 = vunpack.c.l.b16 %v2326
        %v2365 = vunpack.c.l.b16 %v2327
        %v2366 = vunpack.c.l.b16 %v2328
        %v2367 = vunpack.c.l.b16 %v2329
        %v2368 = vpack.c.b16 %v2353, %v2352
        %v2369 = vpack.c.b16 %v2355, %v2354
        %v2370 = vpack.c.b16 %v2357, %v2356
        %v2371 = vpack.c.b16 %v2359, %v2358
        %v2372 = vpack.c.b16 %v2361, %v2360
        %v2373 = vpack.c.b16 %v2363, %v2362
        %v2374 = vpack.c.b16 %v2365, %v2364
        %v2375 = vpack.c.b16 %v2367, %v2366
        %2384 = vmatpush.bf16.msra.mxu0 %v2375
        %2385 = vmatpush.bf16.msra.mxu0 %v2374
        %2386 = vmatpush.bf16.msra.mxu0 %v2373
        %2387 = vmatpush.bf16.msra.mxu0 %v2372
        %2388 = vmatpush.bf16.msra.mxu0 %v2371
        %2389 = vmatpush.bf16.msra.mxu0 %v2370
        %2390 = vmatpush.bf16.msra.mxu0 %v2369
        %2391 = vmatpush.bf16.msra.mxu0 %v2368
        %2392 = vmatmul.bf16.gmra.mxu0 %v2330
        %v2393 = vpop.f32.mrf.mxu0
        %v2394 = vadd.f32 %v2334, %v2393
        %v2395 = vpop.f32.mrf.mxu0
        %2396 = vdwg.mxu0
        %v2397 = vadd.f32 %v2394, %v2240
        %v2398 = vsel %vm959, %v2397, 0.0
        %2399 = vadd.xlane.f32.xlu0 %v2398
        %v2400 = vpop.xlane.xlu0 %2399
        %v2401 = vmul.f32 %v2400, %v867
        %v2402 = vsub.f32 %v2397, %v2401
        %v2403 = vmul.f32 %v2402, %v2402
        %v2404 = vsel %vm959, %v2403, 0.0
        %2405 = vadd.xlane.f32.xlu0 %v2404
        %v2406 = vpop.xlane.xlu0 %2405
        %v2407 = vmul.f32 %v2406, %v867
        %v2408 = vadd.f32 %v2407, 1e-05
        %v2409 = vrsqrt.pop %v2408
        %v2410 = vmul.f32 %v2409, %v2408
        %v2411 = vmul.f32 %v2410, %v2409
        %v2412 = vmul.f32 0.5, %v2411
        %v2413 = vsub.f32 1.5, %v2412
        %v2414 = vmul.f32 %v2409, %v2413
        %vm2415 = vweird.f32 %v2408
        %vm2416 = vweird.f32 %v2409
        %vm2417 = vmor %vm2415, %vm2416
        %v2418 = vsel %vm2417, %v2409, %v2414
        %v2419 = vmul.f32 %v2402, %v2418
        %v2420 = vperm.slane %v1694, 2
        %v2421 = vmul.f32 %v2419, %v2420
        %v2422 = vperm.slane %v1694, 3
        %v2423 = vadd.f32 %v2421, %v2422
        %v2424 = vld [vmem:[#allocation16] sm:$0xf]
        %v2425 = vld [vmem:[#allocation16 + $0x4] sm:$0xf]
        %v2426 = vld [vmem:[#allocation16 + $0x8] sm:$0xf]
        %v2427 = vld [vmem:[#allocation16 + $0xc] sm:$0xf]
        %v2428 = vpack.c.bf16 %v2423, %v2423
        %v2429 = vld [vmem:[#allocation18] sm:$0x1]
        %v2431 = vperm.slane %v2429, 0
        %v2437 = vunpack.c.l.b16 %v2424
        %v2438 = vunpack.c.l.b16 %v2425
        %v2439 = vunpack.c.l.b16 %v2426
        %v2440 = vunpack.c.l.b16 %v2427
        %v2441 = vpack.c.b16 %v2438, %v2437
        %v2442 = vpack.c.b16 %v2440, %v2439
        %v2446 = vsel %vm959, %v2428, 0
        %2448 = vmatpush.bf16.msra.mxu0 0
        %2449 = vmatpush.bf16.msra.mxu0 0
        %2450 = vmatpush.bf16.msra.mxu0 0
        %2451 = vmatpush.bf16.msra.mxu0 0
        %2452 = vmatpush.bf16.msra.mxu0 0
        %2453 = vmatpush.bf16.msra.mxu0 0
        %2454 = vmatpush.bf16.msra.mxu0 %v2442
        %2455 = vmatpush.bf16.msra.mxu0 %v2441
        %2456 = vmatmul.bf16.gmra.mxu0 %v2446
        %v2457 = vpop.f32.mrf.mxu0
        %v2458 = vadd.f32 %v2431, %v2457
        %v2459 = vpop.f32.mrf.mxu0
        %2460 = vdwg.mxu0
        %2461 = vst [vmem:[%s825] sm:$0xff] %v2458
        %p2462 = scmp.lt.s32.totalorder %s38, 1
        %s2463 = scalar_select %p2462, %s38, 1
        %s2464 = smul.addr %s2463, 8
        %s2465 = scalar_lea.vmem %s21, %s2464
        // Predicated region
        $region149: #{itransformer_forward.1} parent=103 // pred_check
          %p2466 = pneg %p502
        $region150: #{itransformer_forward.1} parent=103 // pred_check_branch
          %2468 = sbr.rel (%p2466) target = $region152
        $region151: #{itransformer_forward.1} parent=103 // pred_region
          _
        $region152: #{itransformer_forward.1} parent=103 // pred_fallthru
          _
      $region104: #{itransformer_forward.1} parent=5 // pred_fallthru
        _
      %p2469 = scmp.le.s32.totalorder 2, %s33
      // Predicated region
      $region153: #{itransformer_forward.1} parent=5 // pred_check
        %p2470 = pneg %p2469
      $region154: #{itransformer_forward.1} parent=5 // pred_check_branch
        %2472 = sbr.rel (%p2470) target = $region156
      $region155: #{itransformer_forward.1} parent=5 // pred_region
        %s2473 = ssub.s32 %s33, 2
        // Predicated region
        $region157: #{itransformer_forward.1} parent=155 // pred_check
          %p2474 = pneg %p508
        $region158: #{itransformer_forward.1} parent=155 // pred_check_branch
          %2476 = sbr.rel (%p2474) target = $region160
        $region159: #{itransformer_forward.1} parent=155 // pred_region
          %p2477 = scmp.lt.s32.totalorder %s39, 1
          %s2478 = scalar_select %p2477, %s39, 1
          %s2479 = smul.addr %s2478, 8
          %s2480 = scalar_lea.vmem %s21, %s2479
        $region160: #{itransformer_forward.1} parent=155 // pred_fallthru
          _
      $region156: #{itransformer_forward.1} parent=5 // pred_fallthru
        _
    $region6: #{itransformer_forward.1} parent=1 // loop_footer
      %s37 = sadd.s32 1, %s33
    $region7: #{itransformer_forward.1} parent=1 // loop_footer_branch
      %32 = sbr.rel target = $region3
    $region8: #{itransformer_forward.1} parent=1 // loop_exit
      _
    %2481 = vsyncpa [#allocation3], 1
    %s2482 = scalar_lea.sflag [#allocation3], 1
    %2483 = vsyncpa %s2482, 1
    %2484 = vsyncpa [#allocation5], 1
    %2485 = vsyncpa [#allocation8], 1
    %2486 = vsyncpa [#allocation11], 1
    %2487 = vsyncpa [#allocation14], 1
    %2488 = vsyncpa [#allocation17], 1

</llo_original>
